<compile_context>
chip_gen: v7x
topology: tpu7x:2x2x1
jax: 0.10.0
libtpu: 0.0.40
codegen_flags: <defaults>
</compile_context>

<pallas_src>
import jax
import jax.numpy as jnp
import numpy as np
from jax.experimental import pallas as pl
from jax.experimental.pallas import tpu as pltpu

K = 4                # conv kernel size
C = 8                # conv hidden channels
PAD_L, PAD_R = 1, 2  # torch 'same' padding for kernel_size=4 (left=1, right=2)
LANE = 128


# --------------------------------------------------------------------------
# Pallas kernel
#   grid = (num_batch_tiles, num_fc1_k_tiles)
#   k == 0      : conv1 + ReLU -> lane-aligned channel-major flatten scratch
#                 (bf16), first fc1 partial product written directly
#   k > 0       : fc1 partial contraction accumulated into f32 scratch
#   k == last   : fc1 bias/ReLU (in place), fc2, per-channel fc3 + conv2
# --------------------------------------------------------------------------
def dae_kernel(x_ref, w1_ref, b1_ref, w2_ref, b2_ref,
               fc1w_ref, fc1b_ref, fc2w_ref, fc2b_ref, fc3w_ref, fc3b_ref,
               out_ref, flat_scr, z1_scr):
    k = pl.program_id(1)
    nk = pl.num_programs(1)
    TB, Lpad = x_ref.shape
    TK = fc1w_ref.shape[0]

    def taps(v):
        # v: (TB, Lpad) f32, zeros beyond the valid length.  Returns the four
        # conv taps v[l-1], v[l], v[l+1], v[l+2] with zero boundary handling
        # (torch 'same' padding (1, 2)).  pltpu.roll uses the XLU rotate slot;
        # the boundary select runs on the VPU -- no load/store traffic.
        n = v.shape[1]
        lane = jax.lax.broadcasted_iota(jnp.int32, v.shape, 1)
        t0 = jnp.where(lane >= 1, pltpu.roll(v, 1, axis=1), 0.0)          # v[l-1]
        t2 = jnp.where(lane < n - 1, pltpu.roll(v, n - 1, axis=1), 0.0)   # v[l+1]
        t3 = jnp.where(lane < n - 2, pltpu.roll(v, n - 2, axis=1), 0.0)   # v[l+2]
        return t0, v, t2, t3

    # ---- k == 0: conv1(1->8, K=4, 'same') + ReLU, channel-major flatten ---
    @pl.when(k == 0)
    def _():
        x = x_ref[...]                                        # (TB, Lpad) f32
        t = taps(x)
        for c in range(C):
            acc = (t[0] * w1_ref[c, 0] + t[1] * w1_ref[c, 1]
                   + t[2] * w1_ref[c, 2] + t[3] * w1_ref[c, 3]
                   + b1_ref[c])
            # lane-aligned (multiple-of-128) slab store per channel, bf16
            flat_scr[:, c * Lpad:(c + 1) * Lpad] = \
                jnp.maximum(acc, 0.0).astype(flat_scr.dtype)

    # ---- fc1: partial contraction with this TK slab of the bf16 weight ----
    start = pl.multiple_of(k * TK, TK)
    partial = jnp.dot(flat_scr[:, pl.ds(start, TK)], fc1w_ref[...],
                      preferred_element_type=jnp.float32)     # (TB, Fpad) f32

    @pl.when(k == 0)
    def _():
        z1_scr[...] = partial            # direct write: no zero-init + reload

    @pl.when(k != 0)
    def _():
        z1_scr[...] += partial

    # ---- k == last: fc1 finalize, fc2, per-channel fc3 + conv2, output ----
    @pl.when(k == nk - 1)
    def _():
        # fc1 bias + ReLU written back into the VMEM accumulator so fc2's LHS
        # streams from scratch instead of living in vregs.
        z1_scr[...] = jnp.maximum(z1_scr[...] + fc1b_ref[...], 0.0)

        z2 = jnp.maximum(
            jnp.dot(z1_scr[...].astype(jnp.bfloat16), fc2w_ref[...],
                    preferred_element_type=jnp.float32)
            + fc2b_ref[...], 0.0)                              # (TB, 128)
        z2 = z2.astype(jnp.bfloat16)

        # conv2(8->1, K=4, 'same'): fc3 output is produced (and consumed by
        # the conv taps) one channel at a time -- live set stays ~(TB, Lpad).
        out = jnp.zeros((TB, Lpad), jnp.float32)
        for c in range(C):
            z3c = jnp.maximum(
                jnp.dot(z2, fc3w_ref[:, c * Lpad:(c + 1) * Lpad],
                        preferred_element_type=jnp.float32)
                + fc3b_ref[:, c * Lpad:(c + 1) * Lpad], 0.0)   # (TB, Lpad)
            t = taps(z3c)
            out = out + (t[0] * w2_ref[c, 0] + t[1] * w2_ref[c, 1]
                         + t[2] * w2_ref[c, 2] + t[3] * w2_ref[c, 3])
        out_ref[...] = out + b2_ref[0]


# --------------------------------------------------------------------------
# Generation query (VMEM capacity) with a conservative fallback.
# --------------------------------------------------------------------------
def _tpu_vmem_bytes():
    try:
        info = pltpu.get_tpu_info()
        return int(getattr(info, "vmem_capacity_bytes", 64 << 20))
    except Exception:
        return 64 << 20


# --------------------------------------------------------------------------
# Wrapper: lane-aligned padding / weight permutation, pallas_call plumbing.
# --------------------------------------------------------------------------
def dae_forward(x, params):
    B, L, _ = x.shape
    Lpad = ((L + LANE - 1) // LANE) * LANE
    padL = Lpad - L
    Fpad = C * Lpad

    # ---- generation-aware tiling ------------------------------------------
    vmem = _tpu_vmem_bytes()
    big_vmem = vmem >= (100 << 20)          # v5e / v6e (128 MiB) vs v7x (64 MiB)
    TB_cap = 256
    TK_cap = 1024 if big_vmem else 512
    vmem_limit = (100 << 20) if big_vmem else (56 << 20)
    # The 64 MiB part (v7x) has 2 TensorCores: force >= 2 batch tiles so the
    # "parallel" batch axis can shard across them even for small B.
    force_two = (not big_vmem) and B > 1

    if force_two:
        TB = min(TB_cap, max(8, ((-(-B // 2) + 7) // 8) * 8))
        nb = max(2, -(-B // TB))
    else:
        TB = min(TB_cap, ((B + 7) // 8) * 8)
        nb = -(-B // TB)
    Bpad = nb * TB

    TK = min(TK_cap, Fpad)                  # Fpad is a multiple of 1024
    nk = Fpad // TK

    # ---- lane-dense input slab (zeros beyond B / L) -------------------------
    x2 = jnp.pad(x[..., 0], ((0, Bpad - B), (0, Lpad - L)))     # (Bpad, Lpad)

    # ---- conv weights/biases (scalar taps -> SMEM) --------------------------
    w1 = params['conv1_w'][:, 0, :].astype(jnp.float32)         # (8, 4)
    b1 = params['conv1_b'].astype(jnp.float32)                  # (8,)
    w2 = params['conv2_w'][0].astype(jnp.float32)               # (8, 4)
    b2 = params['conv2_b'].astype(jnp.float32)                  # (1,)

    # ---- fc weights: (in, out) layout, torch flatten c*L+l -> c*Lpad+l,
    #      zero rows/cols for the lane padding, streamed as bf16 --------------
    fc1_wT = params['fc1_w'].T.reshape(C, L, C, L)
    fc1_wT = jnp.pad(fc1_wT, ((0, 0), (0, padL), (0, 0), (0, padL)))
    fc1_wT = fc1_wT.reshape(Fpad, Fpad).astype(jnp.bfloat16)
    fc2_wT = jnp.pad(params['fc2_w'].T.reshape(C, L, 128),
                     ((0, 0), (0, padL), (0, 0))
                     ).reshape(Fpad, 128).astype(jnp.bfloat16)
    fc3_wT = jnp.pad(params['fc3_w'].T.reshape(128, C, L),
                     ((0, 0), (0, 0), (0, padL))
                     ).reshape(128, Fpad).astype(jnp.bfloat16)
    fc1_b = jnp.pad(params['fc1_b'].reshape(C, L),
                    ((0, 0), (0, padL))).reshape(1, Fpad).astype(jnp.float32)
    fc2_b = params['fc2_b'].reshape(1, 128).astype(jnp.float32)
    fc3_b = jnp.pad(params['fc3_b'].reshape(C, L),
                    ((0, 0), (0, padL))).reshape(1, Fpad).astype(jnp.float32)

    smem = pl.BlockSpec(memory_space=pltpu.MemorySpace.SMEM)

    out = pl.pallas_call(
        dae_kernel,
        out_shape=jax.ShapeDtypeStruct((Bpad, Lpad), jnp.float32),
        grid=(nb, nk),
        in_specs=[
            pl.BlockSpec((TB, Lpad), lambda b, k: (b, 0)),      # x tile
            smem, smem, smem, smem,                             # conv w/b
            pl.BlockSpec((TK, Fpad), lambda b, k: (k, 0)),      # fc1 W slab (bf16)
            pl.BlockSpec((1, Fpad), lambda b, k: (0, 0)),       # fc1 b
            pl.BlockSpec((Fpad, 128), lambda b, k: (0, 0)),     # fc2 W (bf16)
            pl.BlockSpec((1, 128), lambda b, k: (0, 0)),        # fc2 b
            pl.BlockSpec((128, Fpad), lambda b, k: (0, 0)),     # fc3 W (bf16)
            pl.BlockSpec((1, Fpad), lambda b, k: (0, 0)),       # fc3 b
        ],
        out_specs=pl.BlockSpec((TB, Lpad), lambda b, k: (b, 0)),
        scratch_shapes=[
            pltpu.VMEM((TB, Fpad), jnp.bfloat16),   # flatten buffer (bf16 LHS)
            pltpu.VMEM((TB, Fpad), jnp.float32),    # fc1 accumulator
        ],
        compiler_params=pltpu.CompilerParams(
            dimension_semantics=("parallel", "arbitrary"),
            vmem_limit_bytes=vmem_limit),
    )(x2, w1, b1, w2, b2, fc1_wT, fc1_b, fc2_wT, fc2_b, fc3_wT, fc3_b)

    return out[:B, :L][:, :, None]                              # (B, L, 1)


# --------------------------------------------------------------------------
# Deterministic parameter init (torch-style uniform(-1/sqrt(fan_in), ...)),
# stored in the PyTorch weight conventions.
# --------------------------------------------------------------------------
def init_params(key, seq_len):
    F = C * seq_len
    ks = jax.random.split(key, 10)

    def unif(k, shape, fan_in):
        bound = 1.0 / np.sqrt(fan_in)
        return jax.random.uniform(k, shape, jnp.float32, -bound, bound)

    return dict(
        conv1_w=unif(ks[0], (C, 1, K), 1 * K),
        conv1_b=unif(ks[1], (C,), 1 * K),
        fc1_w=unif(ks[2], (F, F), F),
        fc1_b=unif(ks[3], (F,), F),
        fc2_w=unif(ks[4], (128, F), F),
        fc2_b=unif(ks[5], (128,), F),
        fc3_w=unif(ks[6], (F, 128), 128),
        fc3_b=unif(ks[7], (F,), 128),
        conv2_w=unif(ks[8], (1, C, K), C * K),
        conv2_b=unif(ks[9], (1,), C * K),
    )


# --------------------------------------------------------------------------
# Pure-JAX reference mirroring the torch forward (NCL convs, torch flatten).
# The fc layers use the same bf16-operand / f32-accumulate scheme as the
# kernel so tolerances can stay tight.
# --------------------------------------------------------------------------
def reference_forward(x, p):
    B, L, _ = x.shape
    hi = jax.lax.Precision.HIGHEST

    def bf(a):
        return a.astype(jnp.bfloat16).astype(jnp.float32)

    xc = jnp.transpose(x, (0, 2, 1))                    # (B, 1, L)
    xpad = jnp.pad(xc, ((0, 0), (0, 0), (PAD_L, PAD_R)))
    taps = jnp.stack([xpad[:, 0, k:k + L] for k in range(K)], -1)   # (B, L, K)
    h1 = jnp.einsum('blk,ck->bcl', taps, p['conv1_w'][:, 0, :], precision=hi) \
        + p['conv1_b'][None, :, None]
    h1 = jax.nn.relu(h1)                                # (B, 8, L)
    flat = h1.reshape(B, C * L)
    z1 = jax.nn.relu(jnp.dot(bf(flat), bf(p['fc1_w'].T), precision=hi)
                     + p['fc1_b'])
    z2 = jax.nn.relu(jnp.dot(bf(z1), bf(p['fc2_w'].T), precision=hi)
                     + p['fc2_b'])
    z3 = jax.nn.relu(jnp.dot(bf(z2), bf(p['fc3_w'].T), precision=hi)
                     + p['fc3_b'])
    h3 = z3.reshape(B, C, L)
    h3p = jnp.pad(h3, ((0, 0), (0, 0), (PAD_L, PAD_R)))
    cols = jnp.stack([h3p[:, :, k:k + L] for k in range(K)], -1)    # (B,8,L,K)
    out = jnp.einsum('bclk,ck->bl', cols, p['conv2_w'][0], precision=hi) \
        + p['conv2_b'][0]
    return out[:, :, None]                              # (B, L, 1)


if __name__ == "__main__":
    B, seq_len = 2, 16
    key = jax.random.PRNGKey(0)
    pkey, xkey = jax.random.split(key)
    params = init_params(pkey, seq_len)
    x = jax.random.normal(xkey, (B, seq_len, 1), jnp.float32)

    y = jax.block_until_ready(dae_forward(x, params))
    y_ref = jax.block_until_ready(reference_forward(x, params))

    assert y.shape == (B, seq_len, 1)
    np.testing.assert_allclose(np.asarray(y), np.asarray(y_ref),
                               rtol=2e-3, atol=2e-3)
    print("KERNEL_OK")
</pallas_src>

<mosaic_0001>
module attributes {stable_mosaic.version = 11 : i64} {
  func.func @dae_kernel(%arg0: i32, %arg1: i32, %arg2: memref<8x128xf32, #tpu.memory_space<vmem>>, %arg3: memref<8x4xf32, #tpu.memory_space<smem>>, %arg4: memref<8xf32, #tpu.memory_space<smem>>, %arg5: memref<8x4xf32, #tpu.memory_space<smem>>, %arg6: memref<1xf32, #tpu.memory_space<smem>>, %arg7: memref<512x1024xbf16, #tpu.memory_space<vmem>>, %arg8: memref<1x1024xf32, #tpu.memory_space<vmem>>, %arg9: memref<1024x128xbf16, #tpu.memory_space<vmem>>, %arg10: memref<1x128xf32, #tpu.memory_space<vmem>>, %arg11: memref<128x1024xbf16, #tpu.memory_space<vmem>>, %arg12: memref<1x1024xf32, #tpu.memory_space<vmem>>, %arg13: memref<8x128xf32, #tpu.memory_space<vmem>>, %arg14: memref<8x1024xbf16, #tpu.memory_space<vmem>>, %arg15: memref<8x1024xf32, #tpu.memory_space<vmem>>) attributes {dimension_semantics = [#tpu.dimension_semantics<parallel>, #tpu.dimension_semantics<arbitrary>], iteration_bounds = array<i64: 2, 2>, scalar_prefetch = 0 : i64, scratch_operands = 2 : i64, tpu.core_type = #tpu.core_type<tc>, window_params = [{transform_indices = @transform_0, window_bounds = array<i64: 8, 128>}, {transform_indices = @transform_1, window_bounds = array<i64: 8, 4>}, {transform_indices = @transform_2, window_bounds = array<i64: 8>}, {transform_indices = @transform_3, window_bounds = array<i64: 8, 4>}, {transform_indices = @transform_4, window_bounds = array<i64: 1>}, {transform_indices = @transform_5, window_bounds = array<i64: 512, 1024>}, {pipeline_mode = #tpu.pipeline_mode<synchronous>, transform_indices = @transform_6, window_bounds = array<i64: 1, 1024>}, {pipeline_mode = #tpu.pipeline_mode<synchronous>, transform_indices = @transform_7, window_bounds = array<i64: 1024, 128>}, {pipeline_mode = #tpu.pipeline_mode<synchronous>, transform_indices = @transform_8, window_bounds = array<i64: 1, 128>}, {pipeline_mode = #tpu.pipeline_mode<synchronous>, transform_indices = @transform_9, window_bounds = array<i64: 128, 1024>}, {pipeline_mode = #tpu.pipeline_mode<synchronous>, transform_indices = @transform_10, window_bounds = array<i64: 1, 1024>}, {transform_indices = @transform_11, window_bounds = array<i64: 8, 128>}]} {
    %c0_i32 = arith.constant 0 : i32
    %0 = arith.cmpi eq, %arg1, %c0_i32 : i32
    %1 = arith.extui %0 : i1 to i32
    %c0_i32_0 = arith.constant 0 : i32
    %2 = arith.cmpi ne, %1, %c0_i32_0 : i32
    scf.if %2 {
      %c0_8 = arith.constant 0 : index
      %c0_9 = arith.constant 0 : index
      %18 = vector.load %arg2[%c0_8, %c0_9] : memref<8x128xf32, #tpu.memory_space<vmem>>, vector<8x128xf32>
      %19 = tpu.iota {dimensions = array<i32: 1>} : vector<8x128xi32>
      %c1_i32_10 = arith.constant 1 : i32
      %20 = vector.broadcast %c1_i32_10 : i32 to vector<8x128xi32>
      %21 = arith.cmpi sge, %19, %20 : vector<8x128xi32>
      %c1_i32_11 = arith.constant 1 : i32
      %22 = tpu.dynamic_rotate %18 by %c1_i32_11 dim 1 : vector<8x128xf32>, i32 -> vector<8x128xf32>
      %cst_12 = arith.constant 0.000000e+00 : f32
      %23 = vector.broadcast %cst_12 : f32 to vector<8x128xf32>
      %24 = arith.select %21, %22, %23 : vector<8x128xi1>, vector<8x128xf32>
      %c127_i32 = arith.constant 127 : i32
      %25 = vector.broadcast %c127_i32 : i32 to vector<8x128xi32>
      %26 = arith.cmpi slt, %19, %25 : vector<8x128xi32>
      %c127_i32_13 = arith.constant 127 : i32
      %27 = tpu.dynamic_rotate %18 by %c127_i32_13 dim 1 : vector<8x128xf32>, i32 -> vector<8x128xf32>
      %cst_14 = arith.constant 0.000000e+00 : f32
      %28 = vector.broadcast %cst_14 : f32 to vector<8x128xf32>
      %29 = arith.select %26, %27, %28 : vector<8x128xi1>, vector<8x128xf32>
      %c126_i32 = arith.constant 126 : i32
      %30 = vector.broadcast %c126_i32 : i32 to vector<8x128xi32>
      %31 = arith.cmpi slt, %19, %30 : vector<8x128xi32>
      %c126_i32_15 = arith.constant 126 : i32
      %32 = tpu.dynamic_rotate %18 by %c126_i32_15 dim 1 : vector<8x128xf32>, i32 -> vector<8x128xf32>
      %cst_16 = arith.constant 0.000000e+00 : f32
      %33 = vector.broadcast %cst_16 : f32 to vector<8x128xf32>
      %34 = arith.select %31, %32, %33 : vector<8x128xi1>, vector<8x128xf32>
      %c0_17 = arith.constant 0 : index
      %c0_18 = arith.constant 0 : index
      %35 = memref.load %arg3[%c0_17, %c0_18] : memref<8x4xf32, #tpu.memory_space<smem>>
      %36 = vector.broadcast %35 : f32 to vector<8x128xf32>
      %37 = arith.mulf %24, %36 : vector<8x128xf32>
      %c0_19 = arith.constant 0 : index
      %c1 = arith.constant 1 : index
      %38 = memref.load %arg3[%c0_19, %c1] : memref<8x4xf32, #tpu.memory_space<smem>>
      %39 = vector.broadcast %38 : f32 to vector<8x128xf32>
      %40 = arith.mulf %18, %39 : vector<8x128xf32>
      %41 = arith.addf %37, %40 : vector<8x128xf32>
      %c0_20 = arith.constant 0 : index
      %c2 = arith.constant 2 : index
      %42 = memref.load %arg3[%c0_20, %c2] : memref<8x4xf32, #tpu.memory_space<smem>>
      %43 = vector.broadcast %42 : f32 to vector<8x128xf32>
      %44 = arith.mulf %29, %43 : vector<8x128xf32>
      %45 = arith.addf %41, %44 : vector<8x128xf32>
      %c0_21 = arith.constant 0 : index
      %c3 = arith.constant 3 : index
      %46 = memref.load %arg3[%c0_21, %c3] : memref<8x4xf32, #tpu.memory_space<smem>>
      %47 = vector.broadcast %46 : f32 to vector<8x128xf32>
      %48 = arith.mulf %34, %47 : vector<8x128xf32>
      %49 = arith.addf %45, %48 : vector<8x128xf32>
      %c0_22 = arith.constant 0 : index
      %50 = memref.load %arg4[%c0_22] : memref<8xf32, #tpu.memory_space<smem>>
      %51 = vector.broadcast %50 : f32 to vector<8x128xf32>
      %52 = arith.addf %49, %51 : vector<8x128xf32>
      %cst_23 = arith.constant 0.000000e+00 : f32
      %53 = vector.broadcast %cst_23 : f32 to vector<8x128xf32>
      %54 = arith.maximumf %52, %53 : vector<8x128xf32>
      %55 = arith.truncf %54 : vector<8x128xf32> to vector<8x128xbf16>
      %c0_24 = arith.constant 0 : index
      %c0_25 = arith.constant 0 : index
      %56 = vector.load %arg14[%c0_24, %c0_25] : memref<8x1024xbf16, #tpu.memory_space<vmem>>, vector<8x128xbf16>
      tpu.vector_store %arg14[%c0_24, %c0_25], %55 {strides = array<i32>} : memref<8x1024xbf16, #tpu.memory_space<vmem>>, vector<8x128xbf16>,
      %c1_26 = arith.constant 1 : index
      %c0_27 = arith.constant 0 : index
      %57 = memref.load %arg3[%c1_26, %c0_27] : memref<8x4xf32, #tpu.memory_space<smem>>
      %58 = vector.broadcast %57 : f32 to vector<8x128xf32>
      %59 = arith.mulf %24, %58 : vector<8x128xf32>
      %c1_28 = arith.constant 1 : index
      %c1_29 = arith.constant 1 : index
      %60 = memref.load %arg3[%c1_28, %c1_29] : memref<8x4xf32, #tpu.memory_space<smem>>
      %61 = vector.broadcast %60 : f32 to vector<8x128xf32>
      %62 = arith.mulf %18, %61 : vector<8x128xf32>
      %63 = arith.addf %59, %62 : vector<8x128xf32>
      %c1_30 = arith.constant 1 : index
      %c2_31 = arith.constant 2 : index
      %64 = memref.load %arg3[%c1_30, %c2_31] : memref<8x4xf32, #tpu.memory_space<smem>>
      %65 = vector.broadcast %64 : f32 to vector<8x128xf32>
      %66 = arith.mulf %29, %65 : vector<8x128xf32>
      %67 = arith.addf %63, %66 : vector<8x128xf32>
      %c1_32 = arith.constant 1 : index
      %c3_33 = arith.constant 3 : index
      %68 = memref.load %arg3[%c1_32, %c3_33] : memref<8x4xf32, #tpu.memory_space<smem>>
      %69 = vector.broadcast %68 : f32 to vector<8x128xf32>
      %70 = arith.mulf %34, %69 : vector<8x128xf32>
      %71 = arith.addf %67, %70 : vector<8x128xf32>
      %c1_34 = arith.constant 1 : index
      %72 = memref.load %arg4[%c1_34] : memref<8xf32, #tpu.memory_space<smem>>
      %73 = vector.broadcast %72 : f32 to vector<8x128xf32>
      %74 = arith.addf %71, %73 : vector<8x128xf32>
      %cst_35 = arith.constant 0.000000e+00 : f32
      %75 = vector.broadcast %cst_35 : f32 to vector<8x128xf32>
      %76 = arith.maximumf %74, %75 : vector<8x128xf32>
      %77 = arith.truncf %76 : vector<8x128xf32> to vector<8x128xbf16>
      %c0_36 = arith.constant 0 : index
      %c128 = arith.constant 128 : index
      %78 = vector.load %arg14[%c0_36, %c128] : memref<8x1024xbf16, #tpu.memory_space<vmem>>, vector<8x128xbf16>
      tpu.vector_store %arg14[%c0_36, %c128], %77 {strides = array<i32>} : memref<8x1024xbf16, #tpu.memory_space<vmem>>, vector<8x128xbf16>,
      %c2_37 = arith.constant 2 : index
      %c0_38 = arith.constant 0 : index
      %79 = memref.load %arg3[%c2_37, %c0_38] : memref<8x4xf32, #tpu.memory_space<smem>>
      %80 = vector.broadcast %79 : f32 to vector<8x128xf32>
      %81 = arith.mulf %24, %80 : vector<8x128xf32>
      %c2_39 = arith.constant 2 : index
      %c1_40 = arith.constant 1 : index
      %82 = memref.load %arg3[%c2_39, %c1_40] : memref<8x4xf32, #tpu.memory_space<smem>>
      %83 = vector.broadcast %82 : f32 to vector<8x128xf32>
      %84 = arith.mulf %18, %83 : vector<8x128xf32>
      %85 = arith.addf %81, %84 : vector<8x128xf32>
      %c2_41 = arith.constant 2 : index
      %c2_42 = arith.constant 2 : index
      %86 = memref.load %arg3[%c2_41, %c2_42] : memref<8x4xf32, #tpu.memory_space<smem>>
      %87 = vector.broadcast %86 : f32 to vector<8x128xf32>
      %88 = arith.mulf %29, %87 : vector<8x128xf32>
      %89 = arith.addf %85, %88 : vector<8x128xf32>
      %c2_43 = arith.constant 2 : index
      %c3_44 = arith.constant 3 : index
      %90 = memref.load %arg3[%c2_43, %c3_44] : memref<8x4xf32, #tpu.memory_space<smem>>
      %91 = vector.broadcast %90 : f32 to vector<8x128xf32>
      %92 = arith.mulf %34, %91 : vector<8x128xf32>
      %93 = arith.addf %89, %92 : vector<8x128xf32>
      %c2_45 = arith.constant 2 : index
      %94 = memref.load %arg4[%c2_45] : memref<8xf32, #tpu.memory_space<smem>>
      %95 = vector.broadcast %94 : f32 to vector<8x128xf32>
      %96 = arith.addf %93, %95 : vector<8x128xf32>
      %cst_46 = arith.constant 0.000000e+00 : f32
      %97 = vector.broadcast %cst_46 : f32 to vector<8x128xf32>
      %98 = arith.maximumf %96, %97 : vector<8x128xf32>
      %99 = arith.truncf %98 : vector<8x128xf32> to vector<8x128xbf16>
      %c0_47 = arith.constant 0 : index
      %c256 = arith.constant 256 : index
      %100 = vector.load %arg14[%c0_47, %c256] : memref<8x1024xbf16, #tpu.memory_space<vmem>>, vector<8x128xbf16>
      tpu.vector_store %arg14[%c0_47, %c256], %99 {strides = array<i32>} : memref<8x1024xbf16, #tpu.memory_space<vmem>>, vector<8x128xbf16>,
      %c3_48 = arith.constant 3 : index
      %c0_49 = arith.constant 0 : index
      %101 = memref.load %arg3[%c3_48, %c0_49] : memref<8x4xf32, #tpu.memory_space<smem>>
      %102 = vector.broadcast %101 : f32 to vector<8x128xf32>
      %103 = arith.mulf %24, %102 : vector<8x128xf32>
      %c3_50 = arith.constant 3 : index
      %c1_51 = arith.constant 1 : index
      %104 = memref.load %arg3[%c3_50, %c1_51] : memref<8x4xf32, #tpu.memory_space<smem>>
      %105 = vector.broadcast %104 : f32 to vector<8x128xf32>
      %106 = arith.mulf %18, %105 : vector<8x128xf32>
      %107 = arith.addf %103, %106 : vector<8x128xf32>
      %c3_52 = arith.constant 3 : index
      %c2_53 = arith.constant 2 : index
      %108 = memref.load %arg3[%c3_52, %c2_53] : memref<8x4xf32, #tpu.memory_space<smem>>
      %109 = vector.broadcast %108 : f32 to vector<8x128xf32>
      %110 = arith.mulf %29, %109 : vector<8x128xf32>
      %111 = arith.addf %107, %110 : vector<8x128xf32>
      %c3_54 = arith.constant 3 : index
      %c3_55 = arith.constant 3 : index
      %112 = memref.load %arg3[%c3_54, %c3_55] : memref<8x4xf32, #tpu.memory_space<smem>>
      %113 = vector.broadcast %112 : f32 to vector<8x128xf32>
      %114 = arith.mulf %34, %113 : vector<8x128xf32>
      %115 = arith.addf %111, %114 : vector<8x128xf32>
      %c3_56 = arith.constant 3 : index
      %116 = memref.load %arg4[%c3_56] : memref<8xf32, #tpu.memory_space<smem>>
      %117 = vector.broadcast %116 : f32 to vector<8x128xf32>
      %118 = arith.addf %115, %117 : vector<8x128xf32>
      %cst_57 = arith.constant 0.000000e+00 : f32
      %119 = vector.broadcast %cst_57 : f32 to vector<8x128xf32>
      %120 = arith.maximumf %118, %119 : vector<8x128xf32>
      %121 = arith.truncf %120 : vector<8x128xf32> to vector<8x128xbf16>
      %c0_58 = arith.constant 0 : index
      %c384 = arith.constant 384 : index
      %122 = vector.load %arg14[%c0_58, %c384] : memref<8x1024xbf16, #tpu.memory_space<vmem>>, vector<8x128xbf16>
      tpu.vector_store %arg14[%c0_58, %c384], %121 {strides = array<i32>} : memref<8x1024xbf16, #tpu.memory_space<vmem>>, vector<8x128xbf16>,
      %c4 = arith.constant 4 : index
      %c0_59 = arith.constant 0 : index
      %123 = memref.load %arg3[%c4, %c0_59] : memref<8x4xf32, #tpu.memory_space<smem>>
      %124 = vector.broadcast %123 : f32 to vector<8x128xf32>
      %125 = arith.mulf %24, %124 : vector<8x128xf32>
      %c4_60 = arith.constant 4 : index
      %c1_61 = arith.constant 1 : index
      %126 = memref.load %arg3[%c4_60, %c1_61] : memref<8x4xf32, #tpu.memory_space<smem>>
      %127 = vector.broadcast %126 : f32 to vector<8x128xf32>
      %128 = arith.mulf %18, %127 : vector<8x128xf32>
      %129 = arith.addf %125, %128 : vector<8x128xf32>
      %c4_62 = arith.constant 4 : index
      %c2_63 = arith.constant 2 : index
      %130 = memref.load %arg3[%c4_62, %c2_63] : memref<8x4xf32, #tpu.memory_space<smem>>
      %131 = vector.broadcast %130 : f32 to vector<8x128xf32>
      %132 = arith.mulf %29, %131 : vector<8x128xf32>
      %133 = arith.addf %129, %132 : vector<8x128xf32>
      %c4_64 = arith.constant 4 : index
      %c3_65 = arith.constant 3 : index
      %134 = memref.load %arg3[%c4_64, %c3_65] : memref<8x4xf32, #tpu.memory_space<smem>>
      %135 = vector.broadcast %134 : f32 to vector<8x128xf32>
      %136 = arith.mulf %34, %135 : vector<8x128xf32>
      %137 = arith.addf %133, %136 : vector<8x128xf32>
      %c4_66 = arith.constant 4 : index
      %138 = memref.load %arg4[%c4_66] : memref<8xf32, #tpu.memory_space<smem>>
      %139 = vector.broadcast %138 : f32 to vector<8x128xf32>
      %140 = arith.addf %137, %139 : vector<8x128xf32>
      %cst_67 = arith.constant 0.000000e+00 : f32
      %141 = vector.broadcast %cst_67 : f32 to vector<8x128xf32>
      %142 = arith.maximumf %140, %141 : vector<8x128xf32>
      %143 = arith.truncf %142 : vector<8x128xf32> to vector<8x128xbf16>
      %c0_68 = arith.constant 0 : index
      %c512 = arith.constant 512 : index
      %144 = vector.load %arg14[%c0_68, %c512] : memref<8x1024xbf16, #tpu.memory_space<vmem>>, vector<8x128xbf16>
      tpu.vector_store %arg14[%c0_68, %c512], %143 {strides = array<i32>} : memref<8x1024xbf16, #tpu.memory_space<vmem>>, vector<8x128xbf16>,
      %c5 = arith.constant 5 : index
      %c0_69 = arith.constant 0 : index
      %145 = memref.load %arg3[%c5, %c0_69] : memref<8x4xf32, #tpu.memory_space<smem>>
      %146 = vector.broadcast %145 : f32 to vector<8x128xf32>
      %147 = arith.mulf %24, %146 : vector<8x128xf32>
      %c5_70 = arith.constant 5 : index
      %c1_71 = arith.constant 1 : index
      %148 = memref.load %arg3[%c5_70, %c1_71] : memref<8x4xf32, #tpu.memory_space<smem>>
      %149 = vector.broadcast %148 : f32 to vector<8x128xf32>
      %150 = arith.mulf %18, %149 : vector<8x128xf32>
      %151 = arith.addf %147, %150 : vector<8x128xf32>
      %c5_72 = arith.constant 5 : index
      %c2_73 = arith.constant 2 : index
      %152 = memref.load %arg3[%c5_72, %c2_73] : memref<8x4xf32, #tpu.memory_space<smem>>
      %153 = vector.broadcast %152 : f32 to vector<8x128xf32>
      %154 = arith.mulf %29, %153 : vector<8x128xf32>
      %155 = arith.addf %151, %154 : vector<8x128xf32>
      %c5_74 = arith.constant 5 : index
      %c3_75 = arith.constant 3 : index
      %156 = memref.load %arg3[%c5_74, %c3_75] : memref<8x4xf32, #tpu.memory_space<smem>>
      %157 = vector.broadcast %156 : f32 to vector<8x128xf32>
      %158 = arith.mulf %34, %157 : vector<8x128xf32>
      %159 = arith.addf %155, %158 : vector<8x128xf32>
      %c5_76 = arith.constant 5 : index
      %160 = memref.load %arg4[%c5_76] : memref<8xf32, #tpu.memory_space<smem>>
      %161 = vector.broadcast %160 : f32 to vector<8x128xf32>
      %162 = arith.addf %159, %161 : vector<8x128xf32>
      %cst_77 = arith.constant 0.000000e+00 : f32
      %163 = vector.broadcast %cst_77 : f32 to vector<8x128xf32>
      %164 = arith.maximumf %162, %163 : vector<8x128xf32>
      %165 = arith.truncf %164 : vector<8x128xf32> to vector<8x128xbf16>
      %c0_78 = arith.constant 0 : index
      %c640 = arith.constant 640 : index
      %166 = vector.load %arg14[%c0_78, %c640] : memref<8x1024xbf16, #tpu.memory_space<vmem>>, vector<8x128xbf16>
      tpu.vector_store %arg14[%c0_78, %c640], %165 {strides = array<i32>} : memref<8x1024xbf16, #tpu.memory_space<vmem>>, vector<8x128xbf16>,
      %c6 = arith.constant 6 : index
      %c0_79 = arith.constant 0 : index
      %167 = memref.load %arg3[%c6, %c0_79] : memref<8x4xf32, #tpu.memory_space<smem>>
      %168 = vector.broadcast %167 : f32 to vector<8x128xf32>
      %169 = arith.mulf %24, %168 : vector<8x128xf32>
      %c6_80 = arith.constant 6 : index
      %c1_81 = arith.constant 1 : index
      %170 = memref.load %arg3[%c6_80, %c1_81] : memref<8x4xf32, #tpu.memory_space<smem>>
      %171 = vector.broadcast %170 : f32 to vector<8x128xf32>
      %172 = arith.mulf %18, %171 : vector<8x128xf32>
      %173 = arith.addf %169, %172 : vector<8x128xf32>
      %c6_82 = arith.constant 6 : index
      %c2_83 = arith.constant 2 : index
      %174 = memref.load %arg3[%c6_82, %c2_83] : memref<8x4xf32, #tpu.memory_space<smem>>
      %175 = vector.broadcast %174 : f32 to vector<8x128xf32>
      %176 = arith.mulf %29, %175 : vector<8x128xf32>
      %177 = arith.addf %173, %176 : vector<8x128xf32>
      %c6_84 = arith.constant 6 : index
      %c3_85 = arith.constant 3 : index
      %178 = memref.load %arg3[%c6_84, %c3_85] : memref<8x4xf32, #tpu.memory_space<smem>>
      %179 = vector.broadcast %178 : f32 to vector<8x128xf32>
      %180 = arith.mulf %34, %179 : vector<8x128xf32>
      %181 = arith.addf %177, %180 : vector<8x128xf32>
      %c6_86 = arith.constant 6 : index
      %182 = memref.load %arg4[%c6_86] : memref<8xf32, #tpu.memory_space<smem>>
      %183 = vector.broadcast %182 : f32 to vector<8x128xf32>
      %184 = arith.addf %181, %183 : vector<8x128xf32>
      %cst_87 = arith.constant 0.000000e+00 : f32
      %185 = vector.broadcast %cst_87 : f32 to vector<8x128xf32>
      %186 = arith.maximumf %184, %185 : vector<8x128xf32>
      %187 = arith.truncf %186 : vector<8x128xf32> to vector<8x128xbf16>
      %c0_88 = arith.constant 0 : index
      %c768 = arith.constant 768 : index
      %188 = vector.load %arg14[%c0_88, %c768] : memref<8x1024xbf16, #tpu.memory_space<vmem>>, vector<8x128xbf16>
      tpu.vector_store %arg14[%c0_88, %c768], %187 {strides = array<i32>} : memref<8x1024xbf16, #tpu.memory_space<vmem>>, vector<8x128xbf16>,
      %c7 = arith.constant 7 : index
      %c0_89 = arith.constant 0 : index
      %189 = memref.load %arg3[%c7, %c0_89] : memref<8x4xf32, #tpu.memory_space<smem>>
      %190 = vector.broadcast %189 : f32 to vector<8x128xf32>
      %191 = arith.mulf %24, %190 : vector<8x128xf32>
      %c7_90 = arith.constant 7 : index
      %c1_91 = arith.constant 1 : index
      %192 = memref.load %arg3[%c7_90, %c1_91] : memref<8x4xf32, #tpu.memory_space<smem>>
      %193 = vector.broadcast %192 : f32 to vector<8x128xf32>
      %194 = arith.mulf %18, %193 : vector<8x128xf32>
      %195 = arith.addf %191, %194 : vector<8x128xf32>
      %c7_92 = arith.constant 7 : index
      %c2_93 = arith.constant 2 : index
      %196 = memref.load %arg3[%c7_92, %c2_93] : memref<8x4xf32, #tpu.memory_space<smem>>
      %197 = vector.broadcast %196 : f32 to vector<8x128xf32>
      %198 = arith.mulf %29, %197 : vector<8x128xf32>
      %199 = arith.addf %195, %198 : vector<8x128xf32>
      %c7_94 = arith.constant 7 : index
      %c3_95 = arith.constant 3 : index
      %200 = memref.load %arg3[%c7_94, %c3_95] : memref<8x4xf32, #tpu.memory_space<smem>>
      %201 = vector.broadcast %200 : f32 to vector<8x128xf32>
      %202 = arith.mulf %34, %201 : vector<8x128xf32>
      %203 = arith.addf %199, %202 : vector<8x128xf32>
      %c7_96 = arith.constant 7 : index
      %204 = memref.load %arg4[%c7_96] : memref<8xf32, #tpu.memory_space<smem>>
      %205 = vector.broadcast %204 : f32 to vector<8x128xf32>
      %206 = arith.addf %203, %205 : vector<8x128xf32>
      %cst_97 = arith.constant 0.000000e+00 : f32
      %207 = vector.broadcast %cst_97 : f32 to vector<8x128xf32>
      %208 = arith.maximumf %206, %207 : vector<8x128xf32>
      %209 = arith.truncf %208 : vector<8x128xf32> to vector<8x128xbf16>
      %c0_98 = arith.constant 0 : index
      %c896 = arith.constant 896 : index
      %210 = vector.load %arg14[%c0_98, %c896] : memref<8x1024xbf16, #tpu.memory_space<vmem>>, vector<8x128xbf16>
      tpu.vector_store %arg14[%c0_98, %c896], %209 {strides = array<i32>} : memref<8x1024xbf16, #tpu.memory_space<vmem>>, vector<8x128xbf16>,
    } else {
    }
    %c512_i32 = arith.constant 512 : i32
    %3 = arith.muli %arg1, %c512_i32 : i32
    %4 = tpu.assume_multiple %3, 512 : i32
    %c0 = arith.constant 0 : index
    %5 = arith.index_cast %4 : i32 to index
    %6 = vector.load %arg14[%c0, %5] : memref<8x1024xbf16, #tpu.memory_space<vmem>>, vector<8x512xbf16>
    %c0_1 = arith.constant 0 : index
    %c0_2 = arith.constant 0 : index
    %7 = vector.load %arg7[%c0_1, %c0_2] : memref<512x1024xbf16, #tpu.memory_space<vmem>>, vector<512x1024xbf16>
    %cst = arith.constant dense<0.000000e+00> : vector<8x1024xf32>
    %8 = tpu.matmul %6, %7, %cst {dimension_numbers = #tpu.dot_dimension_numbers<[1], [0], [0], [1], [0, 0, 1, 1], [], []>} : vector<8x512xbf16>, vector<512x1024xbf16>, vector<8x1024xf32> -> vector<8x1024xf32>
    %c0_i32_3 = arith.constant 0 : i32
    %9 = arith.cmpi eq, %arg1, %c0_i32_3 : i32
    %10 = arith.extui %9 : i1 to i32
    %c0_i32_4 = arith.constant 0 : i32
    %11 = arith.cmpi ne, %10, %c0_i32_4 : i32
    scf.if %11 {
      %c0_8 = arith.constant 0 : index
      %c0_9 = arith.constant 0 : index
      %18 = vector.load %arg15[%c0_8, %c0_9] : memref<8x1024xf32, #tpu.memory_space<vmem>>, vector<8x1024xf32>
      tpu.vector_store %arg15[%c0_8, %c0_9], %8 {strides = array<i32>} : memref<8x1024xf32, #tpu.memory_space<vmem>>, vector<8x1024xf32>,
    } else {
    }
    %c0_i32_5 = arith.constant 0 : i32
    %12 = arith.cmpi ne, %arg1, %c0_i32_5 : i32
    %13 = arith.extui %12 : i1 to i32
    %c0_i32_6 = arith.constant 0 : i32
    %14 = arith.cmpi ne, %13, %c0_i32_6 : i32
    scf.if %14 {
      %c0_8 = arith.constant 0 : index
      %c0_9 = arith.constant 0 : index
      %18 = vector.load %arg15[%c0_8, %c0_9] : memref<8x1024xf32, #tpu.memory_space<vmem>>, vector<8x1024xf32>
      %19 = arith.addf %18, %8 : vector<8x1024xf32>
      %c0_10 = arith.constant 0 : index
      %c0_11 = arith.constant 0 : index
      %20 = vector.load %arg15[%c0_10, %c0_11] : memref<8x1024xf32, #tpu.memory_space<vmem>>, vector<8x1024xf32>
      tpu.vector_store %arg15[%c0_10, %c0_11], %19 {strides = array<i32>} : memref<8x1024xf32, #tpu.memory_space<vmem>>, vector<8x1024xf32>,
    } else {
    }
    %c1_i32 = arith.constant 1 : i32
    %15 = arith.cmpi eq, %arg1, %c1_i32 : i32
    %16 = arith.extui %15 : i1 to i32
    %c0_i32_7 = arith.constant 0 : i32
    %17 = arith.cmpi ne, %16, %c0_i32_7 : i32
    scf.if %17 {
      %c0_8 = arith.constant 0 : index
      %c0_9 = arith.constant 0 : index
      %18 = vector.load %arg15[%c0_8, %c0_9] : memref<8x1024xf32, #tpu.memory_space<vmem>>, vector<8x1024xf32>
      %c0_10 = arith.constant 0 : index
      %c0_11 = arith.constant 0 : index
      %19 = vector.load %arg8[%c0_10, %c0_11] : memref<1x1024xf32, #tpu.memory_space<vmem>>, vector<1x1024xf32>
      %20 = vector.broadcast %19 : vector<1x1024xf32> to vector<8x1024xf32>
      %21 = arith.addf %18, %20 : vector<8x1024xf32>
      %cst_12 = arith.constant 0.000000e+00 : f32
      %22 = vector.broadcast %cst_12 : f32 to vector<8x1024xf32>
      %23 = arith.maximumf %21, %22 : vector<8x1024xf32>
      %c0_13 = arith.constant 0 : index
      %c0_14 = arith.constant 0 : index
      %24 = vector.load %arg15[%c0_13, %c0_14] : memref<8x1024xf32, #tpu.memory_space<vmem>>, vector<8x1024xf32>
      tpu.vector_store %arg15[%c0_13, %c0_14], %23 {strides = array<i32>} : memref<8x1024xf32, #tpu.memory_space<vmem>>, vector<8x1024xf32>,
      %c0_15 = arith.constant 0 : index
      %c0_16 = arith.constant 0 : index
      %25 = vector.load %arg15[%c0_15, %c0_16] : memref<8x1024xf32, #tpu.memory_space<vmem>>, vector<8x1024xf32>
      %26 = arith.truncf %25 : vector<8x1024xf32> to vector<8x1024xbf16>
      %c0_17 = arith.constant 0 : index
      %c0_18 = arith.constant 0 : index
      %27 = vector.load %arg9[%c0_17, %c0_18] : memref<1024x128xbf16, #tpu.memory_space<vmem>>, vector<1024x128xbf16>
      %cst_19 = arith.constant dense<0.000000e+00> : vector<8x128xf32>
      %28 = tpu.matmul %26, %27, %cst_19 {dimension_numbers = #tpu.dot_dimension_numbers<[1], [0], [0], [1], [0, 0, 1, 1], [], []>} : vector<8x1024xbf16>, vector<1024x128xbf16>, vector<8x128xf32> -> vector<8x128xf32>
      %c0_20 = arith.constant 0 : index
      %c0_21 = arith.constant 0 : index
      %29 = vector.load %arg10[%c0_20, %c0_21] : memref<1x128xf32, #tpu.memory_space<vmem>>, vector<1x128xf32>
      %30 = vector.broadcast %29 : vector<1x128xf32> to vector<8x128xf32>
      %31 = arith.addf %28, %30 : vector<8x128xf32>
      %cst_22 = arith.constant 0.000000e+00 : f32
      %32 = vector.broadcast %cst_22 : f32 to vector<8x128xf32>
      %33 = arith.maximumf %31, %32 : vector<8x128xf32>
      %34 = arith.truncf %33 : vector<8x128xf32> to vector<8x128xbf16>
      %cst_23 = arith.constant 0.000000e+00 : f32
      %35 = vector.broadcast %cst_23 : f32 to vector<8x128xf32>
      %c0_24 = arith.constant 0 : index
      %c0_25 = arith.constant 0 : index
      %36 = vector.load %arg11[%c0_24, %c0_25] : memref<128x1024xbf16, #tpu.memory_space<vmem>>, vector<128x128xbf16>
      %cst_26 = arith.constant dense<0.000000e+00> : vector<8x128xf32>
      %37 = tpu.matmul %34, %36, %cst_26 {dimension_numbers = #tpu.dot_dimension_numbers<[1], [0], [0], [1], [0, 0, 1, 1], [], []>} : vector<8x128xbf16>, vector<128x128xbf16>, vector<8x128xf32> -> vector<8x128xf32>
      %c0_27 = arith.constant 0 : index
      %c0_28 = arith.constant 0 : index
      %38 = vector.load %arg12[%c0_27, %c0_28] : memref<1x1024xf32, #tpu.memory_space<vmem>>, vector<1x128xf32>
      %39 = vector.broadcast %38 : vector<1x128xf32> to vector<8x128xf32>
      %40 = arith.addf %37, %39 : vector<8x128xf32>
      %cst_29 = arith.constant 0.000000e+00 : f32
      %41 = vector.broadcast %cst_29 : f32 to vector<8x128xf32>
      %42 = arith.maximumf %40, %41 : vector<8x128xf32>
      %43 = tpu.iota {dimensions = array<i32: 1>} : vector<8x128xi32>
      %c1_i32_30 = arith.constant 1 : i32
      %44 = vector.broadcast %c1_i32_30 : i32 to vector<8x128xi32>
      %45 = arith.cmpi sge, %43, %44 : vector<8x128xi32>
      %c1_i32_31 = arith.constant 1 : i32
      %46 = tpu.dynamic_rotate %42 by %c1_i32_31 dim 1 : vector<8x128xf32>, i32 -> vector<8x128xf32>
      %cst_32 = arith.constant 0.000000e+00 : f32
      %47 = vector.broadcast %cst_32 : f32 to vector<8x128xf32>
      %48 = arith.select %45, %46, %47 : vector<8x128xi1>, vector<8x128xf32>
      %c127_i32 = arith.constant 127 : i32
      %49 = vector.broadcast %c127_i32 : i32 to vector<8x128xi32>
      %50 = arith.cmpi slt, %43, %49 : vector<8x128xi32>
      %c127_i32_33 = arith.constant 127 : i32
      %51 = tpu.dynamic_rotate %42 by %c127_i32_33 dim 1 : vector<8x128xf32>, i32 -> vector<8x128xf32>
      %cst_34 = arith.constant 0.000000e+00 : f32
      %52 = vector.broadcast %cst_34 : f32 to vector<8x128xf32>
      %53 = arith.select %50, %51, %52 : vector<8x128xi1>, vector<8x128xf32>
      %c126_i32 = arith.constant 126 : i32
      %54 = vector.broadcast %c126_i32 : i32 to vector<8x128xi32>
      %55 = arith.cmpi slt, %43, %54 : vector<8x128xi32>
      %c126_i32_35 = arith.constant 126 : i32
      %56 = tpu.dynamic_rotate %42 by %c126_i32_35 dim 1 : vector<8x128xf32>, i32 -> vector<8x128xf32>
      %cst_36 = arith.constant 0.000000e+00 : f32
      %57 = vector.broadcast %cst_36 : f32 to vector<8x128xf32>
      %58 = arith.select %55, %56, %57 : vector<8x128xi1>, vector<8x128xf32>
      %c0_37 = arith.constant 0 : index
      %c0_38 = arith.constant 0 : index
      %59 = memref.load %arg5[%c0_37, %c0_38] : memref<8x4xf32, #tpu.memory_space<smem>>
      %60 = vector.broadcast %59 : f32 to vector<8x128xf32>
      %61 = arith.mulf %48, %60 : vector<8x128xf32>
      %c0_39 = arith.constant 0 : index
      %c1 = arith.constant 1 : index
      %62 = memref.load %arg5[%c0_39, %c1] : memref<8x4xf32, #tpu.memory_space<smem>>
      %63 = vector.broadcast %62 : f32 to vector<8x128xf32>
      %64 = arith.mulf %42, %63 : vector<8x128xf32>
      %65 = arith.addf %61, %64 : vector<8x128xf32>
      %c0_40 = arith.constant 0 : index
      %c2 = arith.constant 2 : index
      %66 = memref.load %arg5[%c0_40, %c2] : memref<8x4xf32, #tpu.memory_space<smem>>
      %67 = vector.broadcast %66 : f32 to vector<8x128xf32>
      %68 = arith.mulf %53, %67 : vector<8x128xf32>
      %69 = arith.addf %65, %68 : vector<8x128xf32>
      %c0_41 = arith.constant 0 : index
      %c3 = arith.constant 3 : index
      %70 = memref.load %arg5[%c0_41, %c3] : memref<8x4xf32, #tpu.memory_space<smem>>
      %71 = vector.broadcast %70 : f32 to vector<8x128xf32>
      %72 = arith.mulf %58, %71 : vector<8x128xf32>
      %73 = arith.addf %69, %72 : vector<8x128xf32>
      %74 = arith.addf %35, %73 : vector<8x128xf32>
      %c0_42 = arith.constant 0 : index
      %c128 = arith.constant 128 : index
      %75 = vector.load %arg11[%c0_42, %c128] : memref<128x1024xbf16, #tpu.memory_space<vmem>>, vector<128x128xbf16>
      %cst_43 = arith.constant dense<0.000000e+00> : vector<8x128xf32>
      %76 = tpu.matmul %34, %75, %cst_43 {dimension_numbers = #tpu.dot_dimension_numbers<[1], [0], [0], [1], [0, 0, 1, 1], [], []>} : vector<8x128xbf16>, vector<128x128xbf16>, vector<8x128xf32> -> vector<8x128xf32>
      %c0_44 = arith.constant 0 : index
      %c128_45 = arith.constant 128 : index
      %77 = vector.load %arg12[%c0_44, %c128_45] : memref<1x1024xf32, #tpu.memory_space<vmem>>, vector<1x128xf32>
      %78 = vector.broadcast %77 : vector<1x128xf32> to vector<8x128xf32>
      %79 = arith.addf %76, %78 : vector<8x128xf32>
      %cst_46 = arith.constant 0.000000e+00 : f32
      %80 = vector.broadcast %cst_46 : f32 to vector<8x128xf32>
      %81 = arith.maximumf %79, %80 : vector<8x128xf32>
      %82 = tpu.iota {dimensions = array<i32: 1>} : vector<8x128xi32>
      %c1_i32_47 = arith.constant 1 : i32
      %83 = vector.broadcast %c1_i32_47 : i32 to vector<8x128xi32>
      %84 = arith.cmpi sge, %82, %83 : vector<8x128xi32>
      %c1_i32_48 = arith.constant 1 : i32
      %85 = tpu.dynamic_rotate %81 by %c1_i32_48 dim 1 : vector<8x128xf32>, i32 -> vector<8x128xf32>
      %cst_49 = arith.constant 0.000000e+00 : f32
      %86 = vector.broadcast %cst_49 : f32 to vector<8x128xf32>
      %87 = arith.select %84, %85, %86 : vector<8x128xi1>, vector<8x128xf32>
      %c127_i32_50 = arith.constant 127 : i32
      %88 = vector.broadcast %c127_i32_50 : i32 to vector<8x128xi32>
      %89 = arith.cmpi slt, %82, %88 : vector<8x128xi32>
      %c127_i32_51 = arith.constant 127 : i32
      %90 = tpu.dynamic_rotate %81 by %c127_i32_51 dim 1 : vector<8x128xf32>, i32 -> vector<8x128xf32>
      %cst_52 = arith.constant 0.000000e+00 : f32
      %91 = vector.broadcast %cst_52 : f32 to vector<8x128xf32>
      %92 = arith.select %89, %90, %91 : vector<8x128xi1>, vector<8x128xf32>
      %c126_i32_53 = arith.constant 126 : i32
      %93 = vector.broadcast %c126_i32_53 : i32 to vector<8x128xi32>
      %94 = arith.cmpi slt, %82, %93 : vector<8x128xi32>
      %c126_i32_54 = arith.constant 126 : i32
      %95 = tpu.dynamic_rotate %81 by %c126_i32_54 dim 1 : vector<8x128xf32>, i32 -> vector<8x128xf32>
      %cst_55 = arith.constant 0.000000e+00 : f32
      %96 = vector.broadcast %cst_55 : f32 to vector<8x128xf32>
      %97 = arith.select %94, %95, %96 : vector<8x128xi1>, vector<8x128xf32>
      %c1_56 = arith.constant 1 : index
      %c0_57 = arith.constant 0 : index
      %98 = memref.load %arg5[%c1_56, %c0_57] : memref<8x4xf32, #tpu.memory_space<smem>>
      %99 = vector.broadcast %98 : f32 to vector<8x128xf32>
      %100 = arith.mulf %87, %99 : vector<8x128xf32>
      %c1_58 = arith.constant 1 : index
      %c1_59 = arith.constant 1 : index
      %101 = memref.load %arg5[%c1_58, %c1_59] : memref<8x4xf32, #tpu.memory_space<smem>>
      %102 = vector.broadcast %101 : f32 to vector<8x128xf32>
      %103 = arith.mulf %81, %102 : vector<8x128xf32>
      %104 = arith.addf %100, %103 : vector<8x128xf32>
      %c1_60 = arith.constant 1 : index
      %c2_61 = arith.constant 2 : index
      %105 = memref.load %arg5[%c1_60, %c2_61] : memref<8x4xf32, #tpu.memory_space<smem>>
      %106 = vector.broadcast %105 : f32 to vector<8x128xf32>
      %107 = arith.mulf %92, %106 : vector<8x128xf32>
      %108 = arith.addf %104, %107 : vector<8x128xf32>
      %c1_62 = arith.constant 1 : index
      %c3_63 = arith.constant 3 : index
      %109 = memref.load %arg5[%c1_62, %c3_63] : memref<8x4xf32, #tpu.memory_space<smem>>
      %110 = vector.broadcast %109 : f32 to vector<8x128xf32>
      %111 = arith.mulf %97, %110 : vector<8x128xf32>
      %112 = arith.addf %108, %111 : vector<8x128xf32>
      %113 = arith.addf %74, %112 : vector<8x128xf32>
      %c0_64 = arith.constant 0 : index
      %c256 = arith.constant 256 : index
      %114 = vector.load %arg11[%c0_64, %c256] : memref<128x1024xbf16, #tpu.memory_space<vmem>>, vector<128x128xbf16>
      %cst_65 = arith.constant dense<0.000000e+00> : vector<8x128xf32>
      %115 = tpu.matmul %34, %114, %cst_65 {dimension_numbers = #tpu.dot_dimension_numbers<[1], [0], [0], [1], [0, 0, 1, 1], [], []>} : vector<8x128xbf16>, vector<128x128xbf16>, vector<8x128xf32> -> vector<8x128xf32>
      %c0_66 = arith.constant 0 : index
      %c256_67 = arith.constant 256 : index
      %116 = vector.load %arg12[%c0_66, %c256_67] : memref<1x1024xf32, #tpu.memory_space<vmem>>, vector<1x128xf32>
      %117 = vector.broadcast %116 : vector<1x128xf32> to vector<8x128xf32>
      %118 = arith.addf %115, %117 : vector<8x128xf32>
      %cst_68 = arith.constant 0.000000e+00 : f32
      %119 = vector.broadcast %cst_68 : f32 to vector<8x128xf32>
      %120 = arith.maximumf %118, %119 : vector<8x128xf32>
      %121 = tpu.iota {dimensions = array<i32: 1>} : vector<8x128xi32>
      %c1_i32_69 = arith.constant 1 : i32
      %122 = vector.broadcast %c1_i32_69 : i32 to vector<8x128xi32>
      %123 = arith.cmpi sge, %121, %122 : vector<8x128xi32>
      %c1_i32_70 = arith.constant 1 : i32
      %124 = tpu.dynamic_rotate %120 by %c1_i32_70 dim 1 : vector<8x128xf32>, i32 -> vector<8x128xf32>
      %cst_71 = arith.constant 0.000000e+00 : f32
      %125 = vector.broadcast %cst_71 : f32 to vector<8x128xf32>
      %126 = arith.select %123, %124, %125 : vector<8x128xi1>, vector<8x128xf32>
      %c127_i32_72 = arith.constant 127 : i32
      %127 = vector.broadcast %c127_i32_72 : i32 to vector<8x128xi32>
      %128 = arith.cmpi slt, %121, %127 : vector<8x128xi32>
      %c127_i32_73 = arith.constant 127 : i32
      %129 = tpu.dynamic_rotate %120 by %c127_i32_73 dim 1 : vector<8x128xf32>, i32 -> vector<8x128xf32>
      %cst_74 = arith.constant 0.000000e+00 : f32
      %130 = vector.broadcast %cst_74 : f32 to vector<8x128xf32>
      %131 = arith.select %128, %129, %130 : vector<8x128xi1>, vector<8x128xf32>
      %c126_i32_75 = arith.constant 126 : i32
      %132 = vector.broadcast %c126_i32_75 : i32 to vector<8x128xi32>
      %133 = arith.cmpi slt, %121, %132 : vector<8x128xi32>
      %c126_i32_76 = arith.constant 126 : i32
      %134 = tpu.dynamic_rotate %120 by %c126_i32_76 dim 1 : vector<8x128xf32>, i32 -> vector<8x128xf32>
      %cst_77 = arith.constant 0.000000e+00 : f32
      %135 = vector.broadcast %cst_77 : f32 to vector<8x128xf32>
      %136 = arith.select %133, %134, %135 : vector<8x128xi1>, vector<8x128xf32>
      %c2_78 = arith.constant 2 : index
      %c0_79 = arith.constant 0 : index
      %137 = memref.load %arg5[%c2_78, %c0_79] : memref<8x4xf32, #tpu.memory_space<smem>>
      %138 = vector.broadcast %137 : f32 to vector<8x128xf32>
      %139 = arith.mulf %126, %138 : vector<8x128xf32>
      %c2_80 = arith.constant 2 : index
      %c1_81 = arith.constant 1 : index
      %140 = memref.load %arg5[%c2_80, %c1_81] : memref<8x4xf32, #tpu.memory_space<smem>>
      %141 = vector.broadcast %140 : f32 to vector<8x128xf32>
      %142 = arith.mulf %120, %141 : vector<8x128xf32>
      %143 = arith.addf %139, %142 : vector<8x128xf32>
      %c2_82 = arith.constant 2 : index
      %c2_83 = arith.constant 2 : index
      %144 = memref.load %arg5[%c2_82, %c2_83] : memref<8x4xf32, #tpu.memory_space<smem>>
      %145 = vector.broadcast %144 : f32 to vector<8x128xf32>
      %146 = arith.mulf %131, %145 : vector<8x128xf32>
      %147 = arith.addf %143, %146 : vector<8x128xf32>
      %c2_84 = arith.constant 2 : index
      %c3_85 = arith.constant 3 : index
      %148 = memref.load %arg5[%c2_84, %c3_85] : memref<8x4xf32, #tpu.memory_space<smem>>
      %149 = vector.broadcast %148 : f32 to vector<8x128xf32>
      %150 = arith.mulf %136, %149 : vector<8x128xf32>
      %151 = arith.addf %147, %150 : vector<8x128xf32>
      %152 = arith.addf %113, %151 : vector<8x128xf32>
      %c0_86 = arith.constant 0 : index
      %c384 = arith.constant 384 : index
      %153 = vector.load %arg11[%c0_86, %c384] : memref<128x1024xbf16, #tpu.memory_space<vmem>>, vector<128x128xbf16>
      %cst_87 = arith.constant dense<0.000000e+00> : vector<8x128xf32>
      %154 = tpu.matmul %34, %153, %cst_87 {dimension_numbers = #tpu.dot_dimension_numbers<[1], [0], [0], [1], [0, 0, 1, 1], [], []>} : vector<8x128xbf16>, vector<128x128xbf16>, vector<8x128xf32> -> vector<8x128xf32>
      %c0_88 = arith.constant 0 : index
      %c384_89 = arith.constant 384 : index
      %155 = vector.load %arg12[%c0_88, %c384_89] : memref<1x1024xf32, #tpu.memory_space<vmem>>, vector<1x128xf32>
      %156 = vector.broadcast %155 : vector<1x128xf32> to vector<8x128xf32>
      %157 = arith.addf %154, %156 : vector<8x128xf32>
      %cst_90 = arith.constant 0.000000e+00 : f32
      %158 = vector.broadcast %cst_90 : f32 to vector<8x128xf32>
      %159 = arith.maximumf %157, %158 : vector<8x128xf32>
      %160 = tpu.iota {dimensions = array<i32: 1>} : vector<8x128xi32>
      %c1_i32_91 = arith.constant 1 : i32
      %161 = vector.broadcast %c1_i32_91 : i32 to vector<8x128xi32>
      %162 = arith.cmpi sge, %160, %161 : vector<8x128xi32>
      %c1_i32_92 = arith.constant 1 : i32
      %163 = tpu.dynamic_rotate %159 by %c1_i32_92 dim 1 : vector<8x128xf32>, i32 -> vector<8x128xf32>
      %cst_93 = arith.constant 0.000000e+00 : f32
      %164 = vector.broadcast %cst_93 : f32 to vector<8x128xf32>
      %165 = arith.select %162, %163, %164 : vector<8x128xi1>, vector<8x128xf32>
      %c127_i32_94 = arith.constant 127 : i32
      %166 = vector.broadcast %c127_i32_94 : i32 to vector<8x128xi32>
      %167 = arith.cmpi slt, %160, %166 : vector<8x128xi32>
      %c127_i32_95 = arith.constant 127 : i32
      %168 = tpu.dynamic_rotate %159 by %c127_i32_95 dim 1 : vector<8x128xf32>, i32 -> vector<8x128xf32>
      %cst_96 = arith.constant 0.000000e+00 : f32
      %169 = vector.broadcast %cst_96 : f32 to vector<8x128xf32>
      %170 = arith.select %167, %168, %169 : vector<8x128xi1>, vector<8x128xf32>
      %c126_i32_97 = arith.constant 126 : i32
      %171 = vector.broadcast %c126_i32_97 : i32 to vector<8x128xi32>
      %172 = arith.cmpi slt, %160, %171 : vector<8x128xi32>
      %c126_i32_98 = arith.constant 126 : i32
      %173 = tpu.dynamic_rotate %159 by %c126_i32_98 dim 1 : vector<8x128xf32>, i32 -> vector<8x128xf32>
      %cst_99 = arith.constant 0.000000e+00 : f32
      %174 = vector.broadcast %cst_99 : f32 to vector<8x128xf32>
      %175 = arith.select %172, %173, %174 : vector<8x128xi1>, vector<8x128xf32>
      %c3_100 = arith.constant 3 : index
      %c0_101 = arith.constant 0 : index
      %176 = memref.load %arg5[%c3_100, %c0_101] : memref<8x4xf32, #tpu.memory_space<smem>>
      %177 = vector.broadcast %176 : f32 to vector<8x128xf32>
      %178 = arith.mulf %165, %177 : vector<8x128xf32>
      %c3_102 = arith.constant 3 : index
      %c1_103 = arith.constant 1 : index
      %179 = memref.load %arg5[%c3_102, %c1_103] : memref<8x4xf32, #tpu.memory_space<smem>>
      %180 = vector.broadcast %179 : f32 to vector<8x128xf32>
      %181 = arith.mulf %159, %180 : vector<8x128xf32>
      %182 = arith.addf %178, %181 : vector<8x128xf32>
      %c3_104 = arith.constant 3 : index
      %c2_105 = arith.constant 2 : index
      %183 = memref.load %arg5[%c3_104, %c2_105] : memref<8x4xf32, #tpu.memory_space<smem>>
      %184 = vector.broadcast %183 : f32 to vector<8x128xf32>
      %185 = arith.mulf %170, %184 : vector<8x128xf32>
      %186 = arith.addf %182, %185 : vector<8x128xf32>
      %c3_106 = arith.constant 3 : index
      %c3_107 = arith.constant 3 : index
      %187 = memref.load %arg5[%c3_106, %c3_107] : memref<8x4xf32, #tpu.memory_space<smem>>
      %188 = vector.broadcast %187 : f32 to vector<8x128xf32>
      %189 = arith.mulf %175, %188 : vector<8x128xf32>
      %190 = arith.addf %186, %189 : vector<8x128xf32>
      %191 = arith.addf %152, %190 : vector<8x128xf32>
      %c0_108 = arith.constant 0 : index
      %c512 = arith.constant 512 : index
      %192 = vector.load %arg11[%c0_108, %c512] : memref<128x1024xbf16, #tpu.memory_space<vmem>>, vector<128x128xbf16>
      %cst_109 = arith.constant dense<0.000000e+00> : vector<8x128xf32>
      %193 = tpu.matmul %34, %192, %cst_109 {dimension_numbers = #tpu.dot_dimension_numbers<[1], [0], [0], [1], [0, 0, 1, 1], [], []>} : vector<8x128xbf16>, vector<128x128xbf16>, vector<8x128xf32> -> vector<8x128xf32>
      %c0_110 = arith.constant 0 : index
      %c512_111 = arith.constant 512 : index
      %194 = vector.load %arg12[%c0_110, %c512_111] : memref<1x1024xf32, #tpu.memory_space<vmem>>, vector<1x128xf32>
      %195 = vector.broadcast %194 : vector<1x128xf32> to vector<8x128xf32>
      %196 = arith.addf %193, %195 : vector<8x128xf32>
      %cst_112 = arith.constant 0.000000e+00 : f32
      %197 = vector.broadcast %cst_112 : f32 to vector<8x128xf32>
      %198 = arith.maximumf %196, %197 : vector<8x128xf32>
      %199 = tpu.iota {dimensions = array<i32: 1>} : vector<8x128xi32>
      %c1_i32_113 = arith.constant 1 : i32
      %200 = vector.broadcast %c1_i32_113 : i32 to vector<8x128xi32>
      %201 = arith.cmpi sge, %199, %200 : vector<8x128xi32>
      %c1_i32_114 = arith.constant 1 : i32
      %202 = tpu.dynamic_rotate %198 by %c1_i32_114 dim 1 : vector<8x128xf32>, i32 -> vector<8x128xf32>
      %cst_115 = arith.constant 0.000000e+00 : f32
      %203 = vector.broadcast %cst_115 : f32 to vector<8x128xf32>
      %204 = arith.select %201, %202, %203 : vector<8x128xi1>, vector<8x128xf32>
      %c127_i32_116 = arith.constant 127 : i32
      %205 = vector.broadcast %c127_i32_116 : i32 to vector<8x128xi32>
      %206 = arith.cmpi slt, %199, %205 : vector<8x128xi32>
      %c127_i32_117 = arith.constant 127 : i32
      %207 = tpu.dynamic_rotate %198 by %c127_i32_117 dim 1 : vector<8x128xf32>, i32 -> vector<8x128xf32>
      %cst_118 = arith.constant 0.000000e+00 : f32
      %208 = vector.broadcast %cst_118 : f32 to vector<8x128xf32>
      %209 = arith.select %206, %207, %208 : vector<8x128xi1>, vector<8x128xf32>
      %c126_i32_119 = arith.constant 126 : i32
      %210 = vector.broadcast %c126_i32_119 : i32 to vector<8x128xi32>
      %211 = arith.cmpi slt, %199, %210 : vector<8x128xi32>
      %c126_i32_120 = arith.constant 126 : i32
      %212 = tpu.dynamic_rotate %198 by %c126_i32_120 dim 1 : vector<8x128xf32>, i32 -> vector<8x128xf32>
      %cst_121 = arith.constant 0.000000e+00 : f32
      %213 = vector.broadcast %cst_121 : f32 to vector<8x128xf32>
      %214 = arith.select %211, %212, %213 : vector<8x128xi1>, vector<8x128xf32>
      %c4 = arith.constant 4 : index
      %c0_122 = arith.constant 0 : index
      %215 = memref.load %arg5[%c4, %c0_122] : memref<8x4xf32, #tpu.memory_space<smem>>
      %216 = vector.broadcast %215 : f32 to vector<8x128xf32>
      %217 = arith.mulf %204, %216 : vector<8x128xf32>
      %c4_123 = arith.constant 4 : index
      %c1_124 = arith.constant 1 : index
      %218 = memref.load %arg5[%c4_123, %c1_124] : memref<8x4xf32, #tpu.memory_space<smem>>
      %219 = vector.broadcast %218 : f32 to vector<8x128xf32>
      %220 = arith.mulf %198, %219 : vector<8x128xf32>
      %221 = arith.addf %217, %220 : vector<8x128xf32>
      %c4_125 = arith.constant 4 : index
      %c2_126 = arith.constant 2 : index
      %222 = memref.load %arg5[%c4_125, %c2_126] : memref<8x4xf32, #tpu.memory_space<smem>>
      %223 = vector.broadcast %222 : f32 to vector<8x128xf32>
      %224 = arith.mulf %209, %223 : vector<8x128xf32>
      %225 = arith.addf %221, %224 : vector<8x128xf32>
      %c4_127 = arith.constant 4 : index
      %c3_128 = arith.constant 3 : index
      %226 = memref.load %arg5[%c4_127, %c3_128] : memref<8x4xf32, #tpu.memory_space<smem>>
      %227 = vector.broadcast %226 : f32 to vector<8x128xf32>
      %228 = arith.mulf %214, %227 : vector<8x128xf32>
      %229 = arith.addf %225, %228 : vector<8x128xf32>
      %230 = arith.addf %191, %229 : vector<8x128xf32>
      %c0_129 = arith.constant 0 : index
      %c640 = arith.constant 640 : index
      %231 = vector.load %arg11[%c0_129, %c640] : memref<128x1024xbf16, #tpu.memory_space<vmem>>, vector<128x128xbf16>
      %cst_130 = arith.constant dense<0.000000e+00> : vector<8x128xf32>
      %232 = tpu.matmul %34, %231, %cst_130 {dimension_numbers = #tpu.dot_dimension_numbers<[1], [0], [0], [1], [0, 0, 1, 1], [], []>} : vector<8x128xbf16>, vector<128x128xbf16>, vector<8x128xf32> -> vector<8x128xf32>
      %c0_131 = arith.constant 0 : index
      %c640_132 = arith.constant 640 : index
      %233 = vector.load %arg12[%c0_131, %c640_132] : memref<1x1024xf32, #tpu.memory_space<vmem>>, vector<1x128xf32>
      %234 = vector.broadcast %233 : vector<1x128xf32> to vector<8x128xf32>
      %235 = arith.addf %232, %234 : vector<8x128xf32>
      %cst_133 = arith.constant 0.000000e+00 : f32
      %236 = vector.broadcast %cst_133 : f32 to vector<8x128xf32>
      %237 = arith.maximumf %235, %236 : vector<8x128xf32>
      %238 = tpu.iota {dimensions = array<i32: 1>} : vector<8x128xi32>
      %c1_i32_134 = arith.constant 1 : i32
      %239 = vector.broadcast %c1_i32_134 : i32 to vector<8x128xi32>
      %240 = arith.cmpi sge, %238, %239 : vector<8x128xi32>
      %c1_i32_135 = arith.constant 1 : i32
      %241 = tpu.dynamic_rotate %237 by %c1_i32_135 dim 1 : vector<8x128xf32>, i32 -> vector<8x128xf32>
      %cst_136 = arith.constant 0.000000e+00 : f32
      %242 = vector.broadcast %cst_136 : f32 to vector<8x128xf32>
      %243 = arith.select %240, %241, %242 : vector<8x128xi1>, vector<8x128xf32>
      %c127_i32_137 = arith.constant 127 : i32
      %244 = vector.broadcast %c127_i32_137 : i32 to vector<8x128xi32>
      %245 = arith.cmpi slt, %238, %244 : vector<8x128xi32>
      %c127_i32_138 = arith.constant 127 : i32
      %246 = tpu.dynamic_rotate %237 by %c127_i32_138 dim 1 : vector<8x128xf32>, i32 -> vector<8x128xf32>
      %cst_139 = arith.constant 0.000000e+00 : f32
      %247 = vector.broadcast %cst_139 : f32 to vector<8x128xf32>
      %248 = arith.select %245, %246, %247 : vector<8x128xi1>, vector<8x128xf32>
      %c126_i32_140 = arith.constant 126 : i32
      %249 = vector.broadcast %c126_i32_140 : i32 to vector<8x128xi32>
      %250 = arith.cmpi slt, %238, %249 : vector<8x128xi32>
      %c126_i32_141 = arith.constant 126 : i32
      %251 = tpu.dynamic_rotate %237 by %c126_i32_141 dim 1 : vector<8x128xf32>, i32 -> vector<8x128xf32>
      %cst_142 = arith.constant 0.000000e+00 : f32
      %252 = vector.broadcast %cst_142 : f32 to vector<8x128xf32>
      %253 = arith.select %250, %251, %252 : vector<8x128xi1>, vector<8x128xf32>
      %c5 = arith.constant 5 : index
      %c0_143 = arith.constant 0 : index
      %254 = memref.load %arg5[%c5, %c0_143] : memref<8x4xf32, #tpu.memory_space<smem>>
      %255 = vector.broadcast %254 : f32 to vector<8x128xf32>
      %256 = arith.mulf %243, %255 : vector<8x128xf32>
      %c5_144 = arith.constant 5 : index
      %c1_145 = arith.constant 1 : index
      %257 = memref.load %arg5[%c5_144, %c1_145] : memref<8x4xf32, #tpu.memory_space<smem>>
      %258 = vector.broadcast %257 : f32 to vector<8x128xf32>
      %259 = arith.mulf %237, %258 : vector<8x128xf32>
      %260 = arith.addf %256, %259 : vector<8x128xf32>
      %c5_146 = arith.constant 5 : index
      %c2_147 = arith.constant 2 : index
      %261 = memref.load %arg5[%c5_146, %c2_147] : memref<8x4xf32, #tpu.memory_space<smem>>
      %262 = vector.broadcast %261 : f32 to vector<8x128xf32>
      %263 = arith.mulf %248, %262 : vector<8x128xf32>
      %264 = arith.addf %260, %263 : vector<8x128xf32>
      %c5_148 = arith.constant 5 : index
      %c3_149 = arith.constant 3 : index
      %265 = memref.load %arg5[%c5_148, %c3_149] : memref<8x4xf32, #tpu.memory_space<smem>>
      %266 = vector.broadcast %265 : f32 to vector<8x128xf32>
      %267 = arith.mulf %253, %266 : vector<8x128xf32>
      %268 = arith.addf %264, %267 : vector<8x128xf32>
      %269 = arith.addf %230, %268 : vector<8x128xf32>
      %c0_150 = arith.constant 0 : index
      %c768 = arith.constant 768 : index
      %270 = vector.load %arg11[%c0_150, %c768] : memref<128x1024xbf16, #tpu.memory_space<vmem>>, vector<128x128xbf16>
      %cst_151 = arith.constant dense<0.000000e+00> : vector<8x128xf32>
      %271 = tpu.matmul %34, %270, %cst_151 {dimension_numbers = #tpu.dot_dimension_numbers<[1], [0], [0], [1], [0, 0, 1, 1], [], []>} : vector<8x128xbf16>, vector<128x128xbf16>, vector<8x128xf32> -> vector<8x128xf32>
      %c0_152 = arith.constant 0 : index
      %c768_153 = arith.constant 768 : index
      %272 = vector.load %arg12[%c0_152, %c768_153] : memref<1x1024xf32, #tpu.memory_space<vmem>>, vector<1x128xf32>
      %273 = vector.broadcast %272 : vector<1x128xf32> to vector<8x128xf32>
      %274 = arith.addf %271, %273 : vector<8x128xf32>
      %cst_154 = arith.constant 0.000000e+00 : f32
      %275 = vector.broadcast %cst_154 : f32 to vector<8x128xf32>
      %276 = arith.maximumf %274, %275 : vector<8x128xf32>
      %277 = tpu.iota {dimensions = array<i32: 1>} : vector<8x128xi32>
      %c1_i32_155 = arith.constant 1 : i32
      %278 = vector.broadcast %c1_i32_155 : i32 to vector<8x128xi32>
      %279 = arith.cmpi sge, %277, %278 : vector<8x128xi32>
      %c1_i32_156 = arith.constant 1 : i32
      %280 = tpu.dynamic_rotate %276 by %c1_i32_156 dim 1 : vector<8x128xf32>, i32 -> vector<8x128xf32>
      %cst_157 = arith.constant 0.000000e+00 : f32
      %281 = vector.broadcast %cst_157 : f32 to vector<8x128xf32>
      %282 = arith.select %279, %280, %281 : vector<8x128xi1>, vector<8x128xf32>
      %c127_i32_158 = arith.constant 127 : i32
      %283 = vector.broadcast %c127_i32_158 : i32 to vector<8x128xi32>
      %284 = arith.cmpi slt, %277, %283 : vector<8x128xi32>
      %c127_i32_159 = arith.constant 127 : i32
      %285 = tpu.dynamic_rotate %276 by %c127_i32_159 dim 1 : vector<8x128xf32>, i32 -> vector<8x128xf32>
      %cst_160 = arith.constant 0.000000e+00 : f32
      %286 = vector.broadcast %cst_160 : f32 to vector<8x128xf32>
      %287 = arith.select %284, %285, %286 : vector<8x128xi1>, vector<8x128xf32>
      %c126_i32_161 = arith.constant 126 : i32
      %288 = vector.broadcast %c126_i32_161 : i32 to vector<8x128xi32>
      %289 = arith.cmpi slt, %277, %288 : vector<8x128xi32>
      %c126_i32_162 = arith.constant 126 : i32
      %290 = tpu.dynamic_rotate %276 by %c126_i32_162 dim 1 : vector<8x128xf32>, i32 -> vector<8x128xf32>
      %cst_163 = arith.constant 0.000000e+00 : f32
      %291 = vector.broadcast %cst_163 : f32 to vector<8x128xf32>
      %292 = arith.select %289, %290, %291 : vector<8x128xi1>, vector<8x128xf32>
      %c6 = arith.constant 6 : index
      %c0_164 = arith.constant 0 : index
      %293 = memref.load %arg5[%c6, %c0_164] : memref<8x4xf32, #tpu.memory_space<smem>>
      %294 = vector.broadcast %293 : f32 to vector<8x128xf32>
      %295 = arith.mulf %282, %294 : vector<8x128xf32>
      %c6_165 = arith.constant 6 : index
      %c1_166 = arith.constant 1 : index
      %296 = memref.load %arg5[%c6_165, %c1_166] : memref<8x4xf32, #tpu.memory_space<smem>>
      %297 = vector.broadcast %296 : f32 to vector<8x128xf32>
      %298 = arith.mulf %276, %297 : vector<8x128xf32>
      %299 = arith.addf %295, %298 : vector<8x128xf32>
      %c6_167 = arith.constant 6 : index
      %c2_168 = arith.constant 2 : index
      %300 = memref.load %arg5[%c6_167, %c2_168] : memref<8x4xf32, #tpu.memory_space<smem>>
      %301 = vector.broadcast %300 : f32 to vector<8x128xf32>
      %302 = arith.mulf %287, %301 : vector<8x128xf32>
      %303 = arith.addf %299, %302 : vector<8x128xf32>
      %c6_169 = arith.constant 6 : index
      %c3_170 = arith.constant 3 : index
      %304 = memref.load %arg5[%c6_169, %c3_170] : memref<8x4xf32, #tpu.memory_space<smem>>
      %305 = vector.broadcast %304 : f32 to vector<8x128xf32>
      %306 = arith.mulf %292, %305 : vector<8x128xf32>
      %307 = arith.addf %303, %306 : vector<8x128xf32>
      %308 = arith.addf %269, %307 : vector<8x128xf32>
      %c0_171 = arith.constant 0 : index
      %c896 = arith.constant 896 : index
      %309 = vector.load %arg11[%c0_171, %c896] : memref<128x1024xbf16, #tpu.memory_space<vmem>>, vector<128x128xbf16>
      %cst_172 = arith.constant dense<0.000000e+00> : vector<8x128xf32>
      %310 = tpu.matmul %34, %309, %cst_172 {dimension_numbers = #tpu.dot_dimension_numbers<[1], [0], [0], [1], [0, 0, 1, 1], [], []>} : vector<8x128xbf16>, vector<128x128xbf16>, vector<8x128xf32> -> vector<8x128xf32>
      %c0_173 = arith.constant 0 : index
      %c896_174 = arith.constant 896 : index
      %311 = vector.load %arg12[%c0_173, %c896_174] : memref<1x1024xf32, #tpu.memory_space<vmem>>, vector<1x128xf32>
      %312 = vector.broadcast %311 : vector<1x128xf32> to vector<8x128xf32>
      %313 = arith.addf %310, %312 : vector<8x128xf32>
      %cst_175 = arith.constant 0.000000e+00 : f32
      %314 = vector.broadcast %cst_175 : f32 to vector<8x128xf32>
      %315 = arith.maximumf %313, %314 : vector<8x128xf32>
      %316 = tpu.iota {dimensions = array<i32: 1>} : vector<8x128xi32>
      %c1_i32_176 = arith.constant 1 : i32
      %317 = vector.broadcast %c1_i32_176 : i32 to vector<8x128xi32>
      %318 = arith.cmpi sge, %316, %317 : vector<8x128xi32>
      %c1_i32_177 = arith.constant 1 : i32
      %319 = tpu.dynamic_rotate %315 by %c1_i32_177 dim 1 : vector<8x128xf32>, i32 -> vector<8x128xf32>
      %cst_178 = arith.constant 0.000000e+00 : f32
      %320 = vector.broadcast %cst_178 : f32 to vector<8x128xf32>
      %321 = arith.select %318, %319, %320 : vector<8x128xi1>, vector<8x128xf32>
      %c127_i32_179 = arith.constant 127 : i32
      %322 = vector.broadcast %c127_i32_179 : i32 to vector<8x128xi32>
      %323 = arith.cmpi slt, %316, %322 : vector<8x128xi32>
      %c127_i32_180 = arith.constant 127 : i32
      %324 = tpu.dynamic_rotate %315 by %c127_i32_180 dim 1 : vector<8x128xf32>, i32 -> vector<8x128xf32>
      %cst_181 = arith.constant 0.000000e+00 : f32
      %325 = vector.broadcast %cst_181 : f32 to vector<8x128xf32>
      %326 = arith.select %323, %324, %325 : vector<8x128xi1>, vector<8x128xf32>
      %c126_i32_182 = arith.constant 126 : i32
      %327 = vector.broadcast %c126_i32_182 : i32 to vector<8x128xi32>
      %328 = arith.cmpi slt, %316, %327 : vector<8x128xi32>
      %c126_i32_183 = arith.constant 126 : i32
      %329 = tpu.dynamic_rotate %315 by %c126_i32_183 dim 1 : vector<8x128xf32>, i32 -> vector<8x128xf32>
      %cst_184 = arith.constant 0.000000e+00 : f32
      %330 = vector.broadcast %cst_184 : f32 to vector<8x128xf32>
      %331 = arith.select %328, %329, %330 : vector<8x128xi1>, vector<8x128xf32>
      %c7 = arith.constant 7 : index
      %c0_185 = arith.constant 0 : index
      %332 = memref.load %arg5[%c7, %c0_185] : memref<8x4xf32, #tpu.memory_space<smem>>
      %333 = vector.broadcast %332 : f32 to vector<8x128xf32>
      %334 = arith.mulf %321, %333 : vector<8x128xf32>
      %c7_186 = arith.constant 7 : index
      %c1_187 = arith.constant 1 : index
      %335 = memref.load %arg5[%c7_186, %c1_187] : memref<8x4xf32, #tpu.memory_space<smem>>
      %336 = vector.broadcast %335 : f32 to vector<8x128xf32>
      %337 = arith.mulf %315, %336 : vector<8x128xf32>
      %338 = arith.addf %334, %337 : vector<8x128xf32>
      %c7_188 = arith.constant 7 : index
      %c2_189 = arith.constant 2 : index
      %339 = memref.load %arg5[%c7_188, %c2_189] : memref<8x4xf32, #tpu.memory_space<smem>>
      %340 = vector.broadcast %339 : f32 to vector<8x128xf32>
      %341 = arith.mulf %326, %340 : vector<8x128xf32>
      %342 = arith.addf %338, %341 : vector<8x128xf32>
      %c7_190 = arith.constant 7 : index
      %c3_191 = arith.constant 3 : index
      %343 = memref.load %arg5[%c7_190, %c3_191] : memref<8x4xf32, #tpu.memory_space<smem>>
      %344 = vector.broadcast %343 : f32 to vector<8x128xf32>
      %345 = arith.mulf %331, %344 : vector<8x128xf32>
      %346 = arith.addf %342, %345 : vector<8x128xf32>
      %347 = arith.addf %308, %346 : vector<8x128xf32>
      %c0_192 = arith.constant 0 : index
      %348 = memref.load %arg6[%c0_192] : memref<1xf32, #tpu.memory_space<smem>>
      %349 = vector.broadcast %348 : f32 to vector<8x128xf32>
      %350 = arith.addf %347, %349 : vector<8x128xf32>
      %c0_193 = arith.constant 0 : index
      %c0_194 = arith.constant 0 : index
      %351 = vector.load %arg13[%c0_193, %c0_194] : memref<8x128xf32, #tpu.memory_space<vmem>>, vector<8x128xf32>
      tpu.vector_store %arg13[%c0_193, %c0_194], %350 {strides = array<i32>} : memref<8x128xf32, #tpu.memory_space<vmem>>, vector<8x128xf32>,
    } else {
    }
    return
  }
  func.func @transform_0(%arg0: i32, %arg1: i32) -> (i32, i32) {
    %c0_i32 = arith.constant 0 : i32
    %c0_i32_0 = arith.constant 0 : i32
    return %arg0, %c0_i32 : i32, i32
  }
  func.func @transform_1(%arg0: i32, %arg1: i32) -> (i32, i32) {
    %c0_i32 = arith.constant 0 : i32
    %c0_i32_0 = arith.constant 0 : i32
    %c0_i32_1 = arith.constant 0 : i32
    return %c0_i32, %c0_i32_0 : i32, i32
  }
  func.func @transform_2(%arg0: i32, %arg1: i32) -> i32 {
    %c0_i32 = arith.constant 0 : i32
    %c0_i32_0 = arith.constant 0 : i32
    return %c0_i32 : i32
  }
  func.func @transform_3(%arg0: i32, %arg1: i32) -> (i32, i32) {
    %c0_i32 = arith.constant 0 : i32
    %c0_i32_0 = arith.constant 0 : i32
    %c0_i32_1 = arith.constant 0 : i32
    return %c0_i32, %c0_i32_0 : i32, i32
  }
  func.func @transform_4(%arg0: i32, %arg1: i32) -> i32 {
    %c0_i32 = arith.constant 0 : i32
    %c0_i32_0 = arith.constant 0 : i32
    return %c0_i32 : i32
  }
  func.func @transform_5(%arg0: i32, %arg1: i32) -> (i32, i32) {
    %c0_i32 = arith.constant 0 : i32
    %c0_i32_0 = arith.constant 0 : i32
    return %arg1, %c0_i32 : i32, i32
  }
  func.func @transform_6(%arg0: i32, %arg1: i32) -> (i32, i32) {
    %c0_i32 = arith.constant 0 : i32
    %c0_i32_0 = arith.constant 0 : i32
    %c0_i32_1 = arith.constant 0 : i32
    return %c0_i32, %c0_i32_0 : i32, i32
  }
  func.func @transform_7(%arg0: i32, %arg1: i32) -> (i32, i32) {
    %c0_i32 = arith.constant 0 : i32
    %c0_i32_0 = arith.constant 0 : i32
    %c0_i32_1 = arith.constant 0 : i32
    return %c0_i32, %c0_i32_0 : i32, i32
  }
  func.func @transform_8(%arg0: i32, %arg1: i32) -> (i32, i32) {
    %c0_i32 = arith.constant 0 : i32
    %c0_i32_0 = arith.constant 0 : i32
    %c0_i32_1 = arith.constant 0 : i32
    return %c0_i32, %c0_i32_0 : i32, i32
  }
  func.func @transform_9(%arg0: i32, %arg1: i32) -> (i32, i32) {
    %c0_i32 = arith.constant 0 : i32
    %c0_i32_0 = arith.constant 0 : i32
    %c0_i32_1 = arith.constant 0 : i32
    return %c0_i32, %c0_i32_0 : i32, i32
  }
  func.func @transform_10(%arg0: i32, %arg1: i32) -> (i32, i32) {
    %c0_i32 = arith.constant 0 : i32
    %c0_i32_0 = arith.constant 0 : i32
    %c0_i32_1 = arith.constant 0 : i32
    return %c0_i32, %c0_i32_0 : i32, i32
  }
  func.func @transform_11(%arg0: i32, %arg1: i32) -> (i32, i32) {
    %c0_i32 = arith.constant 0 : i32
    %c0_i32_0 = arith.constant 0 : i32
    return %arg0, %c0_i32 : i32, i32
  }
}

</mosaic_0001>

<llo_original>
// kernel: tpu_custom_call.1
$region0: #{tpu_custom_call.1}
  #allocation0 [shape = 'u32[]', space=smem, size = 0x4, offset = 0x4, fixed_abs, tag = 'smem constant byte address 0x4 - core index']
  #allocation1 [shape = 'u32[144,128]{1,0:T(1,128)}', space=vmem, size = 0x12000, scoped, tag = 'internal scratch']
  #allocation2 [shape = 'bf16[8,1024]{1,0:T(8,128)(2,1)}', space=vmem, size = 0x4000, scoped, tag = 'scratch operand']
  #allocation3 [shape = 'f32[8,1024]{1,0:T(8,128)}', space=vmem, size = 0x8000, scoped, tag = 'scratch operand']
  #allocation4 [shape = 'f32[1]{0:T(128)S(6)}', space=smem, size = 0x200, scoped, tag = 'scoped memory for tpu_custom_call.1']
  %s0 = inlined_call_operand.hbm [shape: f32[16,128], index: 0, kind: input, shape index: {}]
  %s1 = inlined_call_operand.vmem [shape: f32[8,4], index: 1, kind: input, shape index: {}]
  %s2 = inlined_call_operand.hbm [shape: f32[8], index: 2, kind: input, shape index: {}]
  %s3 = inlined_call_operand.vmem [shape: f32[8,4], index: 3, kind: input, shape index: {}]
  %s4 = inlined_call_operand.<no memory space> [shape: f32[1], index: 4, kind: input, shape index: {}]
  %s5 = inlined_call_operand.hbm [shape: bf16[1024,1024], index: 5, kind: input, shape index: {}]
  %s6 = inlined_call_operand.hbm [shape: f32[1,1024], index: 6, kind: input, shape index: {}]
  %s7 = inlined_call_operand.hbm [shape: bf16[1024,128], index: 7, kind: input, shape index: {}]
  %s8 = inlined_call_operand.hbm [shape: f32[1,128], index: 8, kind: input, shape index: {}]
  %s9 = inlined_call_operand.hbm [shape: bf16[128,1024], index: 9, kind: input, shape index: {}]
  %s10 = inlined_call_operand.hbm [shape: f32[1,1024], index: 10, kind: input, shape index: {}]
  %s11 = inlined_call_operand.hbm [shape: f32[16,128], index: 11, kind: output, shape index: {}]
  %s12 = sld [smem:[#allocation0]]
  $region133: #{tpu_custom_call.1} parent=0
    _
  %s14 = ssub.s32 1, %s12
  %s15 = scalar_select 0, %s14, %s12
  %16 = sst [smem:[#allocation4]] %s4
  $region1: #{tpu_custom_call.1} parent=0
    #allocation5 [shape = 'u8[8192]{0}', space=vmem, size = 0x2000, scoped, tag = 'input window, operand 0']
    #allocation6 [shape = 's32[2]{0}', space=sflag, size = 0x8, scoped, tag = 'scoped memory for tpu_custom_call.1']
    #allocation7 [shape = 's32[2]{0}', space=sflag, size = 0x8, scoped, tag = 'scoped memory for tpu_custom_call.1']
    #allocation8 [shape = 's32[2]{0}', space=sflag, size = 0x8, scoped, tag = 'scoped memory for tpu_custom_call.1']
    #allocation9 [shape = 's32[2]{0}', space=sflag, size = 0x8, scoped, tag = 'scoped memory for tpu_custom_call.1']
    #allocation10 [shape = 'u8[4096]{0}', space=smem, size = 0x1000, scoped, tag = 'input window, operand 1, single buffered']
    #allocation11 [shape = 'u8[512]{0}', space=smem, size = 0x200, scoped, tag = 'input window, operand 2, single buffered']
    #allocation12 [shape = 'u8[4096]{0}', space=smem, size = 0x1000, scoped, tag = 'input window, operand 3, single buffered']
    #allocation13 [shape = 's32[1]{0}', space=sflag, size = 0x4, scoped, tag = 'scoped memory for tpu_custom_call.1']
    #allocation14 [shape = 'u8[2097152]{0}', space=vmem, size = 0x200000, scoped, tag = 'input window, operand 5']
    #allocation15 [shape = 's32[2]{0}', space=sflag, size = 0x8, scoped, tag = 'scoped memory for tpu_custom_call.1']
    #allocation16 [shape = 'u8[4096]{0}', space=vmem, size = 0x1000, scoped, tag = 'input window, operand 6, single buffered']
    #allocation17 [shape = 'u8[262144]{0}', space=vmem, size = 0x40000, scoped, tag = 'input window, operand 7, single buffered']
    #allocation18 [shape = 's32[1]{0}', space=sflag, size = 0x4, scoped, tag = 'scoped memory for tpu_custom_call.1']
    #allocation19 [shape = 'u8[512]{0}', space=vmem, size = 0x400, scoped, tag = 'input window, operand 8, single buffered']
    #allocation20 [shape = 'u8[262144]{0}', space=vmem, size = 0x40000, scoped, tag = 'input window, operand 9, single buffered']
    #allocation21 [shape = 's32[1]{0}', space=sflag, size = 0x4, scoped, tag = 'scoped memory for tpu_custom_call.1']
    #allocation22 [shape = 'u8[4096]{0}', space=vmem, size = 0x1000, scoped, tag = 'input window, operand 10, single buffered']
    #allocation23 [shape = 'u8[8192]{0}', space=vmem, size = 0x2000, scoped, tag = 'output window, operand 0']
    %17 = vsyncpa [#allocation6], 0
    %s18 = scalar_lea.sflag [#allocation6], 1
    %19 = vsyncpa %s18, 0
    %20 = vsyncpa [#allocation9], 0
    %21 = vsyncpa [#allocation8], 0
    %22 = vsyncpa [#allocation13], 0
    %23 = vsyncpa [#allocation15], 0
    %s24 = scalar_lea.sflag [#allocation15], 1
    %25 = vsyncpa %s24, 0
    %26 = vsyncpa [#allocation18], 0
    %27 = vsyncpa [#allocation21], 0
    %28 = vsyncpa [#allocation7], 0
    %s29 = scalar_lea.sflag [#allocation7], 1
    %30 = vsyncpa %s29, 0
    loop: start=0, step=1, limit=6
    $region2: #{tpu_custom_call.1} parent=1 // loop_pre_header
      _
    $region3: #{tpu_custom_call.1} parent=1 // loop_header
      %s32 = sphi 0, %s36
      %p33 = scmp.ge.s32.totalorder %s32, 6
      %s39 = sphi 0, %s51
      %s40 = sphi 0, %s47
      %s41 = sphi 0, %s39
      %s42 = sphi 0, %s40
      %s43 = sphi 0, %s41
      %s44 = sphi 0, %s42
      %s54 = sphi 0, %s56
      %s57 = sphi 0, %s54
      %s58 = sphi 0, %s57
      %s74 = sphi 0, %s58
      %s78 = sphi 0, %s78
      %s80 = sphi 0, %s78
      %s81 = sphi 0, %s80
      %s95 = sphi 0, %s81
      %s99 = sphi 0, %s99
      %s101 = sphi 0, %s99
      %s102 = sphi 0, %s101
      %s116 = sphi 0, %s102
      %s120 = sphi 0, %s120
      %s122 = sphi 0, %s120
      %s123 = sphi 0, %s122
      %s137 = sphi 0, %s123
      %s141 = sphi 0, %s141
      %s143 = sphi 0, %s141
      %s144 = sphi 0, %s143
      %s158 = sphi 0, %s144
      %s164 = sphi 0, %s166
      %s167 = sphi 0, %s164
      %s168 = sphi 0, %s167
      %s184 = sphi 0, %s168
      %s188 = sphi 0, %s188
      %s190 = sphi 0, %s188
      %s191 = sphi 0, %s190
      %s205 = sphi 0, %s191
      %s209 = sphi 0, %s209
      %s211 = sphi 0, %s209
      %s212 = sphi 0, %s211
      %s226 = sphi 0, %s212
      %s230 = sphi 0, %s230
      %s232 = sphi 0, %s230
      %s233 = sphi 0, %s232
      %s247 = sphi 0, %s233
      %s251 = sphi 0, %s251
      %s253 = sphi 0, %s251
      %s254 = sphi 0, %s253
      %s268 = sphi 0, %s254
      %s272 = sphi 0, %s272
      %s274 = sphi 0, %s272
      %s275 = sphi 0, %s274
      %s289 = sphi 0, %s275
      %s295 = sphi 0, %s297
      %s298 = sphi 0, %s295
      %s299 = sphi 0, %s298
      %s315 = sphi 0, %s299
    $region4: #{tpu_custom_call.1} parent=1 // loop_header_branch
      %35 = sbr.rel (%p33) target = $region8
    $region5: #{tpu_custom_call.1} parent=1 // loop_body
      %s37 = ssub.s32 %s32, 1
      %s38 = ssub.s32 %s32, 2
      %s45 = sadd.s32 1, %s40
      %p46 = scmp.ge.s32.totalorder %s45, 2
      %s47 = scalar_select %p46, 0, %s45
      %s48 = sadd.s32 1, %s39
      %s49 = scalar_select %p46, %s48, %s39
      %p50 = scmp.ge.s32.totalorder %s49, 2
      %s51 = scalar_select %p50, 0, %s49
      %s52 = ssub.s32 %s39, %s51
      %p53 = scmp.eq.s32.totalorder %s52, 0
      %s55 = sadd.s32 %s54, 1
      %s56 = scalar_select %p53, %s54, %s55
      %p59 = pneg %p53
      %p60 = scmp.eq.s32.totalorder %s32, 3
      %p61 = por %p59, %p60
      %p62 = scmp.ne.s32.totalorder %s54, %s57
      %p63 = scmp.eq.s32.totalorder %s32, 0
      %p64 = por %p62, %p63
      %p65 = scmp.ne.s32.totalorder %s54, %s57
      %p66 = scmp.eq.s32.totalorder %s37, 3
      %p67 = por %p65, %p66
      %p68 = scmp.ne.s32.totalorder %s57, %s58
      %p69 = scmp.eq.s32.totalorder %s37, 0
      %p70 = por %p68, %p69
      %p71 = scmp.ne.s32.totalorder %s57, %s58
      %p72 = scmp.eq.s32.totalorder %s38, 3
      %p73 = por %p71, %p72
      %p75 = scmp.ne.s32.totalorder %s58, %s74
      %p76 = scmp.eq.s32.totalorder %s38, 0
      %p77 = por %p75, %p76
      %s79 = sadd.s32 %s78, 1
      %p82 = scmp.eq.s32.totalorder %s32, 3
      %p83 = scmp.ne.s32.totalorder %s78, %s80
      %p84 = scmp.eq.s32.totalorder %s32, 0
      %p85 = por %p83, %p84
      %p86 = scmp.ne.s32.totalorder %s78, %s80
      %p87 = scmp.eq.s32.totalorder %s37, 3
      %p88 = por %p86, %p87
      %p89 = scmp.ne.s32.totalorder %s80, %s81
      %p90 = scmp.eq.s32.totalorder %s37, 0
      %p91 = por %p89, %p90
      %p92 = scmp.ne.s32.totalorder %s80, %s81
      %p93 = scmp.eq.s32.totalorder %s38, 3
      %p94 = por %p92, %p93
      %p96 = scmp.ne.s32.totalorder %s81, %s95
      %p97 = scmp.eq.s32.totalorder %s38, 0
      %p98 = por %p96, %p97
      %s100 = sadd.s32 %s99, 1
      %p103 = scmp.eq.s32.totalorder %s32, 3
      %p104 = scmp.ne.s32.totalorder %s99, %s101
      %p105 = scmp.eq.s32.totalorder %s32, 0
      %p106 = por %p104, %p105
      %p107 = scmp.ne.s32.totalorder %s99, %s101
      %p108 = scmp.eq.s32.totalorder %s37, 3
      %p109 = por %p107, %p108
      %p110 = scmp.ne.s32.totalorder %s101, %s102
      %p111 = scmp.eq.s32.totalorder %s37, 0
      %p112 = por %p110, %p111
      %p113 = scmp.ne.s32.totalorder %s101, %s102
      %p114 = scmp.eq.s32.totalorder %s38, 3
      %p115 = por %p113, %p114
      %p117 = scmp.ne.s32.totalorder %s102, %s116
      %p118 = scmp.eq.s32.totalorder %s38, 0
      %p119 = por %p117, %p118
      %s121 = sadd.s32 %s120, 1
      %p124 = scmp.eq.s32.totalorder %s32, 3
      %p125 = scmp.ne.s32.totalorder %s120, %s122
      %p126 = scmp.eq.s32.totalorder %s32, 0
      %p127 = por %p125, %p126
      %p128 = scmp.ne.s32.totalorder %s120, %s122
      %p129 = scmp.eq.s32.totalorder %s37, 3
      %p130 = por %p128, %p129
      %p131 = scmp.ne.s32.totalorder %s122, %s123
      %p132 = scmp.eq.s32.totalorder %s37, 0
      %p133 = por %p131, %p132
      %p134 = scmp.ne.s32.totalorder %s122, %s123
      %p135 = scmp.eq.s32.totalorder %s38, 3
      %p136 = por %p134, %p135
      %p138 = scmp.ne.s32.totalorder %s123, %s137
      %p139 = scmp.eq.s32.totalorder %s38, 0
      %p140 = por %p138, %p139
      %s142 = sadd.s32 %s141, 1
      %p145 = scmp.eq.s32.totalorder %s32, 3
      %p146 = scmp.ne.s32.totalorder %s141, %s143
      %p147 = scmp.eq.s32.totalorder %s32, 0
      %p148 = por %p146, %p147
      %p149 = scmp.ne.s32.totalorder %s141, %s143
      %p150 = scmp.eq.s32.totalorder %s37, 3
      %p151 = por %p149, %p150
      %p152 = scmp.ne.s32.totalorder %s143, %s144
      %p153 = scmp.eq.s32.totalorder %s37, 0
      %p154 = por %p152, %p153
      %p155 = scmp.ne.s32.totalorder %s143, %s144
      %p156 = scmp.eq.s32.totalorder %s38, 3
      %p157 = por %p155, %p156
      %p159 = scmp.ne.s32.totalorder %s144, %s158
      %p160 = scmp.eq.s32.totalorder %s38, 0
      %p161 = por %p159, %p160
      %s162 = ssub.s32 %s40, %s47
      %p163 = scmp.eq.s32.totalorder %s162, 0
      %s165 = sadd.s32 %s164, 1
      %s166 = scalar_select %p163, %s164, %s165
      %p169 = pneg %p163
      %p170 = scmp.eq.s32.totalorder %s32, 3
      %p171 = por %p169, %p170
      %p172 = scmp.ne.s32.totalorder %s164, %s167
      %p173 = scmp.eq.s32.totalorder %s32, 0
      %p174 = por %p172, %p173
      %p175 = scmp.ne.s32.totalorder %s164, %s167
      %p176 = scmp.eq.s32.totalorder %s37, 3
      %p177 = por %p175, %p176
      %p178 = scmp.ne.s32.totalorder %s167, %s168
      %p179 = scmp.eq.s32.totalorder %s37, 0
      %p180 = por %p178, %p179
      %p181 = scmp.ne.s32.totalorder %s167, %s168
      %p182 = scmp.eq.s32.totalorder %s38, 3
      %p183 = por %p181, %p182
      %p185 = scmp.ne.s32.totalorder %s168, %s184
      %p186 = scmp.eq.s32.totalorder %s38, 0
      %p187 = por %p185, %p186
      %s189 = sadd.s32 %s188, 1
      %p192 = scmp.eq.s32.totalorder %s32, 3
      %p193 = scmp.ne.s32.totalorder %s188, %s190
      %p194 = scmp.eq.s32.totalorder %s32, 0
      %p195 = por %p193, %p194
      %p196 = scmp.ne.s32.totalorder %s188, %s190
      %p197 = scmp.eq.s32.totalorder %s37, 3
      %p198 = por %p196, %p197
      %p199 = scmp.ne.s32.totalorder %s190, %s191
      %p200 = scmp.eq.s32.totalorder %s37, 0
      %p201 = por %p199, %p200
      %p202 = scmp.ne.s32.totalorder %s190, %s191
      %p203 = scmp.eq.s32.totalorder %s38, 3
      %p204 = por %p202, %p203
      %p206 = scmp.ne.s32.totalorder %s191, %s205
      %p207 = scmp.eq.s32.totalorder %s38, 0
      %p208 = por %p206, %p207
      %s210 = sadd.s32 %s209, 1
      %p213 = scmp.eq.s32.totalorder %s32, 3
      %p214 = scmp.ne.s32.totalorder %s209, %s211
      %p215 = scmp.eq.s32.totalorder %s32, 0
      %p216 = por %p214, %p215
      %p217 = scmp.ne.s32.totalorder %s209, %s211
      %p218 = scmp.eq.s32.totalorder %s37, 3
      %p219 = por %p217, %p218
      %p220 = scmp.ne.s32.totalorder %s211, %s212
      %p221 = scmp.eq.s32.totalorder %s37, 0
      %p222 = por %p220, %p221
      %p223 = scmp.ne.s32.totalorder %s211, %s212
      %p224 = scmp.eq.s32.totalorder %s38, 3
      %p225 = por %p223, %p224
      %p227 = scmp.ne.s32.totalorder %s212, %s226
      %p228 = scmp.eq.s32.totalorder %s38, 0
      %p229 = por %p227, %p228
      %s231 = sadd.s32 %s230, 1
      %p234 = scmp.eq.s32.totalorder %s32, 3
      %p235 = scmp.ne.s32.totalorder %s230, %s232
      %p236 = scmp.eq.s32.totalorder %s32, 0
      %p237 = por %p235, %p236
      %p238 = scmp.ne.s32.totalorder %s230, %s232
      %p239 = scmp.eq.s32.totalorder %s37, 3
      %p240 = por %p238, %p239
      %p241 = scmp.ne.s32.totalorder %s232, %s233
      %p242 = scmp.eq.s32.totalorder %s37, 0
      %p243 = por %p241, %p242
      %p244 = scmp.ne.s32.totalorder %s232, %s233
      %p245 = scmp.eq.s32.totalorder %s38, 3
      %p246 = por %p244, %p245
      %p248 = scmp.ne.s32.totalorder %s233, %s247
      %p249 = scmp.eq.s32.totalorder %s38, 0
      %p250 = por %p248, %p249
      %s252 = sadd.s32 %s251, 1
      %p255 = scmp.eq.s32.totalorder %s32, 3
      %p256 = scmp.ne.s32.totalorder %s251, %s253
      %p257 = scmp.eq.s32.totalorder %s32, 0
      %p258 = por %p256, %p257
      %p259 = scmp.ne.s32.totalorder %s251, %s253
      %p260 = scmp.eq.s32.totalorder %s37, 3
      %p261 = por %p259, %p260
      %p262 = scmp.ne.s32.totalorder %s253, %s254
      %p263 = scmp.eq.s32.totalorder %s37, 0
      %p264 = por %p262, %p263
      %p265 = scmp.ne.s32.totalorder %s253, %s254
      %p266 = scmp.eq.s32.totalorder %s38, 3
      %p267 = por %p265, %p266
      %p269 = scmp.ne.s32.totalorder %s254, %s268
      %p270 = scmp.eq.s32.totalorder %s38, 0
      %p271 = por %p269, %p270
      %s273 = sadd.s32 %s272, 1
      %p276 = scmp.eq.s32.totalorder %s32, 3
      %p277 = scmp.ne.s32.totalorder %s272, %s274
      %p278 = scmp.eq.s32.totalorder %s32, 0
      %p279 = por %p277, %p278
      %p280 = scmp.ne.s32.totalorder %s272, %s274
      %p281 = scmp.eq.s32.totalorder %s37, 3
      %p282 = por %p280, %p281
      %p283 = scmp.ne.s32.totalorder %s274, %s275
      %p284 = scmp.eq.s32.totalorder %s37, 0
      %p285 = por %p283, %p284
      %p286 = scmp.ne.s32.totalorder %s274, %s275
      %p287 = scmp.eq.s32.totalorder %s38, 3
      %p288 = por %p286, %p287
      %p290 = scmp.ne.s32.totalorder %s275, %s289
      %p291 = scmp.eq.s32.totalorder %s38, 0
      %p292 = por %p290, %p291
      %s293 = ssub.s32 %s39, %s51
      %p294 = scmp.eq.s32.totalorder %s293, 0
      %s296 = sadd.s32 %s295, 1
      %s297 = scalar_select %p294, %s295, %s296
      %p300 = pneg %p294
      %p301 = scmp.eq.s32.totalorder %s32, 3
      %p302 = por %p300, %p301
      %p303 = scmp.ne.s32.totalorder %s295, %s298
      %p304 = scmp.eq.s32.totalorder %s32, 0
      %p305 = por %p303, %p304
      %p306 = scmp.ne.s32.totalorder %s295, %s298
      %p307 = scmp.eq.s32.totalorder %s37, 3
      %p308 = por %p306, %p307
      %p309 = scmp.ne.s32.totalorder %s298, %s299
      %p310 = scmp.eq.s32.totalorder %s37, 0
      %p311 = por %p309, %p310
      %p312 = scmp.ne.s32.totalorder %s298, %s299
      %p313 = scmp.eq.s32.totalorder %s38, 3
      %p314 = por %p312, %p313
      %p316 = scmp.ne.s32.totalorder %s299, %s315
      %p317 = scmp.eq.s32.totalorder %s38, 0
      %p318 = por %p316, %p317
      %p319 = scmp.le.s32.totalorder 1, %s32
      %p320 = scmp.lt.s32.totalorder %s32, 5
      %p321 = pnand %p319, %p320
      %p322 = pneg %p321
      // Predicated region
      $region9: #{tpu_custom_call.1} parent=5 // pred_check
        _
      $region10: #{tpu_custom_call.1} parent=5 // pred_check_branch
        %324 = sbr.rel (%p321) target = $region12
      $region11: #{tpu_custom_call.1} parent=5 // pred_region
        %s325 = ssub.s32 %s32, 1
        // Predicated region
        $region13: #{tpu_custom_call.1} parent=11 // pred_check
          %p326 = pneg %p91
        $region14: #{tpu_custom_call.1} parent=11 // pred_check_branch
          %328 = sbr.rel (%p326) target = $region16
        $region15: #{tpu_custom_call.1} parent=11 // pred_region
          %s330 = ssub.s32 128, 128
          %331 = vsyncadd [#allocation9], %s330
          %s333 = sshll.u32 %s1, 4
          %s334 = int_to_ptr.vmem [resolvable:$true] %s333
          %336 = dma.vmem_to_smem %s334, 128, [#allocation10], [#allocation9]
        $region16: #{tpu_custom_call.1} parent=11 // pred_fallthru
          _
        // Predicated region
        $region17: #{tpu_custom_call.1} parent=11 // pred_check
          %p337 = pneg %p112
        $region18: #{tpu_custom_call.1} parent=11 // pred_check_branch
          %339 = sbr.rel (%p337) target = $region20
        $region19: #{tpu_custom_call.1} parent=11 // pred_region
          %s341 = ssub.s32 16, 16
          %342 = vsyncadd [#allocation8], %s341
          %345 = dma.hbm_to_smem %s2, 16, [#allocation11], [#allocation8]
        $region20: #{tpu_custom_call.1} parent=11 // pred_fallthru
          _
        // Predicated region
        $region21: #{tpu_custom_call.1} parent=11 // pred_check
          %p346 = pneg %p133
        $region22: #{tpu_custom_call.1} parent=11 // pred_check_branch
          %348 = sbr.rel (%p346) target = $region24
        $region23: #{tpu_custom_call.1} parent=11 // pred_region
          %s350 = ssub.s32 128, 128
          %351 = vsyncadd [#allocation13], %s350
          %s353 = sshll.u32 %s3, 4
          %s354 = int_to_ptr.vmem [resolvable:$true] %s353
          %356 = dma.vmem_to_smem %s354, 128, [#allocation12], [#allocation13]
        $region24: #{tpu_custom_call.1} parent=11 // pred_fallthru
          _
        // Predicated region
        $region25: #{tpu_custom_call.1} parent=11 // pred_check
          %p357 = pneg %p154
        $region26: #{tpu_custom_call.1} parent=11 // pred_check_branch
          %359 = sbr.rel (%p357) target = $region28
        $region27: #{tpu_custom_call.1} parent=11 // pred_region
          _
        $region28: #{tpu_custom_call.1} parent=11 // pred_fallthru
          _
        // Predicated region
        $region29: #{tpu_custom_call.1} parent=11 // pred_check
          %p360 = pneg %p201
        $region30: #{tpu_custom_call.1} parent=11 // pred_check_branch
          %362 = sbr.rel (%p360) target = $region32
        $region31: #{tpu_custom_call.1} parent=11 // pred_region
          %s364 = ssub.s32 128, 128
          %365 = vsyncadd [#allocation15], %s364
          %s367 = sshll.u32 [#allocation16], 4
          %s368 = int_to_ptr.vmem [resolvable:$true] %s367
          %370 = dma.hbm_to_vmem [thread:$0]  %s6, 128, %s368, [#allocation15]
        $region32: #{tpu_custom_call.1} parent=11 // pred_fallthru
          _
        // Predicated region
        $region33: #{tpu_custom_call.1} parent=11 // pred_check
          %p371 = pneg %p222
        $region34: #{tpu_custom_call.1} parent=11 // pred_check_branch
          %373 = sbr.rel (%p371) target = $region36
        $region35: #{tpu_custom_call.1} parent=11 // pred_region
          %s375 = ssub.s32 8192, 8192
          %376 = vsyncadd [#allocation18], %s375
          %s377 = sshll.u32 [#allocation17], 4
          %s378 = int_to_ptr.vmem [resolvable:$true] %s377
          %383 = dma.hbm_to_vmem [thread:$0]  %s7, 8192, %s378, [#allocation18], 64, 64, 4
        $region36: #{tpu_custom_call.1} parent=11 // pred_fallthru
          _
        // Predicated region
        $region37: #{tpu_custom_call.1} parent=11 // pred_check
          %p384 = pneg %p243
        $region38: #{tpu_custom_call.1} parent=11 // pred_check_branch
          %386 = sbr.rel (%p384) target = $region40
        $region39: #{tpu_custom_call.1} parent=11 // pred_region
          %s388 = ssub.s32 16, 16
          %389 = vsyncadd [#allocation18], %s388
          %s391 = sshll.u32 [#allocation19], 4
          %s392 = int_to_ptr.vmem [resolvable:$true] %s391
          %394 = dma.hbm_to_vmem [thread:$0]  %s8, 16, %s392, [#allocation18]
        $region40: #{tpu_custom_call.1} parent=11 // pred_fallthru
          _
        // Predicated region
        $region41: #{tpu_custom_call.1} parent=11 // pred_check
          %p395 = pneg %p264
        $region42: #{tpu_custom_call.1} parent=11 // pred_check_branch
          %397 = sbr.rel (%p395) target = $region44
        $region43: #{tpu_custom_call.1} parent=11 // pred_region
          %s399 = ssub.s32 8192, 8192
          %400 = vsyncadd [#allocation21], %s399
          %s401 = sshll.u32 [#allocation20], 4
          %s402 = int_to_ptr.vmem [resolvable:$true] %s401
          %407 = dma.hbm_to_vmem [thread:$0]  %s9, 8192, %s402, [#allocation21], 512, 512, 32
        $region44: #{tpu_custom_call.1} parent=11 // pred_fallthru
          _
        // Predicated region
        $region45: #{tpu_custom_call.1} parent=11 // pred_check
          %p408 = pneg %p285
        $region46: #{tpu_custom_call.1} parent=11 // pred_check_branch
          %410 = sbr.rel (%p408) target = $region48
        $region47: #{tpu_custom_call.1} parent=11 // pred_region
          %s412 = ssub.s32 128, 128
          %413 = vsyncadd [#allocation21], %s412
          %s415 = sshll.u32 [#allocation22], 4
          %s416 = int_to_ptr.vmem [resolvable:$true] %s415
          %418 = dma.hbm_to_vmem [thread:$0]  %s10, 128, %s416, [#allocation21]
        $region48: #{tpu_custom_call.1} parent=11 // pred_fallthru
          _
      $region12: #{tpu_custom_call.1} parent=5 // pred_fallthru
        _
      %p419 = scmp.lt.s32.totalorder %s32, 4
      // Predicated region
      $region49: #{tpu_custom_call.1} parent=5 // pred_check
        %p420 = pneg %p419
      $region50: #{tpu_custom_call.1} parent=5 // pred_check_branch
        %422 = sbr.rel (%p420) target = $region52
      $region51: #{tpu_custom_call.1} parent=5 // pred_region
        // Predicated region
        $region53: #{tpu_custom_call.1} parent=51 // pred_check
          %p423 = pneg %p64
        $region54: #{tpu_custom_call.1} parent=51 // pred_check_branch
          %425 = sbr.rel (%p423) target = $region56
        $region55: #{tpu_custom_call.1} parent=51 // pred_region
          %s426 = sand.u32 %s54, 1
          %s427 = scalar_lea.sflag [#allocation6], %s426
          %s428 = sand.u32 %s54, 1
          %s429 = smul.addr %s428, 8
          %s430 = scalar_lea.vmem [#allocation5], %s429
          %s432 = ssub.s32 128, 128
          %433 = vsyncadd %s427, %s432
          %s434 = smul.addr %s39, 128
          %s435 = scalar_lea.hbm %s0, %s434
          %s437 = sshll.u32 %s430, 4
          %s438 = int_to_ptr.vmem [resolvable:$true] %s437
          %440 = dma.hbm_to_vmem [thread:$0]  %s435, 128, %s438, %s427
        $region56: #{tpu_custom_call.1} parent=51 // pred_fallthru
          _
        // Predicated region
        $region57: #{tpu_custom_call.1} parent=51 // pred_check
          %p441 = pneg %p174
        $region58: #{tpu_custom_call.1} parent=51 // pred_check_branch
          %443 = sbr.rel (%p441) target = $region60
        $region59: #{tpu_custom_call.1} parent=51 // pred_region
          %s444 = sand.u32 %s32, 1
          %s445 = scalar_lea.sflag [#allocation15], %s444
          %s446 = sand.u32 %s164, 1
          %s447 = smul.addr %s446, 2048
          %s448 = scalar_lea.vmem [#allocation14], %s447
          %s449 = smul.u32 64, %s40
          %s451 = ssub.s32 32768, 32768
          %452 = vsyncadd %s445, %s451
          %s453 = smul.addr %s449, 8
          %s454 = smul.addr %s453, 64
          %s455 = scalar_lea.hbm %s5, %s454
          %s456 = sshll.u32 %s448, 4
          %s457 = int_to_ptr.vmem [resolvable:$true] %s456
          %462 = dma.hbm_to_vmem [thread:$0]  %s455, 32768, %s457, %s445, 512, 512, 32
        $region60: #{tpu_custom_call.1} parent=51 // pred_fallthru
          _
      $region52: #{tpu_custom_call.1} parent=5 // pred_fallthru
        _
      %p463 = scmp.le.s32.totalorder 1, %s32
      %p464 = scmp.lt.s32.totalorder %s32, 5
      %p465 = pnand %p463, %p464
      %p466 = pneg %p465
      // Predicated region
      $region61: #{tpu_custom_call.1} parent=5 // pred_check
        _
      $region62: #{tpu_custom_call.1} parent=5 // pred_check_branch
        %468 = sbr.rel (%p465) target = $region64
      $region63: #{tpu_custom_call.1} parent=5 // pred_region
        %s469 = ssub.s32 %s32, 1
        %s470 = sand.u32 %s57, 1
        %s471 = scalar_lea.sflag [#allocation6], %s470
        %s472 = sand.u32 %s57, 1
        %s473 = smul.addr %s472, 8
        %s474 = scalar_lea.vmem [#allocation5], %s473
        // Predicated region
        $region65: #{tpu_custom_call.1} parent=63 // pred_check
          %p475 = pneg %p70
        $region66: #{tpu_custom_call.1} parent=63 // pred_check_branch
          %477 = sbr.rel (%p475) target = $region68
        $region67: #{tpu_custom_call.1} parent=63 // pred_region
          %478 = dma.done %s471, 128
        $region68: #{tpu_custom_call.1} parent=63 // pred_fallthru
          _
        // Predicated region
        $region69: #{tpu_custom_call.1} parent=63 // pred_check
          %p479 = pneg %p91
        $region70: #{tpu_custom_call.1} parent=63 // pred_check_branch
          %481 = sbr.rel (%p479) target = $region72
        $region71: #{tpu_custom_call.1} parent=63 // pred_region
          %482 = dma.done [#allocation9], 128
        $region72: #{tpu_custom_call.1} parent=63 // pred_fallthru
          _
        // Predicated region
        $region73: #{tpu_custom_call.1} parent=63 // pred_check
          %p483 = pneg %p112
        $region74: #{tpu_custom_call.1} parent=63 // pred_check_branch
          %485 = sbr.rel (%p483) target = $region76
        $region75: #{tpu_custom_call.1} parent=63 // pred_region
          %486 = dma.done [#allocation8], 16
        $region76: #{tpu_custom_call.1} parent=63 // pred_fallthru
          _
        // Predicated region
        $region77: #{tpu_custom_call.1} parent=63 // pred_check
          %p487 = pneg %p133
        $region78: #{tpu_custom_call.1} parent=63 // pred_check_branch
          %489 = sbr.rel (%p487) target = $region80
        $region79: #{tpu_custom_call.1} parent=63 // pred_region
          %490 = dma.done [#allocation13], 128
        $region80: #{tpu_custom_call.1} parent=63 // pred_fallthru
          _
        %s491 = sand.u32 %s37, 1
        %s492 = scalar_lea.sflag [#allocation15], %s491
        %s493 = sand.u32 %s167, 1
        %s494 = smul.addr %s493, 2048
        %s495 = scalar_lea.vmem [#allocation14], %s494
        // Predicated region
        $region81: #{tpu_custom_call.1} parent=63 // pred_check
          %p496 = pneg %p180
        $region82: #{tpu_custom_call.1} parent=63 // pred_check_branch
          %498 = sbr.rel (%p496) target = $region84
        $region83: #{tpu_custom_call.1} parent=63 // pred_region
          %499 = dma.done %s492, 32768
        $region84: #{tpu_custom_call.1} parent=63 // pred_fallthru
          _
        // Predicated region
        $region85: #{tpu_custom_call.1} parent=63 // pred_check
          %p500 = pneg %p201
        $region86: #{tpu_custom_call.1} parent=63 // pred_check_branch
          %502 = sbr.rel (%p500) target = $region88
        $region87: #{tpu_custom_call.1} parent=63 // pred_region
          %503 = dma.done [#allocation15], 128
        $region88: #{tpu_custom_call.1} parent=63 // pred_fallthru
          _
        // Predicated region
        $region89: #{tpu_custom_call.1} parent=63 // pred_check
          %p504 = pneg %p222
        $region90: #{tpu_custom_call.1} parent=63 // pred_check_branch
          %506 = sbr.rel (%p504) target = $region92
        $region91: #{tpu_custom_call.1} parent=63 // pred_region
          %507 = dma.done [#allocation18], 8192
        $region92: #{tpu_custom_call.1} parent=63 // pred_fallthru
          _
        // Predicated region
        $region93: #{tpu_custom_call.1} parent=63 // pred_check
          %p508 = pneg %p243
        $region94: #{tpu_custom_call.1} parent=63 // pred_check_branch
          %510 = sbr.rel (%p508) target = $region96
        $region95: #{tpu_custom_call.1} parent=63 // pred_region
          %511 = dma.done [#allocation18], 16
        $region96: #{tpu_custom_call.1} parent=63 // pred_fallthru
          _
        // Predicated region
        $region97: #{tpu_custom_call.1} parent=63 // pred_check
          %p512 = pneg %p264
        $region98: #{tpu_custom_call.1} parent=63 // pred_check_branch
          %514 = sbr.rel (%p512) target = $region100
        $region99: #{tpu_custom_call.1} parent=63 // pred_region
          %515 = dma.done [#allocation21], 8192
        $region100: #{tpu_custom_call.1} parent=63 // pred_fallthru
          _
        // Predicated region
        $region101: #{tpu_custom_call.1} parent=63 // pred_check
          %p516 = pneg %p285
        $region102: #{tpu_custom_call.1} parent=63 // pred_check_branch
          %518 = sbr.rel (%p516) target = $region104
        $region103: #{tpu_custom_call.1} parent=63 // pred_region
          %519 = dma.done [#allocation21], 128
        $region104: #{tpu_custom_call.1} parent=63 // pred_fallthru
          _
        %520 = sfence
        %s521 = sand.u32 %s57, 1
        %s522 = scalar_lea.sflag [#allocation6], %s521
        %s523 = sand.u32 %s57, 1
        %s524 = smul.addr %s523, 8
        %s525 = scalar_lea.vmem [#allocation5], %s524
        %p526 = pneg %p70
        %p527 = pneg %p67
        %p528 = pneg %p91
        %p529 = pneg %p88
        %p530 = pneg %p112
        %p531 = pneg %p109
        %p532 = pneg %p133
        %p533 = pneg %p130
        %p534 = pneg %p154
        %p535 = pneg %p151
        %s536 = sand.u32 %s37, 1
        %s537 = scalar_lea.sflag [#allocation15], %s536
        %s538 = sand.u32 %s167, 1
        %s539 = smul.addr %s538, 2048
        %s540 = scalar_lea.vmem [#allocation14], %s539
        %p541 = pneg %p180
        %p542 = pneg %p177
        %p543 = pneg %p201
        %p544 = pneg %p198
        %p545 = pneg %p222
        %p546 = pneg %p219
        %p547 = pneg %p243
        %p548 = pneg %p240
        %p549 = pneg %p264
        %p550 = pneg %p261
        %p551 = pneg %p285
        %p552 = pneg %p282
        %p553 = pneg %p311
        %p554 = pneg %p308
        %s555 = sand.u32 %s298, 1
        %s556 = scalar_lea.sflag [#allocation7], %s555
        %s557 = sand.u32 %s298, 1
        %s558 = smul.addr %s557, 8
        %s559 = scalar_lea.vmem [#allocation23], %s558
        %s560 = smul.u32 64, %s42
        %p562 = scmp.eq.s32.totalorder %s42, 0
        // Predicated region
        $region105: #{tpu_custom_call.1} parent=63 // pred_check
          %p563 = pneg %p562
        $region106: #{tpu_custom_call.1} parent=63 // pred_check_branch
          %565 = sbr.rel (%p563) target = $region108
        $region107: #{tpu_custom_call.1} parent=63 // pred_region
          %v566 = vld [vmem:[%s474] sm:$0xff]
          %v567 = vlaneseq
          %v568 = vand.u32 %v567, 127
          %vm569 = vcmp.ge.s32.totalorder %v568, 1
          %570 = vrot.lane.b32.xlu0 %v566, 1
          %v571 = vpop.permute.xlu0 %570
          %v572 = vsel %vm569, %v571, 0.0
          %vm573 = vcmp.lt.s32.totalorder %v568, 127
          %574 = vrot.lane.b32.xlu0 %v566, 127
          %v575 = vpop.permute.xlu0 %574
          %v576 = vsel %vm573, %v575, 0.0
          %vm577 = vcmp.lt.s32.totalorder %v568, 126
          %578 = vrot.lane.b32.xlu0 %v566, 126
          %v579 = vpop.permute.xlu0 %578
          %v580 = vsel %vm577, %v579, 0.0
          %s581 = sld [smem:[#allocation10]]
          %v582 = vstv %s581
          %v583 = vmul.f32 %v572, %v582
          %s584 = sld [smem:[#allocation10 + $0x1]]
          %v585 = vstv %s584
          %v586 = vmul.f32 %v566, %v585
          %v587 = vadd.f32 %v583, %v586
          %s588 = sld [smem:[#allocation10 + $0x2]]
          %v589 = vstv %s588
          %v590 = vmul.f32 %v576, %v589
          %v591 = vadd.f32 %v587, %v590
          %s592 = sld [smem:[#allocation10 + $0x3]]
          %v593 = vstv %s592
          %v594 = vmul.f32 %v580, %v593
          %v595 = vadd.f32 %v591, %v594
          %s596 = sld [smem:[#allocation11]]
          %v597 = vstv %s596
          %v598 = vadd.f32 %v595, %v597
          %v599 = vmax.f32 %v598, 0.0
          %v600 = vpack.c.bf16 %v599, %v599
          %601 = vst [vmem:[#allocation2] sm:$0xf] %v600
          %s602 = sld [smem:[#allocation10 + $0x80]]
          %v603 = vstv %s602
          %v604 = vmul.f32 %v572, %v603
          %s605 = sld [smem:[#allocation10 + $0x81]]
          %v606 = vstv %s605
          %v607 = vmul.f32 %v566, %v606
          %v608 = vadd.f32 %v604, %v607
          %s609 = sld [smem:[#allocation10 + $0x82]]
          %v610 = vstv %s609
          %v611 = vmul.f32 %v576, %v610
          %v612 = vadd.f32 %v608, %v611
          %s613 = sld [smem:[#allocation10 + $0x83]]
          %v614 = vstv %s613
          %v615 = vmul.f32 %v580, %v614
          %v616 = vadd.f32 %v612, %v615
          %s617 = sld [smem:[#allocation11 + $0x1]]
          %v618 = vstv %s617
          %v619 = vadd.f32 %v616, %v618
          %v620 = vmax.f32 %v619, 0.0
          %v621 = vpack.c.bf16 %v620, %v620
          %622 = vst [vmem:[#allocation2 + $0x4] sm:$0xf] %v621
          %s623 = sld [smem:[#allocation10 + $0x100]]
          %v624 = vstv %s623
          %v625 = vmul.f32 %v572, %v624
          %s626 = sld [smem:[#allocation10 + $0x101]]
          %v627 = vstv %s626
          %v628 = vmul.f32 %v566, %v627
          %v629 = vadd.f32 %v625, %v628
          %s630 = sld [smem:[#allocation10 + $0x102]]
          %v631 = vstv %s630
          %v632 = vmul.f32 %v576, %v631
          %v633 = vadd.f32 %v629, %v632
          %s634 = sld [smem:[#allocation10 + $0x103]]
          %v635 = vstv %s634
          %v636 = vmul.f32 %v580, %v635
          %v637 = vadd.f32 %v633, %v636
          %s638 = sld [smem:[#allocation11 + $0x2]]
          %v639 = vstv %s638
          %v640 = vadd.f32 %v637, %v639
          %v641 = vmax.f32 %v640, 0.0
          %v642 = vpack.c.bf16 %v641, %v641
          %643 = vst [vmem:[#allocation2 + $0x8] sm:$0xf] %v642
          %s644 = sld [smem:[#allocation10 + $0x180]]
          %v645 = vstv %s644
          %v646 = vmul.f32 %v572, %v645
          %s647 = sld [smem:[#allocation10 + $0x181]]
          %v648 = vstv %s647
          %v649 = vmul.f32 %v566, %v648
          %v650 = vadd.f32 %v646, %v649
          %s651 = sld [smem:[#allocation10 + $0x182]]
          %v652 = vstv %s651
          %v653 = vmul.f32 %v576, %v652
          %v654 = vadd.f32 %v650, %v653
          %s655 = sld [smem:[#allocation10 + $0x183]]
          %v656 = vstv %s655
          %v657 = vmul.f32 %v580, %v656
          %v658 = vadd.f32 %v654, %v657
          %s659 = sld [smem:[#allocation11 + $0x3]]
          %v660 = vstv %s659
          %v661 = vadd.f32 %v658, %v660
          %v662 = vmax.f32 %v661, 0.0
          %v663 = vpack.c.bf16 %v662, %v662
          %664 = vst [vmem:[#allocation2 + $0xc] sm:$0xf] %v663
          %s665 = sld [smem:[#allocation10 + $0x200]]
          %v666 = vstv %s665
          %v667 = vmul.f32 %v572, %v666
          %s668 = sld [smem:[#allocation10 + $0x201]]
          %v669 = vstv %s668
          %v670 = vmul.f32 %v566, %v669
          %v671 = vadd.f32 %v667, %v670
          %s672 = sld [smem:[#allocation10 + $0x202]]
          %v673 = vstv %s672
          %v674 = vmul.f32 %v576, %v673
          %v675 = vadd.f32 %v671, %v674
          %s676 = sld [smem:[#allocation10 + $0x203]]
          %v677 = vstv %s676
          %v678 = vmul.f32 %v580, %v677
          %v679 = vadd.f32 %v675, %v678
          %s680 = sld [smem:[#allocation11 + $0x4]]
          %v681 = vstv %s680
          %v682 = vadd.f32 %v679, %v681
          %v683 = vmax.f32 %v682, 0.0
          %v684 = vpack.c.bf16 %v683, %v683
          %685 = vst [vmem:[#allocation2 + $0x10] sm:$0xf] %v684
          %s686 = sld [smem:[#allocation10 + $0x280]]
          %v687 = vstv %s686
          %v688 = vmul.f32 %v572, %v687
          %s689 = sld [smem:[#allocation10 + $0x281]]
          %v690 = vstv %s689
          %v691 = vmul.f32 %v566, %v690
          %v692 = vadd.f32 %v688, %v691
          %s693 = sld [smem:[#allocation10 + $0x282]]
          %v694 = vstv %s693
          %v695 = vmul.f32 %v576, %v694
          %v696 = vadd.f32 %v692, %v695
          %s697 = sld [smem:[#allocation10 + $0x283]]
          %v698 = vstv %s697
          %v699 = vmul.f32 %v580, %v698
          %v700 = vadd.f32 %v696, %v699
          %s701 = sld [smem:[#allocation11 + $0x5]]
          %v702 = vstv %s701
          %v703 = vadd.f32 %v700, %v702
          %v704 = vmax.f32 %v703, 0.0
          %v705 = vpack.c.bf16 %v704, %v704
          %706 = vst [vmem:[#allocation2 + $0x14] sm:$0xf] %v705
          %s707 = sld [smem:[#allocation10 + $0x300]]
          %v708 = vstv %s707
          %v709 = vmul.f32 %v572, %v708
          %s710 = sld [smem:[#allocation10 + $0x301]]
          %v711 = vstv %s710
          %v712 = vmul.f32 %v566, %v711
          %v713 = vadd.f32 %v709, %v712
          %s714 = sld [smem:[#allocation10 + $0x302]]
          %v715 = vstv %s714
          %v716 = vmul.f32 %v576, %v715
          %v717 = vadd.f32 %v713, %v716
          %s718 = sld [smem:[#allocation10 + $0x303]]
          %v719 = vstv %s718
          %v720 = vmul.f32 %v580, %v719
          %v721 = vadd.f32 %v717, %v720
          %s722 = sld [smem:[#allocation11 + $0x6]]
          %v723 = vstv %s722
          %v724 = vadd.f32 %v721, %v723
          %v725 = vmax.f32 %v724, 0.0
          %v726 = vpack.c.bf16 %v725, %v725
          %727 = vst [vmem:[#allocation2 + $0x18] sm:$0xf] %v726
          %s728 = sld [smem:[#allocation10 + $0x380]]
          %v729 = vstv %s728
          %v730 = vmul.f32 %v572, %v729
          %s731 = sld [smem:[#allocation10 + $0x381]]
          %v732 = vstv %s731
          %v733 = vmul.f32 %v566, %v732
          %v734 = vadd.f32 %v730, %v733
          %s735 = sld [smem:[#allocation10 + $0x382]]
          %v736 = vstv %s735
          %v737 = vmul.f32 %v576, %v736
          %v738 = vadd.f32 %v734, %v737
          %s739 = sld [smem:[#allocation10 + $0x383]]
          %v740 = vstv %s739
          %v741 = vmul.f32 %v580, %v740
          %v742 = vadd.f32 %v738, %v741
          %s743 = sld [smem:[#allocation11 + $0x7]]
          %v744 = vstv %s743
          %v745 = vadd.f32 %v742, %v744
          %v746 = vmax.f32 %v745, 0.0
          %v747 = vpack.c.bf16 %v746, %v746
          %748 = vst [vmem:[#allocation2 + $0x1c] sm:$0xf] %v747
        $region108: #{tpu_custom_call.1} parent=63 // pred_fallthru
          _
        %s749 = smul.u32 %s42, 512
        %s750 = sshra.s32 %s749, 7
        %s751 = sand.u32 %s749, 127
        %s752 = smul.addr %s750, 4
        %s753 = scalar_lea.vmem [#allocation2], %s752
        %v754 = vld [vmem:[%s753] sm:$0xff]
        %v755 = vld [vmem:[%s753 + $0x8] sm:$0xff]
        %v756 = vld [vmem:[%s495] sm:$0xff]
        %v757 = vld [vmem:[%s495 + $0x8] sm:$0xff]
        %v758 = vld [vmem:[%s495 + $0x10] sm:$0xff]
        %v759 = vld [vmem:[%s495 + $0x18] sm:$0xff]
        %v760 = vld [vmem:[%s495 + $0x20] sm:$0xff]
        %v761 = vld [vmem:[%s495 + $0x28] sm:$0xff]
        %v762 = vld [vmem:[%s495 + $0x30] sm:$0xff]
        %v763 = vld [vmem:[%s495 + $0x38] sm:$0xff]
        %v764 = vld [vmem:[%s495 + $0x40] sm:$0xff]
        %v765 = vld [vmem:[%s495 + $0x48] sm:$0xff]
        %v766 = vld [vmem:[%s495 + $0x50] sm:$0xff]
        %v767 = vld [vmem:[%s495 + $0x58] sm:$0xff]
        %v768 = vld [vmem:[%s495 + $0x60] sm:$0xff]
        %v769 = vld [vmem:[%s495 + $0x68] sm:$0xff]
        %v770 = vld [vmem:[%s495 + $0x70] sm:$0xff]
        %v771 = vld [vmem:[%s495 + $0x78] sm:$0xff]
        %v772 = vld [vmem:[%s495 + $0x80] sm:$0xff]
        %v773 = vld [vmem:[%s495 + $0x88] sm:$0xff]
        %v774 = vld [vmem:[%s495 + $0x90] sm:$0xff]
        %v775 = vld [vmem:[%s495 + $0x98] sm:$0xff]
        %v776 = vld [vmem:[%s495 + $0xa0] sm:$0xff]
        %v777 = vld [vmem:[%s495 + $0xa8] sm:$0xff]
        %v778 = vld [vmem:[%s495 + $0xb0] sm:$0xff]
        %v779 = vld [vmem:[%s495 + $0xb8] sm:$0xff]
        %v780 = vld [vmem:[%s495 + $0xc0] sm:$0xff]
        %v781 = vld [vmem:[%s495 + $0xc8] sm:$0xff]
        %v782 = vld [vmem:[%s495 + $0xd0] sm:$0xff]
        %v783 = vld [vmem:[%s495 + $0xd8] sm:$0xff]
        %v784 = vld [vmem:[%s495 + $0xe0] sm:$0xff]
        %v785 = vld [vmem:[%s495 + $0xe8] sm:$0xff]
        %v786 = vld [vmem:[%s495 + $0xf0] sm:$0xff]
        %v787 = vld [vmem:[%s495 + $0xf8] sm:$0xff]
        %v788 = vld [vmem:[%s495 + $0x100] sm:$0xff]
        %v789 = vld [vmem:[%s495 + $0x108] sm:$0xff]
        %v790 = vld [vmem:[%s495 + $0x110] sm:$0xff]
        %v791 = vld [vmem:[%s495 + $0x118] sm:$0xff]
        %v792 = vld [vmem:[%s495 + $0x120] sm:$0xff]
        %v793 = vld [vmem:[%s495 + $0x128] sm:$0xff]
        %v794 = vld [vmem:[%s495 + $0x130] sm:$0xff]
        %v795 = vld [vmem:[%s495 + $0x138] sm:$0xff]
        %v796 = vld [vmem:[%s495 + $0x140] sm:$0xff]
        %v797 = vld [vmem:[%s495 + $0x148] sm:$0xff]
        %v798 = vld [vmem:[%s495 + $0x150] sm:$0xff]
        %v799 = vld [vmem:[%s495 + $0x158] sm:$0xff]
        %v800 = vld [vmem:[%s495 + $0x160] sm:$0xff]
        %v801 = vld [vmem:[%s495 + $0x168] sm:$0xff]
        %v802 = vld [vmem:[%s495 + $0x170] sm:$0xff]
        %v803 = vld [vmem:[%s495 + $0x178] sm:$0xff]
        %v804 = vld [vmem:[%s495 + $0x180] sm:$0xff]
        %v805 = vld [vmem:[%s495 + $0x188] sm:$0xff]
        %v806 = vld [vmem:[%s495 + $0x190] sm:$0xff]
        %v807 = vld [vmem:[%s495 + $0x198] sm:$0xff]
        %v808 = vld [vmem:[%s495 + $0x1a0] sm:$0xff]
        %v809 = vld [vmem:[%s495 + $0x1a8] sm:$0xff]
        %v810 = vld [vmem:[%s495 + $0x1b0] sm:$0xff]
        %v811 = vld [vmem:[%s495 + $0x1b8] sm:$0xff]
        %v812 = vld [vmem:[%s495 + $0x1c0] sm:$0xff]
        %v813 = vld [vmem:[%s495 + $0x1c8] sm:$0xff]
        %v814 = vld [vmem:[%s495 + $0x1d0] sm:$0xff]
        %v815 = vld [vmem:[%s495 + $0x1d8] sm:$0xff]
        %v816 = vld [vmem:[%s495 + $0x1e0] sm:$0xff]
        %v817 = vld [vmem:[%s495 + $0x1e8] sm:$0xff]
        %v818 = vld [vmem:[%s495 + $0x1f0] sm:$0xff]
        %v819 = vld [vmem:[%s495 + $0x1f8] sm:$0xff]
        %v820 = vld [vmem:[%s495 + $0x200] sm:$0xff]
        %v821 = vld [vmem:[%s495 + $0x208] sm:$0xff]
        %v822 = vld [vmem:[%s495 + $0x210] sm:$0xff]
        %v823 = vld [vmem:[%s495 + $0x218] sm:$0xff]
        %v824 = vld [vmem:[%s495 + $0x220] sm:$0xff]
        %v825 = vld [vmem:[%s495 + $0x228] sm:$0xff]
        %v826 = vld [vmem:[%s495 + $0x230] sm:$0xff]
        %v827 = vld [vmem:[%s495 + $0x238] sm:$0xff]
        %v828 = vld [vmem:[%s495 + $0x240] sm:$0xff]
        %v829 = vld [vmem:[%s495 + $0x248] sm:$0xff]
        %v830 = vld [vmem:[%s495 + $0x250] sm:$0xff]
        %v831 = vld [vmem:[%s495 + $0x258] sm:$0xff]
        %v832 = vld [vmem:[%s495 + $0x260] sm:$0xff]
        %v833 = vld [vmem:[%s495 + $0x268] sm:$0xff]
        %v834 = vld [vmem:[%s495 + $0x270] sm:$0xff]
        %v835 = vld [vmem:[%s495 + $0x278] sm:$0xff]
        %v836 = vld [vmem:[%s495 + $0x280] sm:$0xff]
        %v837 = vld [vmem:[%s495 + $0x288] sm:$0xff]
        %v838 = vld [vmem:[%s495 + $0x290] sm:$0xff]
        %v839 = vld [vmem:[%s495 + $0x298] sm:$0xff]
        %v840 = vld [vmem:[%s495 + $0x2a0] sm:$0xff]
        %v841 = vld [vmem:[%s495 + $0x2a8] sm:$0xff]
        %v842 = vld [vmem:[%s495 + $0x2b0] sm:$0xff]
        %v843 = vld [vmem:[%s495 + $0x2b8] sm:$0xff]
        %v844 = vld [vmem:[%s495 + $0x2c0] sm:$0xff]
        %v845 = vld [vmem:[%s495 + $0x2c8] sm:$0xff]
        %v846 = vld [vmem:[%s495 + $0x2d0] sm:$0xff]
        %v847 = vld [vmem:[%s495 + $0x2d8] sm:$0xff]
        %v848 = vld [vmem:[%s495 + $0x2e0] sm:$0xff]
        %v849 = vld [vmem:[%s495 + $0x2e8] sm:$0xff]
        %v850 = vld [vmem:[%s495 + $0x2f0] sm:$0xff]
        %v851 = vld [vmem:[%s495 + $0x2f8] sm:$0xff]
        %v852 = vld [vmem:[%s495 + $0x300] sm:$0xff]
        %v853 = vld [vmem:[%s495 + $0x308] sm:$0xff]
        %v854 = vld [vmem:[%s495 + $0x310] sm:$0xff]
        %v855 = vld [vmem:[%s495 + $0x318] sm:$0xff]
        %v856 = vld [vmem:[%s495 + $0x320] sm:$0xff]
        %v857 = vld [vmem:[%s495 + $0x328] sm:$0xff]
        %v858 = vld [vmem:[%s495 + $0x330] sm:$0xff]
        %v859 = vld [vmem:[%s495 + $0x338] sm:$0xff]
        %v860 = vld [vmem:[%s495 + $0x340] sm:$0xff]
        %v861 = vld [vmem:[%s495 + $0x348] sm:$0xff]
        %v862 = vld [vmem:[%s495 + $0x350] sm:$0xff]
        %v863 = vld [vmem:[%s495 + $0x358] sm:$0xff]
        %v864 = vld [vmem:[%s495 + $0x360] sm:$0xff]
        %v865 = vld [vmem:[%s495 + $0x368] sm:$0xff]
        %v866 = vld [vmem:[%s495 + $0x370] sm:$0xff]
        %v867 = vld [vmem:[%s495 + $0x378] sm:$0xff]
        %v868 = vld [vmem:[%s495 + $0x380] sm:$0xff]
        %v869 = vld [vmem:[%s495 + $0x388] sm:$0xff]
        %v870 = vld [vmem:[%s495 + $0x390] sm:$0xff]
        %v871 = vld [vmem:[%s495 + $0x398] sm:$0xff]
        %v872 = vld [vmem:[%s495 + $0x3a0] sm:$0xff]
        %v873 = vld [vmem:[%s495 + $0x3a8] sm:$0xff]
        %v874 = vld [vmem:[%s495 + $0x3b0] sm:$0xff]
        %v875 = vld [vmem:[%s495 + $0x3b8] sm:$0xff]
        %v876 = vld [vmem:[%s495 + $0x3c0] sm:$0xff]
        %v877 = vld [vmem:[%s495 + $0x3c8] sm:$0xff]
        %v878 = vld [vmem:[%s495 + $0x3d0] sm:$0xff]
        %v879 = vld [vmem:[%s495 + $0x3d8] sm:$0xff]
        %v880 = vld [vmem:[%s495 + $0x3e0] sm:$0xff]
        %v881 = vld [vmem:[%s495 + $0x3e8] sm:$0xff]
        %v882 = vld [vmem:[%s495 + $0x3f0] sm:$0xff]
        %v883 = vld [vmem:[%s495 + $0x3f8] sm:$0xff]
        %v884 = vld [vmem:[%s495 + $0x400] sm:$0xff]
        %v885 = vld [vmem:[%s495 + $0x408] sm:$0xff]
        %v886 = vld [vmem:[%s495 + $0x410] sm:$0xff]
        %v887 = vld [vmem:[%s495 + $0x418] sm:$0xff]
        %v888 = vld [vmem:[%s495 + $0x420] sm:$0xff]
        %v889 = vld [vmem:[%s495 + $0x428] sm:$0xff]
        %v890 = vld [vmem:[%s495 + $0x430] sm:$0xff]
        %v891 = vld [vmem:[%s495 + $0x438] sm:$0xff]
        %v892 = vld [vmem:[%s495 + $0x440] sm:$0xff]
        %v893 = vld [vmem:[%s495 + $0x448] sm:$0xff]
        %v894 = vld [vmem:[%s495 + $0x450] sm:$0xff]
        %v895 = vld [vmem:[%s495 + $0x458] sm:$0xff]
        %v896 = vld [vmem:[%s495 + $0x460] sm:$0xff]
        %v897 = vld [vmem:[%s495 + $0x468] sm:$0xff]
        %v898 = vld [vmem:[%s495 + $0x470] sm:$0xff]
        %v899 = vld [vmem:[%s495 + $0x478] sm:$0xff]
        %v900 = vld [vmem:[%s495 + $0x480] sm:$0xff]
        %v901 = vld [vmem:[%s495 + $0x488] sm:$0xff]
        %v902 = vld [vmem:[%s495 + $0x490] sm:$0xff]
        %v903 = vld [vmem:[%s495 + $0x498] sm:$0xff]
        %v904 = vld [vmem:[%s495 + $0x4a0] sm:$0xff]
        %v905 = vld [vmem:[%s495 + $0x4a8] sm:$0xff]
        %v906 = vld [vmem:[%s495 + $0x4b0] sm:$0xff]
        %v907 = vld [vmem:[%s495 + $0x4b8] sm:$0xff]
        %v908 = vld [vmem:[%s495 + $0x4c0] sm:$0xff]
        %v909 = vld [vmem:[%s495 + $0x4c8] sm:$0xff]
        %v910 = vld [vmem:[%s495 + $0x4d0] sm:$0xff]
        %v911 = vld [vmem:[%s495 + $0x4d8] sm:$0xff]
        %v912 = vld [vmem:[%s495 + $0x4e0] sm:$0xff]
        %v913 = vld [vmem:[%s495 + $0x4e8] sm:$0xff]
        %v914 = vld [vmem:[%s495 + $0x4f0] sm:$0xff]
        %v915 = vld [vmem:[%s495 + $0x4f8] sm:$0xff]
        %v916 = vld [vmem:[%s495 + $0x500] sm:$0xff]
        %v917 = vld [vmem:[%s495 + $0x508] sm:$0xff]
        %v918 = vld [vmem:[%s495 + $0x510] sm:$0xff]
        %v919 = vld [vmem:[%s495 + $0x518] sm:$0xff]
        %v920 = vld [vmem:[%s495 + $0x520] sm:$0xff]
        %v921 = vld [vmem:[%s495 + $0x528] sm:$0xff]
        %v922 = vld [vmem:[%s495 + $0x530] sm:$0xff]
        %v923 = vld [vmem:[%s495 + $0x538] sm:$0xff]
        %v924 = vld [vmem:[%s495 + $0x540] sm:$0xff]
        %v925 = vld [vmem:[%s495 + $0x548] sm:$0xff]
        %v926 = vld [vmem:[%s495 + $0x550] sm:$0xff]
        %v927 = vld [vmem:[%s495 + $0x558] sm:$0xff]
        %v928 = vld [vmem:[%s495 + $0x560] sm:$0xff]
        %v929 = vld [vmem:[%s495 + $0x568] sm:$0xff]
        %v930 = vld [vmem:[%s495 + $0x570] sm:$0xff]
        %v931 = vld [vmem:[%s495 + $0x578] sm:$0xff]
        %v932 = vld [vmem:[%s495 + $0x580] sm:$0xff]
        %v933 = vld [vmem:[%s495 + $0x588] sm:$0xff]
        %v934 = vld [vmem:[%s495 + $0x590] sm:$0xff]
        %v935 = vld [vmem:[%s495 + $0x598] sm:$0xff]
        %v936 = vld [vmem:[%s495 + $0x5a0] sm:$0xff]
        %v937 = vld [vmem:[%s495 + $0x5a8] sm:$0xff]
        %v938 = vld [vmem:[%s495 + $0x5b0] sm:$0xff]
        %v939 = vld [vmem:[%s495 + $0x5b8] sm:$0xff]
        %v940 = vld [vmem:[%s495 + $0x5c0] sm:$0xff]
        %v941 = vld [vmem:[%s495 + $0x5c8] sm:$0xff]
        %v942 = vld [vmem:[%s495 + $0x5d0] sm:$0xff]
        %v943 = vld [vmem:[%s495 + $0x5d8] sm:$0xff]
        %v944 = vld [vmem:[%s495 + $0x5e0] sm:$0xff]
        %v945 = vld [vmem:[%s495 + $0x5e8] sm:$0xff]
        %v946 = vld [vmem:[%s495 + $0x5f0] sm:$0xff]
        %v947 = vld [vmem:[%s495 + $0x5f8] sm:$0xff]
        %v948 = vld [vmem:[%s495 + $0x600] sm:$0xff]
        %v949 = vld [vmem:[%s495 + $0x608] sm:$0xff]
        %v950 = vld [vmem:[%s495 + $0x610] sm:$0xff]
        %v951 = vld [vmem:[%s495 + $0x618] sm:$0xff]
        %v952 = vld [vmem:[%s495 + $0x620] sm:$0xff]
        %v953 = vld [vmem:[%s495 + $0x628] sm:$0xff]
        %v954 = vld [vmem:[%s495 + $0x630] sm:$0xff]
        %v955 = vld [vmem:[%s495 + $0x638] sm:$0xff]
        %v956 = vld [vmem:[%s495 + $0x640] sm:$0xff]
        %v957 = vld [vmem:[%s495 + $0x648] sm:$0xff]
        %v958 = vld [vmem:[%s495 + $0x650] sm:$0xff]
        %v959 = vld [vmem:[%s495 + $0x658] sm:$0xff]
        %v960 = vld [vmem:[%s495 + $0x660] sm:$0xff]
        %v961 = vld [vmem:[%s495 + $0x668] sm:$0xff]
        %v962 = vld [vmem:[%s495 + $0x670] sm:$0xff]
        %v963 = vld [vmem:[%s495 + $0x678] sm:$0xff]
        %v964 = vld [vmem:[%s495 + $0x680] sm:$0xff]
        %v965 = vld [vmem:[%s495 + $0x688] sm:$0xff]
        %v966 = vld [vmem:[%s495 + $0x690] sm:$0xff]
        %v967 = vld [vmem:[%s495 + $0x698] sm:$0xff]
        %v968 = vld [vmem:[%s495 + $0x6a0] sm:$0xff]
        %v969 = vld [vmem:[%s495 + $0x6a8] sm:$0xff]
        %v970 = vld [vmem:[%s495 + $0x6b0] sm:$0xff]
        %v971 = vld [vmem:[%s495 + $0x6b8] sm:$0xff]
        %v972 = vld [vmem:[%s495 + $0x6c0] sm:$0xff]
        %v973 = vld [vmem:[%s495 + $0x6c8] sm:$0xff]
        %v974 = vld [vmem:[%s495 + $0x6d0] sm:$0xff]
        %v975 = vld [vmem:[%s495 + $0x6d8] sm:$0xff]
        %v976 = vld [vmem:[%s495 + $0x6e0] sm:$0xff]
        %v977 = vld [vmem:[%s495 + $0x6e8] sm:$0xff]
        %v978 = vld [vmem:[%s495 + $0x6f0] sm:$0xff]
        %v979 = vld [vmem:[%s495 + $0x6f8] sm:$0xff]
        %v980 = vld [vmem:[%s495 + $0x700] sm:$0xff]
        %v981 = vld [vmem:[%s495 + $0x708] sm:$0xff]
        %v982 = vld [vmem:[%s495 + $0x710] sm:$0xff]
        %v983 = vld [vmem:[%s495 + $0x718] sm:$0xff]
        %v984 = vld [vmem:[%s495 + $0x720] sm:$0xff]
        %v985 = vld [vmem:[%s495 + $0x728] sm:$0xff]
        %v986 = vld [vmem:[%s495 + $0x730] sm:$0xff]
        %v987 = vld [vmem:[%s495 + $0x738] sm:$0xff]
        %v988 = vld [vmem:[%s495 + $0x740] sm:$0xff]
        %v989 = vld [vmem:[%s495 + $0x748] sm:$0xff]
        %v990 = vld [vmem:[%s495 + $0x750] sm:$0xff]
        %v991 = vld [vmem:[%s495 + $0x758] sm:$0xff]
        %v992 = vld [vmem:[%s495 + $0x760] sm:$0xff]
        %v993 = vld [vmem:[%s495 + $0x768] sm:$0xff]
        %v994 = vld [vmem:[%s495 + $0x770] sm:$0xff]
        %v995 = vld [vmem:[%s495 + $0x778] sm:$0xff]
        %v996 = vld [vmem:[%s495 + $0x780] sm:$0xff]
        %v997 = vld [vmem:[%s495 + $0x788] sm:$0xff]
        %v998 = vld [vmem:[%s495 + $0x790] sm:$0xff]
        %v999 = vld [vmem:[%s495 + $0x798] sm:$0xff]
        %v1000 = vld [vmem:[%s495 + $0x7a0] sm:$0xff]
        %v1001 = vld [vmem:[%s495 + $0x7a8] sm:$0xff]
        %v1002 = vld [vmem:[%s495 + $0x7b0] sm:$0xff]
        %v1003 = vld [vmem:[%s495 + $0x7b8] sm:$0xff]
        %v1004 = vld [vmem:[%s495 + $0x7c0] sm:$0xff]
        %v1005 = vld [vmem:[%s495 + $0x7c8] sm:$0xff]
        %v1006 = vld [vmem:[%s495 + $0x7d0] sm:$0xff]
        %v1007 = vld [vmem:[%s495 + $0x7d8] sm:$0xff]
        %v1008 = vld [vmem:[%s495 + $0x7e0] sm:$0xff]
        %v1009 = vld [vmem:[%s495 + $0x7e8] sm:$0xff]
        %v1010 = vld [vmem:[%s495 + $0x7f0] sm:$0xff]
        %v1011 = vld [vmem:[%s495 + $0x7f8] sm:$0xff]
        %v1014 = vunpack.c.l.b16 %v754
        %v1015 = vunpack.c.h.b16 %v754
        %v1016 = vunpack.c.l.b16 %v755
        %v1017 = vunpack.c.h.b16 %v755
        %v1018 = vpack.c.b16 %v1014, %v1014
        %v1019 = vpack.c.b16 %v1015, %v1015
        %v1020 = vpack.c.b16 %v1016, %v1016
        %v1021 = vpack.c.b16 %v1017, %v1017
        %v1282 = vunpack.c.l.b16 %v756
        %v1283 = vunpack.c.h.b16 %v756
        %v1284 = vunpack.c.l.b16 %v757
        %v1285 = vunpack.c.h.b16 %v757
        %v1286 = vunpack.c.l.b16 %v758
        %v1287 = vunpack.c.h.b16 %v758
        %v1288 = vunpack.c.l.b16 %v759
        %v1289 = vunpack.c.h.b16 %v759
        %v1290 = vunpack.c.l.b16 %v760
        %v1291 = vunpack.c.h.b16 %v760
        %v1292 = vunpack.c.l.b16 %v761
        %v1293 = vunpack.c.h.b16 %v761
        %v1294 = vunpack.c.l.b16 %v762
        %v1295 = vunpack.c.h.b16 %v762
        %v1296 = vunpack.c.l.b16 %v763
        %v1297 = vunpack.c.h.b16 %v763
        %v1298 = vunpack.c.l.b16 %v764
        %v1299 = vunpack.c.h.b16 %v764
        %v1300 = vunpack.c.l.b16 %v765
        %v1301 = vunpack.c.h.b16 %v765
        %v1302 = vunpack.c.l.b16 %v766
        %v1303 = vunpack.c.h.b16 %v766
        %v1304 = vunpack.c.l.b16 %v767
        %v1305 = vunpack.c.h.b16 %v767
        %v1306 = vunpack.c.l.b16 %v768
        %v1307 = vunpack.c.h.b16 %v768
        %v1308 = vunpack.c.l.b16 %v769
        %v1309 = vunpack.c.h.b16 %v769
        %v1310 = vunpack.c.l.b16 %v770
        %v1311 = vunpack.c.h.b16 %v770
        %v1312 = vunpack.c.l.b16 %v771
        %v1313 = vunpack.c.h.b16 %v771
        %v1314 = vunpack.c.l.b16 %v772
        %v1315 = vunpack.c.h.b16 %v772
        %v1316 = vunpack.c.l.b16 %v773
        %v1317 = vunpack.c.h.b16 %v773
        %v1318 = vunpack.c.l.b16 %v774
        %v1319 = vunpack.c.h.b16 %v774
        %v1320 = vunpack.c.l.b16 %v775
        %v1321 = vunpack.c.h.b16 %v775
        %v1322 = vunpack.c.l.b16 %v776
        %v1323 = vunpack.c.h.b16 %v776
        %v1324 = vunpack.c.l.b16 %v777
        %v1325 = vunpack.c.h.b16 %v777
        %v1326 = vunpack.c.l.b16 %v778
        %v1327 = vunpack.c.h.b16 %v778
        %v1328 = vunpack.c.l.b16 %v779
        %v1329 = vunpack.c.h.b16 %v779
        %v1330 = vunpack.c.l.b16 %v780
        %v1331 = vunpack.c.h.b16 %v780
        %v1332 = vunpack.c.l.b16 %v781
        %v1333 = vunpack.c.h.b16 %v781
        %v1334 = vunpack.c.l.b16 %v782
        %v1335 = vunpack.c.h.b16 %v782
        %v1336 = vunpack.c.l.b16 %v783
        %v1337 = vunpack.c.h.b16 %v783
        %v1338 = vunpack.c.l.b16 %v784
        %v1339 = vunpack.c.h.b16 %v784
        %v1340 = vunpack.c.l.b16 %v785
        %v1341 = vunpack.c.h.b16 %v785
        %v1342 = vunpack.c.l.b16 %v786
        %v1343 = vunpack.c.h.b16 %v786
        %v1344 = vunpack.c.l.b16 %v787
        %v1345 = vunpack.c.h.b16 %v787
        %v1346 = vunpack.c.l.b16 %v788
        %v1347 = vunpack.c.h.b16 %v788
        %v1348 = vunpack.c.l.b16 %v789
        %v1349 = vunpack.c.h.b16 %v789
        %v1350 = vunpack.c.l.b16 %v790
        %v1351 = vunpack.c.h.b16 %v790
        %v1352 = vunpack.c.l.b16 %v791
        %v1353 = vunpack.c.h.b16 %v791
        %v1354 = vunpack.c.l.b16 %v792
        %v1355 = vunpack.c.h.b16 %v792
        %v1356 = vunpack.c.l.b16 %v793
        %v1357 = vunpack.c.h.b16 %v793
        %v1358 = vunpack.c.l.b16 %v794
        %v1359 = vunpack.c.h.b16 %v794
        %v1360 = vunpack.c.l.b16 %v795
        %v1361 = vunpack.c.h.b16 %v795
        %v1362 = vunpack.c.l.b16 %v796
        %v1363 = vunpack.c.h.b16 %v796
        %v1364 = vunpack.c.l.b16 %v797
        %v1365 = vunpack.c.h.b16 %v797
        %v1366 = vunpack.c.l.b16 %v798
        %v1367 = vunpack.c.h.b16 %v798
        %v1368 = vunpack.c.l.b16 %v799
        %v1369 = vunpack.c.h.b16 %v799
        %v1370 = vunpack.c.l.b16 %v800
        %v1371 = vunpack.c.h.b16 %v800
        %v1372 = vunpack.c.l.b16 %v801
        %v1373 = vunpack.c.h.b16 %v801
        %v1374 = vunpack.c.l.b16 %v802
        %v1375 = vunpack.c.h.b16 %v802
        %v1376 = vunpack.c.l.b16 %v803
        %v1377 = vunpack.c.h.b16 %v803
        %v1378 = vunpack.c.l.b16 %v804
        %v1379 = vunpack.c.h.b16 %v804
        %v1380 = vunpack.c.l.b16 %v805
        %v1381 = vunpack.c.h.b16 %v805
        %v1382 = vunpack.c.l.b16 %v806
        %v1383 = vunpack.c.h.b16 %v806
        %v1384 = vunpack.c.l.b16 %v807
        %v1385 = vunpack.c.h.b16 %v807
        %v1386 = vunpack.c.l.b16 %v808
        %v1387 = vunpack.c.h.b16 %v808
        %v1388 = vunpack.c.l.b16 %v809
        %v1389 = vunpack.c.h.b16 %v809
        %v1390 = vunpack.c.l.b16 %v810
        %v1391 = vunpack.c.h.b16 %v810
        %v1392 = vunpack.c.l.b16 %v811
        %v1393 = vunpack.c.h.b16 %v811
        %v1394 = vunpack.c.l.b16 %v812
        %v1395 = vunpack.c.h.b16 %v812
        %v1396 = vunpack.c.l.b16 %v813
        %v1397 = vunpack.c.h.b16 %v813
        %v1398 = vunpack.c.l.b16 %v814
        %v1399 = vunpack.c.h.b16 %v814
        %v1400 = vunpack.c.l.b16 %v815
        %v1401 = vunpack.c.h.b16 %v815
        %v1402 = vunpack.c.l.b16 %v816
        %v1403 = vunpack.c.h.b16 %v816
        %v1404 = vunpack.c.l.b16 %v817
        %v1405 = vunpack.c.h.b16 %v817
        %v1406 = vunpack.c.l.b16 %v818
        %v1407 = vunpack.c.h.b16 %v818
        %v1408 = vunpack.c.l.b16 %v819
        %v1409 = vunpack.c.h.b16 %v819
        %v1410 = vunpack.c.l.b16 %v820
        %v1411 = vunpack.c.h.b16 %v820
        %v1412 = vunpack.c.l.b16 %v821
        %v1413 = vunpack.c.h.b16 %v821
        %v1414 = vunpack.c.l.b16 %v822
        %v1415 = vunpack.c.h.b16 %v822
        %v1416 = vunpack.c.l.b16 %v823
        %v1417 = vunpack.c.h.b16 %v823
        %v1418 = vunpack.c.l.b16 %v824
        %v1419 = vunpack.c.h.b16 %v824
        %v1420 = vunpack.c.l.b16 %v825
        %v1421 = vunpack.c.h.b16 %v825
        %v1422 = vunpack.c.l.b16 %v826
        %v1423 = vunpack.c.h.b16 %v826
        %v1424 = vunpack.c.l.b16 %v827
        %v1425 = vunpack.c.h.b16 %v827
        %v1426 = vunpack.c.l.b16 %v828
        %v1427 = vunpack.c.h.b16 %v828
        %v1428 = vunpack.c.l.b16 %v829
        %v1429 = vunpack.c.h.b16 %v829
        %v1430 = vunpack.c.l.b16 %v830
        %v1431 = vunpack.c.h.b16 %v830
        %v1432 = vunpack.c.l.b16 %v831
        %v1433 = vunpack.c.h.b16 %v831
        %v1434 = vunpack.c.l.b16 %v832
        %v1435 = vunpack.c.h.b16 %v832
        %v1436 = vunpack.c.l.b16 %v833
        %v1437 = vunpack.c.h.b16 %v833
        %v1438 = vunpack.c.l.b16 %v834
        %v1439 = vunpack.c.h.b16 %v834
        %v1440 = vunpack.c.l.b16 %v835
        %v1441 = vunpack.c.h.b16 %v835
        %v1442 = vunpack.c.l.b16 %v836
        %v1443 = vunpack.c.h.b16 %v836
        %v1444 = vunpack.c.l.b16 %v837
        %v1445 = vunpack.c.h.b16 %v837
        %v1446 = vunpack.c.l.b16 %v838
        %v1447 = vunpack.c.h.b16 %v838
        %v1448 = vunpack.c.l.b16 %v839
        %v1449 = vunpack.c.h.b16 %v839
        %v1450 = vunpack.c.l.b16 %v840
        %v1451 = vunpack.c.h.b16 %v840
        %v1452 = vunpack.c.l.b16 %v841
        %v1453 = vunpack.c.h.b16 %v841
        %v1454 = vunpack.c.l.b16 %v842
        %v1455 = vunpack.c.h.b16 %v842
        %v1456 = vunpack.c.l.b16 %v843
        %v1457 = vunpack.c.h.b16 %v843
        %v1458 = vunpack.c.l.b16 %v844
        %v1459 = vunpack.c.h.b16 %v844
        %v1460 = vunpack.c.l.b16 %v845
        %v1461 = vunpack.c.h.b16 %v845
        %v1462 = vunpack.c.l.b16 %v846
        %v1463 = vunpack.c.h.b16 %v846
        %v1464 = vunpack.c.l.b16 %v847
        %v1465 = vunpack.c.h.b16 %v847
        %v1466 = vunpack.c.l.b16 %v848
        %v1467 = vunpack.c.h.b16 %v848
        %v1468 = vunpack.c.l.b16 %v849
        %v1469 = vunpack.c.h.b16 %v849
        %v1470 = vunpack.c.l.b16 %v850
        %v1471 = vunpack.c.h.b16 %v850
        %v1472 = vunpack.c.l.b16 %v851
        %v1473 = vunpack.c.h.b16 %v851
        %v1474 = vunpack.c.l.b16 %v852
        %v1475 = vunpack.c.h.b16 %v852
        %v1476 = vunpack.c.l.b16 %v853
        %v1477 = vunpack.c.h.b16 %v853
        %v1478 = vunpack.c.l.b16 %v854
        %v1479 = vunpack.c.h.b16 %v854
        %v1480 = vunpack.c.l.b16 %v855
        %v1481 = vunpack.c.h.b16 %v855
        %v1482 = vunpack.c.l.b16 %v856
        %v1483 = vunpack.c.h.b16 %v856
        %v1484 = vunpack.c.l.b16 %v857
        %v1485 = vunpack.c.h.b16 %v857
        %v1486 = vunpack.c.l.b16 %v858
        %v1487 = vunpack.c.h.b16 %v858
        %v1488 = vunpack.c.l.b16 %v859
        %v1489 = vunpack.c.h.b16 %v859
        %v1490 = vunpack.c.l.b16 %v860
        %v1491 = vunpack.c.h.b16 %v860
        %v1492 = vunpack.c.l.b16 %v861
        %v1493 = vunpack.c.h.b16 %v861
        %v1494 = vunpack.c.l.b16 %v862
        %v1495 = vunpack.c.h.b16 %v862
        %v1496 = vunpack.c.l.b16 %v863
        %v1497 = vunpack.c.h.b16 %v863
        %v1498 = vunpack.c.l.b16 %v864
        %v1499 = vunpack.c.h.b16 %v864
        %v1500 = vunpack.c.l.b16 %v865
        %v1501 = vunpack.c.h.b16 %v865
        %v1502 = vunpack.c.l.b16 %v866
        %v1503 = vunpack.c.h.b16 %v866
        %v1504 = vunpack.c.l.b16 %v867
        %v1505 = vunpack.c.h.b16 %v867
        %v1506 = vunpack.c.l.b16 %v868
        %v1507 = vunpack.c.h.b16 %v868
        %v1508 = vunpack.c.l.b16 %v869
        %v1509 = vunpack.c.h.b16 %v869
        %v1510 = vunpack.c.l.b16 %v870
        %v1511 = vunpack.c.h.b16 %v870
        %v1512 = vunpack.c.l.b16 %v871
        %v1513 = vunpack.c.h.b16 %v871
        %v1514 = vunpack.c.l.b16 %v872
        %v1515 = vunpack.c.h.b16 %v872
        %v1516 = vunpack.c.l.b16 %v873
        %v1517 = vunpack.c.h.b16 %v873
        %v1518 = vunpack.c.l.b16 %v874
        %v1519 = vunpack.c.h.b16 %v874
        %v1520 = vunpack.c.l.b16 %v875
        %v1521 = vunpack.c.h.b16 %v875
        %v1522 = vunpack.c.l.b16 %v876
        %v1523 = vunpack.c.h.b16 %v876
        %v1524 = vunpack.c.l.b16 %v877
        %v1525 = vunpack.c.h.b16 %v877
        %v1526 = vunpack.c.l.b16 %v878
        %v1527 = vunpack.c.h.b16 %v878
        %v1528 = vunpack.c.l.b16 %v879
        %v1529 = vunpack.c.h.b16 %v879
        %v1530 = vunpack.c.l.b16 %v880
        %v1531 = vunpack.c.h.b16 %v880
        %v1532 = vunpack.c.l.b16 %v881
        %v1533 = vunpack.c.h.b16 %v881
        %v1534 = vunpack.c.l.b16 %v882
        %v1535 = vunpack.c.h.b16 %v882
        %v1536 = vunpack.c.l.b16 %v883
        %v1537 = vunpack.c.h.b16 %v883
        %v1538 = vunpack.c.l.b16 %v884
        %v1539 = vunpack.c.h.b16 %v884
        %v1540 = vunpack.c.l.b16 %v885
        %v1541 = vunpack.c.h.b16 %v885
        %v1542 = vunpack.c.l.b16 %v886
        %v1543 = vunpack.c.h.b16 %v886
        %v1544 = vunpack.c.l.b16 %v887
        %v1545 = vunpack.c.h.b16 %v887
        %v1546 = vunpack.c.l.b16 %v888
        %v1547 = vunpack.c.h.b16 %v888
        %v1548 = vunpack.c.l.b16 %v889
        %v1549 = vunpack.c.h.b16 %v889
        %v1550 = vunpack.c.l.b16 %v890
        %v1551 = vunpack.c.h.b16 %v890
        %v1552 = vunpack.c.l.b16 %v891
        %v1553 = vunpack.c.h.b16 %v891
        %v1554 = vunpack.c.l.b16 %v892
        %v1555 = vunpack.c.h.b16 %v892
        %v1556 = vunpack.c.l.b16 %v893
        %v1557 = vunpack.c.h.b16 %v893
        %v1558 = vunpack.c.l.b16 %v894
        %v1559 = vunpack.c.h.b16 %v894
        %v1560 = vunpack.c.l.b16 %v895
        %v1561 = vunpack.c.h.b16 %v895
        %v1562 = vunpack.c.l.b16 %v896
        %v1563 = vunpack.c.h.b16 %v896
        %v1564 = vunpack.c.l.b16 %v897
        %v1565 = vunpack.c.h.b16 %v897
        %v1566 = vunpack.c.l.b16 %v898
        %v1567 = vunpack.c.h.b16 %v898
        %v1568 = vunpack.c.l.b16 %v899
        %v1569 = vunpack.c.h.b16 %v899
        %v1570 = vunpack.c.l.b16 %v900
        %v1571 = vunpack.c.h.b16 %v900
        %v1572 = vunpack.c.l.b16 %v901
        %v1573 = vunpack.c.h.b16 %v901
        %v1574 = vunpack.c.l.b16 %v902
        %v1575 = vunpack.c.h.b16 %v902
        %v1576 = vunpack.c.l.b16 %v903
        %v1577 = vunpack.c.h.b16 %v903
        %v1578 = vunpack.c.l.b16 %v904
        %v1579 = vunpack.c.h.b16 %v904
        %v1580 = vunpack.c.l.b16 %v905
        %v1581 = vunpack.c.h.b16 %v905
        %v1582 = vunpack.c.l.b16 %v906
        %v1583 = vunpack.c.h.b16 %v906
        %v1584 = vunpack.c.l.b16 %v907
        %v1585 = vunpack.c.h.b16 %v907
        %v1586 = vunpack.c.l.b16 %v908
        %v1587 = vunpack.c.h.b16 %v908
        %v1588 = vunpack.c.l.b16 %v909
        %v1589 = vunpack.c.h.b16 %v909
        %v1590 = vunpack.c.l.b16 %v910
        %v1591 = vunpack.c.h.b16 %v910
        %v1592 = vunpack.c.l.b16 %v911
        %v1593 = vunpack.c.h.b16 %v911
        %v1594 = vunpack.c.l.b16 %v912
        %v1595 = vunpack.c.h.b16 %v912
        %v1596 = vunpack.c.l.b16 %v913
        %v1597 = vunpack.c.h.b16 %v913
        %v1598 = vunpack.c.l.b16 %v914
        %v1599 = vunpack.c.h.b16 %v914
        %v1600 = vunpack.c.l.b16 %v915
        %v1601 = vunpack.c.h.b16 %v915
        %v1602 = vunpack.c.l.b16 %v916
        %v1603 = vunpack.c.h.b16 %v916
        %v1604 = vunpack.c.l.b16 %v917
        %v1605 = vunpack.c.h.b16 %v917
        %v1606 = vunpack.c.l.b16 %v918
        %v1607 = vunpack.c.h.b16 %v918
        %v1608 = vunpack.c.l.b16 %v919
        %v1609 = vunpack.c.h.b16 %v919
        %v1610 = vunpack.c.l.b16 %v920
        %v1611 = vunpack.c.h.b16 %v920
        %v1612 = vunpack.c.l.b16 %v921
        %v1613 = vunpack.c.h.b16 %v921
        %v1614 = vunpack.c.l.b16 %v922
        %v1615 = vunpack.c.h.b16 %v922
        %v1616 = vunpack.c.l.b16 %v923
        %v1617 = vunpack.c.h.b16 %v923
        %v1618 = vunpack.c.l.b16 %v924
        %v1619 = vunpack.c.h.b16 %v924
        %v1620 = vunpack.c.l.b16 %v925
        %v1621 = vunpack.c.h.b16 %v925
        %v1622 = vunpack.c.l.b16 %v926
        %v1623 = vunpack.c.h.b16 %v926
        %v1624 = vunpack.c.l.b16 %v927
        %v1625 = vunpack.c.h.b16 %v927
        %v1626 = vunpack.c.l.b16 %v928
        %v1627 = vunpack.c.h.b16 %v928
        %v1628 = vunpack.c.l.b16 %v929
        %v1629 = vunpack.c.h.b16 %v929
        %v1630 = vunpack.c.l.b16 %v930
        %v1631 = vunpack.c.h.b16 %v930
        %v1632 = vunpack.c.l.b16 %v931
        %v1633 = vunpack.c.h.b16 %v931
        %v1634 = vunpack.c.l.b16 %v932
        %v1635 = vunpack.c.h.b16 %v932
        %v1636 = vunpack.c.l.b16 %v933
        %v1637 = vunpack.c.h.b16 %v933
        %v1638 = vunpack.c.l.b16 %v934
        %v1639 = vunpack.c.h.b16 %v934
        %v1640 = vunpack.c.l.b16 %v935
        %v1641 = vunpack.c.h.b16 %v935
        %v1642 = vunpack.c.l.b16 %v936
        %v1643 = vunpack.c.h.b16 %v936
        %v1644 = vunpack.c.l.b16 %v937
        %v1645 = vunpack.c.h.b16 %v937
        %v1646 = vunpack.c.l.b16 %v938
        %v1647 = vunpack.c.h.b16 %v938
        %v1648 = vunpack.c.l.b16 %v939
        %v1649 = vunpack.c.h.b16 %v939
        %v1650 = vunpack.c.l.b16 %v940
        %v1651 = vunpack.c.h.b16 %v940
        %v1652 = vunpack.c.l.b16 %v941
        %v1653 = vunpack.c.h.b16 %v941
        %v1654 = vunpack.c.l.b16 %v942
        %v1655 = vunpack.c.h.b16 %v942
        %v1656 = vunpack.c.l.b16 %v943
        %v1657 = vunpack.c.h.b16 %v943
        %v1658 = vunpack.c.l.b16 %v944
        %v1659 = vunpack.c.h.b16 %v944
        %v1660 = vunpack.c.l.b16 %v945
        %v1661 = vunpack.c.h.b16 %v945
        %v1662 = vunpack.c.l.b16 %v946
        %v1663 = vunpack.c.h.b16 %v946
        %v1664 = vunpack.c.l.b16 %v947
        %v1665 = vunpack.c.h.b16 %v947
        %v1666 = vunpack.c.l.b16 %v948
        %v1667 = vunpack.c.h.b16 %v948
        %v1668 = vunpack.c.l.b16 %v949
        %v1669 = vunpack.c.h.b16 %v949
        %v1670 = vunpack.c.l.b16 %v950
        %v1671 = vunpack.c.h.b16 %v950
        %v1672 = vunpack.c.l.b16 %v951
        %v1673 = vunpack.c.h.b16 %v951
        %v1674 = vunpack.c.l.b16 %v952
        %v1675 = vunpack.c.h.b16 %v952
        %v1676 = vunpack.c.l.b16 %v953
        %v1677 = vunpack.c.h.b16 %v953
        %v1678 = vunpack.c.l.b16 %v954
        %v1679 = vunpack.c.h.b16 %v954
        %v1680 = vunpack.c.l.b16 %v955
        %v1681 = vunpack.c.h.b16 %v955
        %v1682 = vunpack.c.l.b16 %v956
        %v1683 = vunpack.c.h.b16 %v956
        %v1684 = vunpack.c.l.b16 %v957
        %v1685 = vunpack.c.h.b16 %v957
        %v1686 = vunpack.c.l.b16 %v958
        %v1687 = vunpack.c.h.b16 %v958
        %v1688 = vunpack.c.l.b16 %v959
        %v1689 = vunpack.c.h.b16 %v959
        %v1690 = vunpack.c.l.b16 %v960
        %v1691 = vunpack.c.h.b16 %v960
        %v1692 = vunpack.c.l.b16 %v961
        %v1693 = vunpack.c.h.b16 %v961
        %v1694 = vunpack.c.l.b16 %v962
        %v1695 = vunpack.c.h.b16 %v962
        %v1696 = vunpack.c.l.b16 %v963
        %v1697 = vunpack.c.h.b16 %v963
        %v1698 = vunpack.c.l.b16 %v964
        %v1699 = vunpack.c.h.b16 %v964
        %v1700 = vunpack.c.l.b16 %v965
        %v1701 = vunpack.c.h.b16 %v965
        %v1702 = vunpack.c.l.b16 %v966
        %v1703 = vunpack.c.h.b16 %v966
        %v1704 = vunpack.c.l.b16 %v967
        %v1705 = vunpack.c.h.b16 %v967
        %v1706 = vunpack.c.l.b16 %v968
        %v1707 = vunpack.c.h.b16 %v968
        %v1708 = vunpack.c.l.b16 %v969
        %v1709 = vunpack.c.h.b16 %v969
        %v1710 = vunpack.c.l.b16 %v970
        %v1711 = vunpack.c.h.b16 %v970
        %v1712 = vunpack.c.l.b16 %v971
        %v1713 = vunpack.c.h.b16 %v971
        %v1714 = vunpack.c.l.b16 %v972
        %v1715 = vunpack.c.h.b16 %v972
        %v1716 = vunpack.c.l.b16 %v973
        %v1717 = vunpack.c.h.b16 %v973
        %v1718 = vunpack.c.l.b16 %v974
        %v1719 = vunpack.c.h.b16 %v974
        %v1720 = vunpack.c.l.b16 %v975
        %v1721 = vunpack.c.h.b16 %v975
        %v1722 = vunpack.c.l.b16 %v976
        %v1723 = vunpack.c.h.b16 %v976
        %v1724 = vunpack.c.l.b16 %v977
        %v1725 = vunpack.c.h.b16 %v977
        %v1726 = vunpack.c.l.b16 %v978
        %v1727 = vunpack.c.h.b16 %v978
        %v1728 = vunpack.c.l.b16 %v979
        %v1729 = vunpack.c.h.b16 %v979
        %v1730 = vunpack.c.l.b16 %v980
        %v1731 = vunpack.c.h.b16 %v980
        %v1732 = vunpack.c.l.b16 %v981
        %v1733 = vunpack.c.h.b16 %v981
        %v1734 = vunpack.c.l.b16 %v982
        %v1735 = vunpack.c.h.b16 %v982
        %v1736 = vunpack.c.l.b16 %v983
        %v1737 = vunpack.c.h.b16 %v983
        %v1738 = vunpack.c.l.b16 %v984
        %v1739 = vunpack.c.h.b16 %v984
        %v1740 = vunpack.c.l.b16 %v985
        %v1741 = vunpack.c.h.b16 %v985
        %v1742 = vunpack.c.l.b16 %v986
        %v1743 = vunpack.c.h.b16 %v986
        %v1744 = vunpack.c.l.b16 %v987
        %v1745 = vunpack.c.h.b16 %v987
        %v1746 = vunpack.c.l.b16 %v988
        %v1747 = vunpack.c.h.b16 %v988
        %v1748 = vunpack.c.l.b16 %v989
        %v1749 = vunpack.c.h.b16 %v989
        %v1750 = vunpack.c.l.b16 %v990
        %v1751 = vunpack.c.h.b16 %v990
        %v1752 = vunpack.c.l.b16 %v991
        %v1753 = vunpack.c.h.b16 %v991
        %v1754 = vunpack.c.l.b16 %v992
        %v1755 = vunpack.c.h.b16 %v992
        %v1756 = vunpack.c.l.b16 %v993
        %v1757 = vunpack.c.h.b16 %v993
        %v1758 = vunpack.c.l.b16 %v994
        %v1759 = vunpack.c.h.b16 %v994
        %v1760 = vunpack.c.l.b16 %v995
        %v1761 = vunpack.c.h.b16 %v995
        %v1762 = vunpack.c.l.b16 %v996
        %v1763 = vunpack.c.h.b16 %v996
        %v1764 = vunpack.c.l.b16 %v997
        %v1765 = vunpack.c.h.b16 %v997
        %v1766 = vunpack.c.l.b16 %v998
        %v1767 = vunpack.c.h.b16 %v998
        %v1768 = vunpack.c.l.b16 %v999
        %v1769 = vunpack.c.h.b16 %v999
        %v1770 = vunpack.c.l.b16 %v1000
        %v1771 = vunpack.c.h.b16 %v1000
        %v1772 = vunpack.c.l.b16 %v1001
        %v1773 = vunpack.c.h.b16 %v1001
        %v1774 = vunpack.c.l.b16 %v1002
        %v1775 = vunpack.c.h.b16 %v1002
        %v1776 = vunpack.c.l.b16 %v1003
        %v1777 = vunpack.c.h.b16 %v1003
        %v1778 = vunpack.c.l.b16 %v1004
        %v1779 = vunpack.c.h.b16 %v1004
        %v1780 = vunpack.c.l.b16 %v1005
        %v1781 = vunpack.c.h.b16 %v1005
        %v1782 = vunpack.c.l.b16 %v1006
        %v1783 = vunpack.c.h.b16 %v1006
        %v1784 = vunpack.c.l.b16 %v1007
        %v1785 = vunpack.c.h.b16 %v1007
        %v1786 = vunpack.c.l.b16 %v1008
        %v1787 = vunpack.c.h.b16 %v1008
        %v1788 = vunpack.c.l.b16 %v1009
        %v1789 = vunpack.c.h.b16 %v1009
        %v1790 = vunpack.c.l.b16 %v1010
        %v1791 = vunpack.c.h.b16 %v1010
        %v1792 = vunpack.c.l.b16 %v1011
        %v1793 = vunpack.c.h.b16 %v1011
        %v1794 = vpack.c.b16 %v1290, %v1282
        %v1795 = vpack.c.b16 %v1291, %v1283
        %v1796 = vpack.c.b16 %v1292, %v1284
        %v1797 = vpack.c.b16 %v1293, %v1285
        %v1798 = vpack.c.b16 %v1294, %v1286
        %v1799 = vpack.c.b16 %v1295, %v1287
        %v1800 = vpack.c.b16 %v1296, %v1288
        %v1801 = vpack.c.b16 %v1297, %v1289
        %v1802 = vpack.c.b16 %v1306, %v1298
        %v1803 = vpack.c.b16 %v1307, %v1299
        %v1804 = vpack.c.b16 %v1308, %v1300
        %v1805 = vpack.c.b16 %v1309, %v1301
        %v1806 = vpack.c.b16 %v1310, %v1302
        %v1807 = vpack.c.b16 %v1311, %v1303
        %v1808 = vpack.c.b16 %v1312, %v1304
        %v1809 = vpack.c.b16 %v1313, %v1305
        %v1810 = vpack.c.b16 %v1322, %v1314
        %v1811 = vpack.c.b16 %v1323, %v1315
        %v1812 = vpack.c.b16 %v1324, %v1316
        %v1813 = vpack.c.b16 %v1325, %v1317
        %v1814 = vpack.c.b16 %v1326, %v1318
        %v1815 = vpack.c.b16 %v1327, %v1319
        %v1816 = vpack.c.b16 %v1328, %v1320
        %v1817 = vpack.c.b16 %v1329, %v1321
        %v1818 = vpack.c.b16 %v1338, %v1330
        %v1819 = vpack.c.b16 %v1339, %v1331
        %v1820 = vpack.c.b16 %v1340, %v1332
        %v1821 = vpack.c.b16 %v1341, %v1333
        %v1822 = vpack.c.b16 %v1342, %v1334
        %v1823 = vpack.c.b16 %v1343, %v1335
        %v1824 = vpack.c.b16 %v1344, %v1336
        %v1825 = vpack.c.b16 %v1345, %v1337
        %v1826 = vpack.c.b16 %v1354, %v1346
        %v1827 = vpack.c.b16 %v1355, %v1347
        %v1828 = vpack.c.b16 %v1356, %v1348
        %v1829 = vpack.c.b16 %v1357, %v1349
        %v1830 = vpack.c.b16 %v1358, %v1350
        %v1831 = vpack.c.b16 %v1359, %v1351
        %v1832 = vpack.c.b16 %v1360, %v1352
        %v1833 = vpack.c.b16 %v1361, %v1353
        %v1834 = vpack.c.b16 %v1370, %v1362
        %v1835 = vpack.c.b16 %v1371, %v1363
        %v1836 = vpack.c.b16 %v1372, %v1364
        %v1837 = vpack.c.b16 %v1373, %v1365
        %v1838 = vpack.c.b16 %v1374, %v1366
        %v1839 = vpack.c.b16 %v1375, %v1367
        %v1840 = vpack.c.b16 %v1376, %v1368
        %v1841 = vpack.c.b16 %v1377, %v1369
        %v1842 = vpack.c.b16 %v1386, %v1378
        %v1843 = vpack.c.b16 %v1387, %v1379
        %v1844 = vpack.c.b16 %v1388, %v1380
        %v1845 = vpack.c.b16 %v1389, %v1381
        %v1846 = vpack.c.b16 %v1390, %v1382
        %v1847 = vpack.c.b16 %v1391, %v1383
        %v1848 = vpack.c.b16 %v1392, %v1384
        %v1849 = vpack.c.b16 %v1393, %v1385
        %v1850 = vpack.c.b16 %v1402, %v1394
        %v1851 = vpack.c.b16 %v1403, %v1395
        %v1852 = vpack.c.b16 %v1404, %v1396
        %v1853 = vpack.c.b16 %v1405, %v1397
        %v1854 = vpack.c.b16 %v1406, %v1398
        %v1855 = vpack.c.b16 %v1407, %v1399
        %v1856 = vpack.c.b16 %v1408, %v1400
        %v1857 = vpack.c.b16 %v1409, %v1401
        %v1858 = vpack.c.b16 %v1418, %v1410
        %v1859 = vpack.c.b16 %v1419, %v1411
        %v1860 = vpack.c.b16 %v1420, %v1412
        %v1861 = vpack.c.b16 %v1421, %v1413
        %v1862 = vpack.c.b16 %v1422, %v1414
        %v1863 = vpack.c.b16 %v1423, %v1415
        %v1864 = vpack.c.b16 %v1424, %v1416
        %v1865 = vpack.c.b16 %v1425, %v1417
        %v1866 = vpack.c.b16 %v1434, %v1426
        %v1867 = vpack.c.b16 %v1435, %v1427
        %v1868 = vpack.c.b16 %v1436, %v1428
        %v1869 = vpack.c.b16 %v1437, %v1429
        %v1870 = vpack.c.b16 %v1438, %v1430
        %v1871 = vpack.c.b16 %v1439, %v1431
        %v1872 = vpack.c.b16 %v1440, %v1432
        %v1873 = vpack.c.b16 %v1441, %v1433
        %v1874 = vpack.c.b16 %v1450, %v1442
        %v1875 = vpack.c.b16 %v1451, %v1443
        %v1876 = vpack.c.b16 %v1452, %v1444
        %v1877 = vpack.c.b16 %v1453, %v1445
        %v1878 = vpack.c.b16 %v1454, %v1446
        %v1879 = vpack.c.b16 %v1455, %v1447
        %v1880 = vpack.c.b16 %v1456, %v1448
        %v1881 = vpack.c.b16 %v1457, %v1449
        %v1882 = vpack.c.b16 %v1466, %v1458
        %v1883 = vpack.c.b16 %v1467, %v1459
        %v1884 = vpack.c.b16 %v1468, %v1460
        %v1885 = vpack.c.b16 %v1469, %v1461
        %v1886 = vpack.c.b16 %v1470, %v1462
        %v1887 = vpack.c.b16 %v1471, %v1463
        %v1888 = vpack.c.b16 %v1472, %v1464
        %v1889 = vpack.c.b16 %v1473, %v1465
        %v1890 = vpack.c.b16 %v1482, %v1474
        %v1891 = vpack.c.b16 %v1483, %v1475
        %v1892 = vpack.c.b16 %v1484, %v1476
        %v1893 = vpack.c.b16 %v1485, %v1477
        %v1894 = vpack.c.b16 %v1486, %v1478
        %v1895 = vpack.c.b16 %v1487, %v1479
        %v1896 = vpack.c.b16 %v1488, %v1480
        %v1897 = vpack.c.b16 %v1489, %v1481
        %v1898 = vpack.c.b16 %v1498, %v1490
        %v1899 = vpack.c.b16 %v1499, %v1491
        %v1900 = vpack.c.b16 %v1500, %v1492
        %v1901 = vpack.c.b16 %v1501, %v1493
        %v1902 = vpack.c.b16 %v1502, %v1494
        %v1903 = vpack.c.b16 %v1503, %v1495
        %v1904 = vpack.c.b16 %v1504, %v1496
        %v1905 = vpack.c.b16 %v1505, %v1497
        %v1906 = vpack.c.b16 %v1514, %v1506
        %v1907 = vpack.c.b16 %v1515, %v1507
        %v1908 = vpack.c.b16 %v1516, %v1508
        %v1909 = vpack.c.b16 %v1517, %v1509
        %v1910 = vpack.c.b16 %v1518, %v1510
        %v1911 = vpack.c.b16 %v1519, %v1511
        %v1912 = vpack.c.b16 %v1520, %v1512
        %v1913 = vpack.c.b16 %v1521, %v1513
        %v1914 = vpack.c.b16 %v1530, %v1522
        %v1915 = vpack.c.b16 %v1531, %v1523
        %v1916 = vpack.c.b16 %v1532, %v1524
        %v1917 = vpack.c.b16 %v1533, %v1525
        %v1918 = vpack.c.b16 %v1534, %v1526
        %v1919 = vpack.c.b16 %v1535, %v1527
        %v1920 = vpack.c.b16 %v1536, %v1528
        %v1921 = vpack.c.b16 %v1537, %v1529
        %v1922 = vpack.c.b16 %v1546, %v1538
        %v1923 = vpack.c.b16 %v1547, %v1539
        %v1924 = vpack.c.b16 %v1548, %v1540
        %v1925 = vpack.c.b16 %v1549, %v1541
        %v1926 = vpack.c.b16 %v1550, %v1542
        %v1927 = vpack.c.b16 %v1551, %v1543
        %v1928 = vpack.c.b16 %v1552, %v1544
        %v1929 = vpack.c.b16 %v1553, %v1545
        %v1930 = vpack.c.b16 %v1562, %v1554
        %v1931 = vpack.c.b16 %v1563, %v1555
        %v1932 = vpack.c.b16 %v1564, %v1556
        %v1933 = vpack.c.b16 %v1565, %v1557
        %v1934 = vpack.c.b16 %v1566, %v1558
        %v1935 = vpack.c.b16 %v1567, %v1559
        %v1936 = vpack.c.b16 %v1568, %v1560
        %v1937 = vpack.c.b16 %v1569, %v1561
        %v1938 = vpack.c.b16 %v1578, %v1570
        %v1939 = vpack.c.b16 %v1579, %v1571
        %v1940 = vpack.c.b16 %v1580, %v1572
        %v1941 = vpack.c.b16 %v1581, %v1573
        %v1942 = vpack.c.b16 %v1582, %v1574
        %v1943 = vpack.c.b16 %v1583, %v1575
        %v1944 = vpack.c.b16 %v1584, %v1576
        %v1945 = vpack.c.b16 %v1585, %v1577
        %v1946 = vpack.c.b16 %v1594, %v1586
        %v1947 = vpack.c.b16 %v1595, %v1587
        %v1948 = vpack.c.b16 %v1596, %v1588
        %v1949 = vpack.c.b16 %v1597, %v1589
        %v1950 = vpack.c.b16 %v1598, %v1590
        %v1951 = vpack.c.b16 %v1599, %v1591
        %v1952 = vpack.c.b16 %v1600, %v1592
        %v1953 = vpack.c.b16 %v1601, %v1593
        %v1954 = vpack.c.b16 %v1610, %v1602
        %v1955 = vpack.c.b16 %v1611, %v1603
        %v1956 = vpack.c.b16 %v1612, %v1604
        %v1957 = vpack.c.b16 %v1613, %v1605
        %v1958 = vpack.c.b16 %v1614, %v1606
        %v1959 = vpack.c.b16 %v1615, %v1607
        %v1960 = vpack.c.b16 %v1616, %v1608
        %v1961 = vpack.c.b16 %v1617, %v1609
        %v1962 = vpack.c.b16 %v1626, %v1618
        %v1963 = vpack.c.b16 %v1627, %v1619
        %v1964 = vpack.c.b16 %v1628, %v1620
        %v1965 = vpack.c.b16 %v1629, %v1621
        %v1966 = vpack.c.b16 %v1630, %v1622
        %v1967 = vpack.c.b16 %v1631, %v1623
        %v1968 = vpack.c.b16 %v1632, %v1624
        %v1969 = vpack.c.b16 %v1633, %v1625
        %v1970 = vpack.c.b16 %v1642, %v1634
        %v1971 = vpack.c.b16 %v1643, %v1635
        %v1972 = vpack.c.b16 %v1644, %v1636
        %v1973 = vpack.c.b16 %v1645, %v1637
        %v1974 = vpack.c.b16 %v1646, %v1638
        %v1975 = vpack.c.b16 %v1647, %v1639
        %v1976 = vpack.c.b16 %v1648, %v1640
        %v1977 = vpack.c.b16 %v1649, %v1641
        %v1978 = vpack.c.b16 %v1658, %v1650
        %v1979 = vpack.c.b16 %v1659, %v1651
        %v1980 = vpack.c.b16 %v1660, %v1652
        %v1981 = vpack.c.b16 %v1661, %v1653
        %v1982 = vpack.c.b16 %v1662, %v1654
        %v1983 = vpack.c.b16 %v1663, %v1655
        %v1984 = vpack.c.b16 %v1664, %v1656
        %v1985 = vpack.c.b16 %v1665, %v1657
        %v1986 = vpack.c.b16 %v1674, %v1666
        %v1987 = vpack.c.b16 %v1675, %v1667
        %v1988 = vpack.c.b16 %v1676, %v1668
        %v1989 = vpack.c.b16 %v1677, %v1669
        %v1990 = vpack.c.b16 %v1678, %v1670
        %v1991 = vpack.c.b16 %v1679, %v1671
        %v1992 = vpack.c.b16 %v1680, %v1672
        %v1993 = vpack.c.b16 %v1681, %v1673
        %v1994 = vpack.c.b16 %v1690, %v1682
        %v1995 = vpack.c.b16 %v1691, %v1683
        %v1996 = vpack.c.b16 %v1692, %v1684
        %v1997 = vpack.c.b16 %v1693, %v1685
        %v1998 = vpack.c.b16 %v1694, %v1686
        %v1999 = vpack.c.b16 %v1695, %v1687
        %v2000 = vpack.c.b16 %v1696, %v1688
        %v2001 = vpack.c.b16 %v1697, %v1689
        %v2002 = vpack.c.b16 %v1706, %v1698
        %v2003 = vpack.c.b16 %v1707, %v1699
        %v2004 = vpack.c.b16 %v1708, %v1700
        %v2005 = vpack.c.b16 %v1709, %v1701
        %v2006 = vpack.c.b16 %v1710, %v1702
        %v2007 = vpack.c.b16 %v1711, %v1703
        %v2008 = vpack.c.b16 %v1712, %v1704
        %v2009 = vpack.c.b16 %v1713, %v1705
        %v2010 = vpack.c.b16 %v1722, %v1714
        %v2011 = vpack.c.b16 %v1723, %v1715
        %v2012 = vpack.c.b16 %v1724, %v1716
        %v2013 = vpack.c.b16 %v1725, %v1717
        %v2014 = vpack.c.b16 %v1726, %v1718
        %v2015 = vpack.c.b16 %v1727, %v1719
        %v2016 = vpack.c.b16 %v1728, %v1720
        %v2017 = vpack.c.b16 %v1729, %v1721
        %v2018 = vpack.c.b16 %v1738, %v1730
        %v2019 = vpack.c.b16 %v1739, %v1731
        %v2020 = vpack.c.b16 %v1740, %v1732
        %v2021 = vpack.c.b16 %v1741, %v1733
        %v2022 = vpack.c.b16 %v1742, %v1734
        %v2023 = vpack.c.b16 %v1743, %v1735
        %v2024 = vpack.c.b16 %v1744, %v1736
        %v2025 = vpack.c.b16 %v1745, %v1737
        %v2026 = vpack.c.b16 %v1754, %v1746
        %v2027 = vpack.c.b16 %v1755, %v1747
        %v2028 = vpack.c.b16 %v1756, %v1748
        %v2029 = vpack.c.b16 %v1757, %v1749
        %v2030 = vpack.c.b16 %v1758, %v1750
        %v2031 = vpack.c.b16 %v1759, %v1751
        %v2032 = vpack.c.b16 %v1760, %v1752
        %v2033 = vpack.c.b16 %v1761, %v1753
        %v2034 = vpack.c.b16 %v1770, %v1762
        %v2035 = vpack.c.b16 %v1771, %v1763
        %v2036 = vpack.c.b16 %v1772, %v1764
        %v2037 = vpack.c.b16 %v1773, %v1765
        %v2038 = vpack.c.b16 %v1774, %v1766
        %v2039 = vpack.c.b16 %v1775, %v1767
        %v2040 = vpack.c.b16 %v1776, %v1768
        %v2041 = vpack.c.b16 %v1777, %v1769
        %v2042 = vpack.c.b16 %v1786, %v1778
        %v2043 = vpack.c.b16 %v1787, %v1779
        %v2044 = vpack.c.b16 %v1788, %v1780
        %v2045 = vpack.c.b16 %v1789, %v1781
        %v2046 = vpack.c.b16 %v1790, %v1782
        %v2047 = vpack.c.b16 %v1791, %v1783
        %v2048 = vpack.c.b16 %v1792, %v1784
        %v2049 = vpack.c.b16 %v1793, %v1785
        %2306 = vmatprep.subr.bf16.mxu0 %v1795
        %2307 = vmatpush1.bf16.msra.mxu0 %v1794
        %2308 = vmatprep.subr.bf16.mxu0 %v1803
        %2309 = vmatpush1.bf16.msra.mxu0 %v1802
        %2310 = vmatprep.subr.bf16.mxu0 %v1811
        %2311 = vmatpush1.bf16.msra.mxu0 %v1810
        %2312 = vmatprep.subr.bf16.mxu0 %v1819
        %2313 = vmatpush1.bf16.msra.mxu0 %v1818
        %2314 = vmatprep.subr.bf16.mxu0 %v1827
        %2315 = vmatpush1.bf16.msra.mxu0 %v1826
        %2316 = vmatprep.subr.bf16.mxu0 %v1835
        %2317 = vmatpush1.bf16.msra.mxu0 %v1834
        %2318 = vmatprep.subr.bf16.mxu0 %v1843
        %2319 = vmatpush1.bf16.msra.mxu0 %v1842
        %2320 = vmatprep.subr.bf16.mxu0 %v1851
        %2321 = vmatpush1.bf16.msra.mxu0 %v1850
        %2322 = vmatprep.subr.bf16.mxu0 %v1859
        %2323 = vmatpush1.bf16.msra.mxu0 %v1858
        %2324 = vmatprep.subr.bf16.mxu0 %v1867
        %2325 = vmatpush1.bf16.msra.mxu0 %v1866
        %2326 = vmatprep.subr.bf16.mxu0 %v1875
        %2327 = vmatpush1.bf16.msra.mxu0 %v1874
        %2328 = vmatprep.subr.bf16.mxu0 %v1883
        %2329 = vmatpush1.bf16.msra.mxu0 %v1882
        %2330 = vmatprep.subr.bf16.mxu0 %v1891
        %2331 = vmatpush1.bf16.msra.mxu0 %v1890
        %2332 = vmatprep.subr.bf16.mxu0 %v1899
        %2333 = vmatpush1.bf16.msra.mxu0 %v1898
        %2334 = vmatprep.subr.bf16.mxu0 %v1907
        %2335 = vmatpush1.bf16.msra.mxu0 %v1906
        %2336 = vmatprep.subr.bf16.mxu0 %v1915
        %2337 = vmatpush1.bf16.msra.mxu0 %v1914
        %2338 = vmatprep.mubr.bf16.mxu0 %v1019
        %2339 = vmatmul.mubr.bf16.gmra.mrb[0].mxu0 %v1018
        %v2340 = vpop.f32.mrb[0].mxu0
        %v2341 = vadd.f32 0.0, %v2340
        %v2342 = vpop.f32.mrb[0].mxu0
        %v2343 = vadd.f32 0.0, %v2342
        %v2344 = vpop.f32.mrb[0].mxu0
        %v2345 = vpop.f32.mrb[0].mxu0
        %2346 = vdwg.mxu0
        %2347 = vmatprep.subr.bf16.mxu0 %v1923
        %2348 = vmatpush1.bf16.msra.mxu0 %v1922
        %2349 = vmatprep.subr.bf16.mxu0 %v1931
        %2350 = vmatpush1.bf16.msra.mxu0 %v1930
        %2351 = vmatprep.subr.bf16.mxu0 %v1939
        %2352 = vmatpush1.bf16.msra.mxu0 %v1938
        %2353 = vmatprep.subr.bf16.mxu0 %v1947
        %2354 = vmatpush1.bf16.msra.mxu0 %v1946
        %2355 = vmatprep.subr.bf16.mxu0 %v1955
        %2356 = vmatpush1.bf16.msra.mxu0 %v1954
        %2357 = vmatprep.subr.bf16.mxu0 %v1963
        %2358 = vmatpush1.bf16.msra.mxu0 %v1962
        %2359 = vmatprep.subr.bf16.mxu0 %v1971
        %2360 = vmatpush1.bf16.msra.mxu0 %v1970
        %2361 = vmatprep.subr.bf16.mxu0 %v1979
        %2362 = vmatpush1.bf16.msra.mxu0 %v1978
        %2363 = vmatprep.subr.bf16.mxu0 %v1987
        %2364 = vmatpush1.bf16.msra.mxu0 %v1986
        %2365 = vmatprep.subr.bf16.mxu0 %v1995
        %2366 = vmatpush1.bf16.msra.mxu0 %v1994
        %2367 = vmatprep.subr.bf16.mxu0 %v2003
        %2368 = vmatpush1.bf16.msra.mxu0 %v2002
        %2369 = vmatprep.subr.bf16.mxu0 %v2011
        %2370 = vmatpush1.bf16.msra.mxu0 %v2010
        %2371 = vmatprep.subr.bf16.mxu0 %v2019
        %2372 = vmatpush1.bf16.msra.mxu0 %v2018
        %2373 = vmatprep.subr.bf16.mxu0 %v2027
        %2374 = vmatpush1.bf16.msra.mxu0 %v2026
        %2375 = vmatprep.subr.bf16.mxu0 %v2035
        %2376 = vmatpush1.bf16.msra.mxu0 %v2034
        %2377 = vmatprep.subr.bf16.mxu0 %v2043
        %2378 = vmatpush1.bf16.msra.mxu0 %v2042
        %2379 = vmatprep.mubr.bf16.mxu0 %v1021
        %2380 = vmatmul.mubr.bf16.gmra.mrb[0].mxu0 %v1020
        %v2381 = vpop.f32.mrb[0].mxu0
        %v2382 = vadd.f32 %v2341, %v2381
        %v2383 = vpop.f32.mrb[0].mxu0
        %v2384 = vadd.f32 %v2343, %v2383
        %v2385 = vpop.f32.mrb[0].mxu0
        %v2386 = vpop.f32.mrb[0].mxu0
        %2387 = vdwg.mxu0
        %2388 = vmatprep.subr.bf16.mxu0 %v1797
        %2389 = vmatpush1.bf16.msra.mxu0 %v1796
        %2390 = vmatprep.subr.bf16.mxu0 %v1805
        %2391 = vmatpush1.bf16.msra.mxu0 %v1804
        %2392 = vmatprep.subr.bf16.mxu0 %v1813
        %2393 = vmatpush1.bf16.msra.mxu0 %v1812
        %2394 = vmatprep.subr.bf16.mxu0 %v1821
        %2395 = vmatpush1.bf16.msra.mxu0 %v1820
        %2396 = vmatprep.subr.bf16.mxu0 %v1829
        %2397 = vmatpush1.bf16.msra.mxu0 %v1828
        %2398 = vmatprep.subr.bf16.mxu0 %v1837
        %2399 = vmatpush1.bf16.msra.mxu0 %v1836
        %2400 = vmatprep.subr.bf16.mxu0 %v1845
        %2401 = vmatpush1.bf16.msra.mxu0 %v1844
        %2402 = vmatprep.subr.bf16.mxu0 %v1853
        %2403 = vmatpush1.bf16.msra.mxu0 %v1852
        %2404 = vmatprep.subr.bf16.mxu0 %v1861
        %2405 = vmatpush1.bf16.msra.mxu0 %v1860
        %2406 = vmatprep.subr.bf16.mxu0 %v1869
        %2407 = vmatpush1.bf16.msra.mxu0 %v1868
        %2408 = vmatprep.subr.bf16.mxu0 %v1877
        %2409 = vmatpush1.bf16.msra.mxu0 %v1876
        %2410 = vmatprep.subr.bf16.mxu0 %v1885
        %2411 = vmatpush1.bf16.msra.mxu0 %v1884
        %2412 = vmatprep.subr.bf16.mxu0 %v1893
        %2413 = vmatpush1.bf16.msra.mxu0 %v1892
        %2414 = vmatprep.subr.bf16.mxu0 %v1901
        %2415 = vmatpush1.bf16.msra.mxu0 %v1900
        %2416 = vmatprep.subr.bf16.mxu0 %v1909
        %2417 = vmatpush1.bf16.msra.mxu0 %v1908
        %2418 = vmatprep.subr.bf16.mxu0 %v1917
        %2419 = vmatpush1.bf16.msra.mxu0 %v1916
        %2420 = vmatprep.mubr.bf16.mxu0 %v1019
        %2421 = vmatmul.mubr.bf16.gmra.mrb[0].mxu0 %v1018
        %v2422 = vpop.f32.mrb[0].mxu0
        %v2423 = vadd.f32 0.0, %v2422
        %v2424 = vpop.f32.mrb[0].mxu0
        %v2425 = vadd.f32 0.0, %v2424
        %v2426 = vpop.f32.mrb[0].mxu0
        %v2427 = vpop.f32.mrb[0].mxu0
        %2428 = vdwg.mxu0
        %2429 = vmatprep.subr.bf16.mxu0 %v1925
        %2430 = vmatpush1.bf16.msra.mxu0 %v1924
        %2431 = vmatprep.subr.bf16.mxu0 %v1933
        %2432 = vmatpush1.bf16.msra.mxu0 %v1932
        %2433 = vmatprep.subr.bf16.mxu0 %v1941
        %2434 = vmatpush1.bf16.msra.mxu0 %v1940
        %2435 = vmatprep.subr.bf16.mxu0 %v1949
        %2436 = vmatpush1.bf16.msra.mxu0 %v1948
        %2437 = vmatprep.subr.bf16.mxu0 %v1957
        %2438 = vmatpush1.bf16.msra.mxu0 %v1956
        %2439 = vmatprep.subr.bf16.mxu0 %v1965
        %2440 = vmatpush1.bf16.msra.mxu0 %v1964
        %2441 = vmatprep.subr.bf16.mxu0 %v1973
        %2442 = vmatpush1.bf16.msra.mxu0 %v1972
        %2443 = vmatprep.subr.bf16.mxu0 %v1981
        %2444 = vmatpush1.bf16.msra.mxu0 %v1980
        %2445 = vmatprep.subr.bf16.mxu0 %v1989
        %2446 = vmatpush1.bf16.msra.mxu0 %v1988
        %2447 = vmatprep.subr.bf16.mxu0 %v1997
        %2448 = vmatpush1.bf16.msra.mxu0 %v1996
        %2449 = vmatprep.subr.bf16.mxu0 %v2005
        %2450 = vmatpush1.bf16.msra.mxu0 %v2004
        %2451 = vmatprep.subr.bf16.mxu0 %v2013
        %2452 = vmatpush1.bf16.msra.mxu0 %v2012
        %2453 = vmatprep.subr.bf16.mxu0 %v2021
        %2454 = vmatpush1.bf16.msra.mxu0 %v2020
        %2455 = vmatprep.subr.bf16.mxu0 %v2029
        %2456 = vmatpush1.bf16.msra.mxu0 %v2028
        %2457 = vmatprep.subr.bf16.mxu0 %v2037
        %2458 = vmatpush1.bf16.msra.mxu0 %v2036
        %2459 = vmatprep.subr.bf16.mxu0 %v2045
        %2460 = vmatpush1.bf16.msra.mxu0 %v2044
        %2461 = vmatprep.mubr.bf16.mxu0 %v1021
        %2462 = vmatmul.mubr.bf16.gmra.mrb[0].mxu0 %v1020
        %v2463 = vpop.f32.mrb[0].mxu0
        %v2464 = vadd.f32 %v2423, %v2463
        %v2465 = vpop.f32.mrb[0].mxu0
        %v2466 = vadd.f32 %v2425, %v2465
        %v2467 = vpop.f32.mrb[0].mxu0
        %v2468 = vpop.f32.mrb[0].mxu0
        %2469 = vdwg.mxu0
        %2470 = vmatprep.subr.bf16.mxu0 %v1799
        %2471 = vmatpush1.bf16.msra.mxu0 %v1798
        %2472 = vmatprep.subr.bf16.mxu0 %v1807
        %2473 = vmatpush1.bf16.msra.mxu0 %v1806
        %2474 = vmatprep.subr.bf16.mxu0 %v1815
        %2475 = vmatpush1.bf16.msra.mxu0 %v1814
        %2476 = vmatprep.subr.bf16.mxu0 %v1823
        %2477 = vmatpush1.bf16.msra.mxu0 %v1822
        %2478 = vmatprep.subr.bf16.mxu0 %v1831
        %2479 = vmatpush1.bf16.msra.mxu0 %v1830
        %2480 = vmatprep.subr.bf16.mxu0 %v1839
        %2481 = vmatpush1.bf16.msra.mxu0 %v1838
        %2482 = vmatprep.subr.bf16.mxu0 %v1847
        %2483 = vmatpush1.bf16.msra.mxu0 %v1846
        %2484 = vmatprep.subr.bf16.mxu0 %v1855
        %2485 = vmatpush1.bf16.msra.mxu0 %v1854
        %2486 = vmatprep.subr.bf16.mxu0 %v1863
        %2487 = vmatpush1.bf16.msra.mxu0 %v1862
        %2488 = vmatprep.subr.bf16.mxu0 %v1871
        %2489 = vmatpush1.bf16.msra.mxu0 %v1870
        %2490 = vmatprep.subr.bf16.mxu0 %v1879
        %2491 = vmatpush1.bf16.msra.mxu0 %v1878
        %2492 = vmatprep.subr.bf16.mxu0 %v1887
        %2493 = vmatpush1.bf16.msra.mxu0 %v1886
        %2494 = vmatprep.subr.bf16.mxu0 %v1895
        %2495 = vmatpush1.bf16.msra.mxu0 %v1894
        %2496 = vmatprep.subr.bf16.mxu0 %v1903
        %2497 = vmatpush1.bf16.msra.mxu0 %v1902
        %2498 = vmatprep.subr.bf16.mxu0 %v1911
        %2499 = vmatpush1.bf16.msra.mxu0 %v1910
        %2500 = vmatprep.subr.bf16.mxu0 %v1919
        %2501 = vmatpush1.bf16.msra.mxu0 %v1918
        %2502 = vmatprep.mubr.bf16.mxu0 %v1019
        %2503 = vmatmul.mubr.bf16.gmra.mrb[0].mxu0 %v1018
        %v2504 = vpop.f32.mrb[0].mxu0
        %v2505 = vadd.f32 0.0, %v2504
        %v2506 = vpop.f32.mrb[0].mxu0
        %v2507 = vadd.f32 0.0, %v2506
        %v2508 = vpop.f32.mrb[0].mxu0
        %v2509 = vpop.f32.mrb[0].mxu0
        %2510 = vdwg.mxu0
        %2511 = vmatprep.subr.bf16.mxu0 %v1927
        %2512 = vmatpush1.bf16.msra.mxu0 %v1926
        %2513 = vmatprep.subr.bf16.mxu0 %v1935
        %2514 = vmatpush1.bf16.msra.mxu0 %v1934
        %2515 = vmatprep.subr.bf16.mxu0 %v1943
        %2516 = vmatpush1.bf16.msra.mxu0 %v1942
        %2517 = vmatprep.subr.bf16.mxu0 %v1951
        %2518 = vmatpush1.bf16.msra.mxu0 %v1950
        %2519 = vmatprep.subr.bf16.mxu0 %v1959
        %2520 = vmatpush1.bf16.msra.mxu0 %v1958
        %2521 = vmatprep.subr.bf16.mxu0 %v1967
        %2522 = vmatpush1.bf16.msra.mxu0 %v1966
        %2523 = vmatprep.subr.bf16.mxu0 %v1975
        %2524 = vmatpush1.bf16.msra.mxu0 %v1974
        %2525 = vmatprep.subr.bf16.mxu0 %v1983
        %2526 = vmatpush1.bf16.msra.mxu0 %v1982
        %2527 = vmatprep.subr.bf16.mxu0 %v1991
        %2528 = vmatpush1.bf16.msra.mxu0 %v1990
        %2529 = vmatprep.subr.bf16.mxu0 %v1999
        %2530 = vmatpush1.bf16.msra.mxu0 %v1998
        %2531 = vmatprep.subr.bf16.mxu0 %v2007
        %2532 = vmatpush1.bf16.msra.mxu0 %v2006
        %2533 = vmatprep.subr.bf16.mxu0 %v2015
        %2534 = vmatpush1.bf16.msra.mxu0 %v2014
        %2535 = vmatprep.subr.bf16.mxu0 %v2023
        %2536 = vmatpush1.bf16.msra.mxu0 %v2022
        %2537 = vmatprep.subr.bf16.mxu0 %v2031
        %2538 = vmatpush1.bf16.msra.mxu0 %v2030
        %2539 = vmatprep.subr.bf16.mxu0 %v2039
        %2540 = vmatpush1.bf16.msra.mxu0 %v2038
        %2541 = vmatprep.subr.bf16.mxu0 %v2047
        %2542 = vmatpush1.bf16.msra.mxu0 %v2046
        %2543 = vmatprep.mubr.bf16.mxu0 %v1021
        %2544 = vmatmul.mubr.bf16.gmra.mrb[0].mxu0 %v1020
        %v2545 = vpop.f32.mrb[0].mxu0
        %v2546 = vadd.f32 %v2505, %v2545
        %v2547 = vpop.f32.mrb[0].mxu0
        %v2548 = vadd.f32 %v2507, %v2547
        %v2549 = vpop.f32.mrb[0].mxu0
        %v2550 = vpop.f32.mrb[0].mxu0
        %2551 = vdwg.mxu0
        %2552 = vmatprep.subr.bf16.mxu0 %v1801
        %2553 = vmatpush1.bf16.msra.mxu0 %v1800
        %2554 = vmatprep.subr.bf16.mxu0 %v1809
        %2555 = vmatpush1.bf16.msra.mxu0 %v1808
        %2556 = vmatprep.subr.bf16.mxu0 %v1817
        %2557 = vmatpush1.bf16.msra.mxu0 %v1816
        %2558 = vmatprep.subr.bf16.mxu0 %v1825
        %2559 = vmatpush1.bf16.msra.mxu0 %v1824
        %2560 = vmatprep.subr.bf16.mxu0 %v1833
        %2561 = vmatpush1.bf16.msra.mxu0 %v1832
        %2562 = vmatprep.subr.bf16.mxu0 %v1841
        %2563 = vmatpush1.bf16.msra.mxu0 %v1840
        %2564 = vmatprep.subr.bf16.mxu0 %v1849
        %2565 = vmatpush1.bf16.msra.mxu0 %v1848
        %2566 = vmatprep.subr.bf16.mxu0 %v1857
        %2567 = vmatpush1.bf16.msra.mxu0 %v1856
        %2568 = vmatprep.subr.bf16.mxu0 %v1865
        %2569 = vmatpush1.bf16.msra.mxu0 %v1864
        %2570 = vmatprep.subr.bf16.mxu0 %v1873
        %2571 = vmatpush1.bf16.msra.mxu0 %v1872
        %2572 = vmatprep.subr.bf16.mxu0 %v1881
        %2573 = vmatpush1.bf16.msra.mxu0 %v1880
        %2574 = vmatprep.subr.bf16.mxu0 %v1889
        %2575 = vmatpush1.bf16.msra.mxu0 %v1888
        %2576 = vmatprep.subr.bf16.mxu0 %v1897
        %2577 = vmatpush1.bf16.msra.mxu0 %v1896
        %2578 = vmatprep.subr.bf16.mxu0 %v1905
        %2579 = vmatpush1.bf16.msra.mxu0 %v1904
        %2580 = vmatprep.subr.bf16.mxu0 %v1913
        %2581 = vmatpush1.bf16.msra.mxu0 %v1912
        %2582 = vmatprep.subr.bf16.mxu0 %v1921
        %2583 = vmatpush1.bf16.msra.mxu0 %v1920
        %2584 = vmatprep.mubr.bf16.mxu0 %v1019
        %2585 = vmatmul.mubr.bf16.gmra.mrb[0].mxu0 %v1018
        %v2586 = vpop.f32.mrb[0].mxu0
        %v2587 = vadd.f32 0.0, %v2586
        %v2588 = vpop.f32.mrb[0].mxu0
        %v2589 = vadd.f32 0.0, %v2588
        %v2590 = vpop.f32.mrb[0].mxu0
        %v2591 = vpop.f32.mrb[0].mxu0
        %2592 = vdwg.mxu0
        %2593 = vmatprep.subr.bf16.mxu0 %v1929
        %2594 = vmatpush1.bf16.msra.mxu0 %v1928
        %2595 = vmatprep.subr.bf16.mxu0 %v1937
        %2596 = vmatpush1.bf16.msra.mxu0 %v1936
        %2597 = vmatprep.subr.bf16.mxu0 %v1945
        %2598 = vmatpush1.bf16.msra.mxu0 %v1944
        %2599 = vmatprep.subr.bf16.mxu0 %v1953
        %2600 = vmatpush1.bf16.msra.mxu0 %v1952
        %2601 = vmatprep.subr.bf16.mxu0 %v1961
        %2602 = vmatpush1.bf16.msra.mxu0 %v1960
        %2603 = vmatprep.subr.bf16.mxu0 %v1969
        %2604 = vmatpush1.bf16.msra.mxu0 %v1968
        %2605 = vmatprep.subr.bf16.mxu0 %v1977
        %2606 = vmatpush1.bf16.msra.mxu0 %v1976
        %2607 = vmatprep.subr.bf16.mxu0 %v1985
        %2608 = vmatpush1.bf16.msra.mxu0 %v1984
        %2609 = vmatprep.subr.bf16.mxu0 %v1993
        %2610 = vmatpush1.bf16.msra.mxu0 %v1992
        %2611 = vmatprep.subr.bf16.mxu0 %v2001
        %2612 = vmatpush1.bf16.msra.mxu0 %v2000
        %2613 = vmatprep.subr.bf16.mxu0 %v2009
        %2614 = vmatpush1.bf16.msra.mxu0 %v2008
        %2615 = vmatprep.subr.bf16.mxu0 %v2017
        %2616 = vmatpush1.bf16.msra.mxu0 %v2016
        %2617 = vmatprep.subr.bf16.mxu0 %v2025
        %2618 = vmatpush1.bf16.msra.mxu0 %v2024
        %2619 = vmatprep.subr.bf16.mxu0 %v2033
        %2620 = vmatpush1.bf16.msra.mxu0 %v2032
        %2621 = vmatprep.subr.bf16.mxu0 %v2041
        %2622 = vmatpush1.bf16.msra.mxu0 %v2040
        %2623 = vmatprep.subr.bf16.mxu0 %v2049
        %2624 = vmatpush1.bf16.msra.mxu0 %v2048
        %2625 = vmatprep.mubr.bf16.mxu0 %v1021
        %2626 = vmatmul.mubr.bf16.gmra.mrb[0].mxu0 %v1020
        %v2627 = vpop.f32.mrb[0].mxu0
        %v2628 = vadd.f32 %v2587, %v2627
        %v2629 = vpop.f32.mrb[0].mxu0
        %v2630 = vadd.f32 %v2589, %v2629
        %v2631 = vpop.f32.mrb[0].mxu0
        %v2632 = vpop.f32.mrb[0].mxu0
        %2633 = vdwg.mxu0
        // Predicated region
        $region109: #{tpu_custom_call.1} parent=63 // pred_check
          %p2634 = pneg %p562
        $region110: #{tpu_custom_call.1} parent=63 // pred_check_branch
          %2636 = sbr.rel (%p2634) target = $region112
        $region111: #{tpu_custom_call.1} parent=63 // pred_region
          %2637 = vst [vmem:[#allocation3] sm:$0xff] %v2382
          %2638 = vst [vmem:[#allocation3 + $0x8] sm:$0xff] %v2384
          %2639 = vst [vmem:[#allocation3 + $0x10] sm:$0xff] %v2464
          %2640 = vst [vmem:[#allocation3 + $0x18] sm:$0xff] %v2466
          %2641 = vst [vmem:[#allocation3 + $0x20] sm:$0xff] %v2546
          %2642 = vst [vmem:[#allocation3 + $0x28] sm:$0xff] %v2548
          %2643 = vst [vmem:[#allocation3 + $0x30] sm:$0xff] %v2628
          %2644 = vst [vmem:[#allocation3 + $0x38] sm:$0xff] %v2630
        $region112: #{tpu_custom_call.1} parent=63 // pred_fallthru
          _
        %p2645 = scmp.ne.s32.totalorder %s42, 0
        // Predicated region
        $region113: #{tpu_custom_call.1} parent=63 // pred_check
          %p2646 = pneg %p2645
        $region114: #{tpu_custom_call.1} parent=63 // pred_check_branch
          %2648 = sbr.rel (%p2646) target = $region116
        $region115: #{tpu_custom_call.1} parent=63 // pred_region
          %v2649 = vld [vmem:[#allocation3] sm:$0xff]
          %v2650 = vld [vmem:[#allocation3 + $0x8] sm:$0xff]
          %v2651 = vld [vmem:[#allocation3 + $0x10] sm:$0xff]
          %v2652 = vld [vmem:[#allocation3 + $0x18] sm:$0xff]
          %v2653 = vld [vmem:[#allocation3 + $0x20] sm:$0xff]
          %v2654 = vld [vmem:[#allocation3 + $0x28] sm:$0xff]
          %v2655 = vld [vmem:[#allocation3 + $0x30] sm:$0xff]
          %v2656 = vld [vmem:[#allocation3 + $0x38] sm:$0xff]
          %v2657 = vadd.f32 %v2649, %v2382
          %v2658 = vadd.f32 %v2650, %v2384
          %v2659 = vadd.f32 %v2651, %v2464
          %v2660 = vadd.f32 %v2652, %v2466
          %v2661 = vadd.f32 %v2653, %v2546
          %v2662 = vadd.f32 %v2654, %v2548
          %v2663 = vadd.f32 %v2655, %v2628
          %v2664 = vadd.f32 %v2656, %v2630
          %2665 = vst [vmem:[#allocation3] sm:$0xff] %v2657
          %2666 = vst [vmem:[#allocation3 + $0x8] sm:$0xff] %v2658
          %2667 = vst [vmem:[#allocation3 + $0x10] sm:$0xff] %v2659
          %2668 = vst [vmem:[#allocation3 + $0x18] sm:$0xff] %v2660
          %2669 = vst [vmem:[#allocation3 + $0x20] sm:$0xff] %v2661
          %2670 = vst [vmem:[#allocation3 + $0x28] sm:$0xff] %v2662
          %2671 = vst [vmem:[#allocation3 + $0x30] sm:$0xff] %v2663
          %2672 = vst [vmem:[#allocation3 + $0x38] sm:$0xff] %v2664
        $region116: #{tpu_custom_call.1} parent=63 // pred_fallthru
          _
        %p2673 = scmp.eq.s32.totalorder %s42, 1
        // Predicated region
        $region117: #{tpu_custom_call.1} parent=63 // pred_check
          %p2674 = pneg %p2673
        $region118: #{tpu_custom_call.1} parent=63 // pred_check_branch
          %2676 = sbr.rel (%p2674) target = $region120
        $region119: #{tpu_custom_call.1} parent=63 // pred_region
          %v2677 = vld [vmem:[#allocation3] sm:$0xff]
          %v2678 = vld [vmem:[#allocation3 + $0x8] sm:$0xff]
          %v2679 = vld [vmem:[#allocation3 + $0x10] sm:$0xff]
          %v2680 = vld [vmem:[#allocation3 + $0x18] sm:$0xff]
          %v2681 = vld [vmem:[#allocation3 + $0x20] sm:$0xff]
          %v2682 = vld [vmem:[#allocation3 + $0x28] sm:$0xff]
          %v2683 = vld [vmem:[#allocation3 + $0x30] sm:$0xff]
          %v2684 = vld [vmem:[#allocation3 + $0x38] sm:$0xff]
          %v2685 = vld [vmem:[#allocation16] sm:$0xff]
          %v2687 = vlaneseq
          %v2688 = vshrl.u32 %v2687, 7
          %v2689 = vsub.s32 0, %v2688
          %v2690 = vrot.slane %v2685, %v2689
          %v2691 = vlaneseq
          %v2692 = vshrl.u32 %v2691, 7
          %v2693 = vsub.s32 1, %v2692
          %v2694 = vrot.slane %v2685, %v2693
          %v2695 = vlaneseq
          %v2696 = vshrl.u32 %v2695, 7
          %v2697 = vsub.s32 2, %v2696
          %v2698 = vrot.slane %v2685, %v2697
          %v2699 = vlaneseq
          %v2700 = vshrl.u32 %v2699, 7
          %v2701 = vsub.s32 3, %v2700
          %v2702 = vrot.slane %v2685, %v2701
          %v2703 = vlaneseq
          %v2704 = vshrl.u32 %v2703, 7
          %v2705 = vsub.s32 4, %v2704
          %v2706 = vrot.slane %v2685, %v2705
          %v2707 = vlaneseq
          %v2708 = vshrl.u32 %v2707, 7
          %v2709 = vsub.s32 5, %v2708
          %v2710 = vrot.slane %v2685, %v2709
          %v2711 = vlaneseq
          %v2712 = vshrl.u32 %v2711, 7
          %v2713 = vsub.s32 6, %v2712
          %v2714 = vrot.slane %v2685, %v2713
          %v2715 = vlaneseq
          %v2716 = vshrl.u32 %v2715, 7
          %v2717 = vsub.s32 7, %v2716
          %v2718 = vrot.slane %v2685, %v2717
          %v2727 = vadd.f32 %v2677, %v2690
          %v2728 = vadd.f32 %v2678, %v2694
          %v2729 = vadd.f32 %v2679, %v2698
          %v2730 = vadd.f32 %v2680, %v2702
          %v2731 = vadd.f32 %v2681, %v2706
          %v2732 = vadd.f32 %v2682, %v2710
          %v2733 = vadd.f32 %v2683, %v2714
          %v2734 = vadd.f32 %v2684, %v2718
          %v2735 = vmax.f32 %v2727, 0.0
          %v2736 = vmax.f32 %v2728, 0.0
          %v2737 = vmax.f32 %v2729, 0.0
          %v2738 = vmax.f32 %v2730, 0.0
          %v2739 = vmax.f32 %v2731, 0.0
          %v2740 = vmax.f32 %v2732, 0.0
          %v2741 = vmax.f32 %v2733, 0.0
          %v2742 = vmax.f32 %v2734, 0.0
          %2743 = vst [vmem:[#allocation3] sm:$0xff] %v2735
          %2744 = vst [vmem:[#allocation3 + $0x8] sm:$0xff] %v2736
          %2745 = vst [vmem:[#allocation3 + $0x10] sm:$0xff] %v2737
          %2746 = vst [vmem:[#allocation3 + $0x18] sm:$0xff] %v2738
          %2747 = vst [vmem:[#allocation3 + $0x20] sm:$0xff] %v2739
          %2748 = vst [vmem:[#allocation3 + $0x28] sm:$0xff] %v2740
          %2749 = vst [vmem:[#allocation3 + $0x30] sm:$0xff] %v2741
          %2750 = vst [vmem:[#allocation3 + $0x38] sm:$0xff] %v2742
          %v2751 = vld [vmem:[#allocation3] sm:$0xff]
          %v2752 = vld [vmem:[#allocation3 + $0x8] sm:$0xff]
          %v2753 = vld [vmem:[#allocation3 + $0x10] sm:$0xff]
          %v2754 = vld [vmem:[#allocation3 + $0x18] sm:$0xff]
          %v2755 = vld [vmem:[#allocation3 + $0x20] sm:$0xff]
          %v2756 = vld [vmem:[#allocation3 + $0x28] sm:$0xff]
          %v2757 = vld [vmem:[#allocation3 + $0x30] sm:$0xff]
          %v2758 = vld [vmem:[#allocation3 + $0x38] sm:$0xff]
          %v2759 = vpack.c.bf16 %v2751, %v2751
          %v2760 = vpack.c.bf16 %v2752, %v2752
          %v2761 = vpack.c.bf16 %v2753, %v2753
          %v2762 = vpack.c.bf16 %v2754, %v2754
          %v2763 = vpack.c.bf16 %v2755, %v2755
          %v2764 = vpack.c.bf16 %v2756, %v2756
          %v2765 = vpack.c.bf16 %v2757, %v2757
          %v2766 = vpack.c.bf16 %v2758, %v2758
          %v2767 = vld [vmem:[#allocation17] sm:$0xf]
          %v2768 = vld [vmem:[#allocation17 + $0x4] sm:$0xf]
          %v2769 = vld [vmem:[#allocation17 + $0x8] sm:$0xf]
          %v2770 = vld [vmem:[#allocation17 + $0xc] sm:$0xf]
          %v2771 = vld [vmem:[#allocation17 + $0x10] sm:$0xf]
          %v2772 = vld [vmem:[#allocation17 + $0x14] sm:$0xf]
          %v2773 = vld [vmem:[#allocation17 + $0x18] sm:$0xf]
          %v2774 = vld [vmem:[#allocation17 + $0x1c] sm:$0xf]
          %v2775 = vld [vmem:[#allocation17 + $0x20] sm:$0xf]
          %v2776 = vld [vmem:[#allocation17 + $0x24] sm:$0xf]
          %v2777 = vld [vmem:[#allocation17 + $0x28] sm:$0xf]
          %v2778 = vld [vmem:[#allocation17 + $0x2c] sm:$0xf]
          %v2779 = vld [vmem:[#allocation17 + $0x30] sm:$0xf]
          %v2780 = vld [vmem:[#allocation17 + $0x34] sm:$0xf]
          %v2781 = vld [vmem:[#allocation17 + $0x38] sm:$0xf]
          %v2782 = vld [vmem:[#allocation17 + $0x3c] sm:$0xf]
          %v2783 = vld [vmem:[#allocation17 + $0x40] sm:$0xf]
          %v2784 = vld [vmem:[#allocation17 + $0x44] sm:$0xf]
          %v2785 = vld [vmem:[#allocation17 + $0x48] sm:$0xf]
          %v2786 = vld [vmem:[#allocation17 + $0x4c] sm:$0xf]
          %v2787 = vld [vmem:[#allocation17 + $0x50] sm:$0xf]
          %v2788 = vld [vmem:[#allocation17 + $0x54] sm:$0xf]
          %v2789 = vld [vmem:[#allocation17 + $0x58] sm:$0xf]
          %v2790 = vld [vmem:[#allocation17 + $0x5c] sm:$0xf]
          %v2791 = vld [vmem:[#allocation17 + $0x60] sm:$0xf]
          %v2792 = vld [vmem:[#allocation17 + $0x64] sm:$0xf]
          %v2793 = vld [vmem:[#allocation17 + $0x68] sm:$0xf]
          %v2794 = vld [vmem:[#allocation17 + $0x6c] sm:$0xf]
          %v2795 = vld [vmem:[#allocation17 + $0x70] sm:$0xf]
          %v2796 = vld [vmem:[#allocation17 + $0x74] sm:$0xf]
          %v2797 = vld [vmem:[#allocation17 + $0x78] sm:$0xf]
          %v2798 = vld [vmem:[#allocation17 + $0x7c] sm:$0xf]
          %v2799 = vld [vmem:[#allocation17 + $0x80] sm:$0xf]
          %v2800 = vld [vmem:[#allocation17 + $0x84] sm:$0xf]
          %v2801 = vld [vmem:[#allocation17 + $0x88] sm:$0xf]
          %v2802 = vld [vmem:[#allocation17 + $0x8c] sm:$0xf]
          %v2803 = vld [vmem:[#allocation17 + $0x90] sm:$0xf]
          %v2804 = vld [vmem:[#allocation17 + $0x94] sm:$0xf]
          %v2805 = vld [vmem:[#allocation17 + $0x98] sm:$0xf]
          %v2806 = vld [vmem:[#allocation17 + $0x9c] sm:$0xf]
          %v2807 = vld [vmem:[#allocation17 + $0xa0] sm:$0xf]
          %v2808 = vld [vmem:[#allocation17 + $0xa4] sm:$0xf]
          %v2809 = vld [vmem:[#allocation17 + $0xa8] sm:$0xf]
          %v2810 = vld [vmem:[#allocation17 + $0xac] sm:$0xf]
          %v2811 = vld [vmem:[#allocation17 + $0xb0] sm:$0xf]
          %v2812 = vld [vmem:[#allocation17 + $0xb4] sm:$0xf]
          %v2813 = vld [vmem:[#allocation17 + $0xb8] sm:$0xf]
          %v2814 = vld [vmem:[#allocation17 + $0xbc] sm:$0xf]
          %v2815 = vld [vmem:[#allocation17 + $0xc0] sm:$0xf]
          %v2816 = vld [vmem:[#allocation17 + $0xc4] sm:$0xf]
          %v2817 = vld [vmem:[#allocation17 + $0xc8] sm:$0xf]
          %v2818 = vld [vmem:[#allocation17 + $0xcc] sm:$0xf]
          %v2819 = vld [vmem:[#allocation17 + $0xd0] sm:$0xf]
          %v2820 = vld [vmem:[#allocation17 + $0xd4] sm:$0xf]
          %v2821 = vld [vmem:[#allocation17 + $0xd8] sm:$0xf]
          %v2822 = vld [vmem:[#allocation17 + $0xdc] sm:$0xf]
          %v2823 = vld [vmem:[#allocation17 + $0xe0] sm:$0xf]
          %v2824 = vld [vmem:[#allocation17 + $0xe4] sm:$0xf]
          %v2825 = vld [vmem:[#allocation17 + $0xe8] sm:$0xf]
          %v2826 = vld [vmem:[#allocation17 + $0xec] sm:$0xf]
          %v2827 = vld [vmem:[#allocation17 + $0xf0] sm:$0xf]
          %v2828 = vld [vmem:[#allocation17 + $0xf4] sm:$0xf]
          %v2829 = vld [vmem:[#allocation17 + $0xf8] sm:$0xf]
          %v2830 = vld [vmem:[#allocation17 + $0xfc] sm:$0xf]
          %v2831 = vld [vmem:[#allocation17 + $0x100] sm:$0xf]
          %v2832 = vld [vmem:[#allocation17 + $0x104] sm:$0xf]
          %v2833 = vld [vmem:[#allocation17 + $0x108] sm:$0xf]
          %v2834 = vld [vmem:[#allocation17 + $0x10c] sm:$0xf]
          %v2835 = vld [vmem:[#allocation17 + $0x110] sm:$0xf]
          %v2836 = vld [vmem:[#allocation17 + $0x114] sm:$0xf]
          %v2837 = vld [vmem:[#allocation17 + $0x118] sm:$0xf]
          %v2838 = vld [vmem:[#allocation17 + $0x11c] sm:$0xf]
          %v2839 = vld [vmem:[#allocation17 + $0x120] sm:$0xf]
          %v2840 = vld [vmem:[#allocation17 + $0x124] sm:$0xf]
          %v2841 = vld [vmem:[#allocation17 + $0x128] sm:$0xf]
          %v2842 = vld [vmem:[#allocation17 + $0x12c] sm:$0xf]
          %v2843 = vld [vmem:[#allocation17 + $0x130] sm:$0xf]
          %v2844 = vld [vmem:[#allocation17 + $0x134] sm:$0xf]
          %v2845 = vld [vmem:[#allocation17 + $0x138] sm:$0xf]
          %v2846 = vld [vmem:[#allocation17 + $0x13c] sm:$0xf]
          %v2847 = vld [vmem:[#allocation17 + $0x140] sm:$0xf]
          %v2848 = vld [vmem:[#allocation17 + $0x144] sm:$0xf]
          %v2849 = vld [vmem:[#allocation17 + $0x148] sm:$0xf]
          %v2850 = vld [vmem:[#allocation17 + $0x14c] sm:$0xf]
          %v2851 = vld [vmem:[#allocation17 + $0x150] sm:$0xf]
          %v2852 = vld [vmem:[#allocation17 + $0x154] sm:$0xf]
          %v2853 = vld [vmem:[#allocation17 + $0x158] sm:$0xf]
          %v2854 = vld [vmem:[#allocation17 + $0x15c] sm:$0xf]
          %v2855 = vld [vmem:[#allocation17 + $0x160] sm:$0xf]
          %v2856 = vld [vmem:[#allocation17 + $0x164] sm:$0xf]
          %v2857 = vld [vmem:[#allocation17 + $0x168] sm:$0xf]
          %v2858 = vld [vmem:[#allocation17 + $0x16c] sm:$0xf]
          %v2859 = vld [vmem:[#allocation17 + $0x170] sm:$0xf]
          %v2860 = vld [vmem:[#allocation17 + $0x174] sm:$0xf]
          %v2861 = vld [vmem:[#allocation17 + $0x178] sm:$0xf]
          %v2862 = vld [vmem:[#allocation17 + $0x17c] sm:$0xf]
          %v2863 = vld [vmem:[#allocation17 + $0x180] sm:$0xf]
          %v2864 = vld [vmem:[#allocation17 + $0x184] sm:$0xf]
          %v2865 = vld [vmem:[#allocation17 + $0x188] sm:$0xf]
          %v2866 = vld [vmem:[#allocation17 + $0x18c] sm:$0xf]
          %v2867 = vld [vmem:[#allocation17 + $0x190] sm:$0xf]
          %v2868 = vld [vmem:[#allocation17 + $0x194] sm:$0xf]
          %v2869 = vld [vmem:[#allocation17 + $0x198] sm:$0xf]
          %v2870 = vld [vmem:[#allocation17 + $0x19c] sm:$0xf]
          %v2871 = vld [vmem:[#allocation17 + $0x1a0] sm:$0xf]
          %v2872 = vld [vmem:[#allocation17 + $0x1a4] sm:$0xf]
          %v2873 = vld [vmem:[#allocation17 + $0x1a8] sm:$0xf]
          %v2874 = vld [vmem:[#allocation17 + $0x1ac] sm:$0xf]
          %v2875 = vld [vmem:[#allocation17 + $0x1b0] sm:$0xf]
          %v2876 = vld [vmem:[#allocation17 + $0x1b4] sm:$0xf]
          %v2877 = vld [vmem:[#allocation17 + $0x1b8] sm:$0xf]
          %v2878 = vld [vmem:[#allocation17 + $0x1bc] sm:$0xf]
          %v2879 = vld [vmem:[#allocation17 + $0x1c0] sm:$0xf]
          %v2880 = vld [vmem:[#allocation17 + $0x1c4] sm:$0xf]
          %v2881 = vld [vmem:[#allocation17 + $0x1c8] sm:$0xf]
          %v2882 = vld [vmem:[#allocation17 + $0x1cc] sm:$0xf]
          %v2883 = vld [vmem:[#allocation17 + $0x1d0] sm:$0xf]
          %v2884 = vld [vmem:[#allocation17 + $0x1d4] sm:$0xf]
          %v2885 = vld [vmem:[#allocation17 + $0x1d8] sm:$0xf]
          %v2886 = vld [vmem:[#allocation17 + $0x1dc] sm:$0xf]
          %v2887 = vld [vmem:[#allocation17 + $0x1e0] sm:$0xf]
          %v2888 = vld [vmem:[#allocation17 + $0x1e4] sm:$0xf]
          %v2889 = vld [vmem:[#allocation17 + $0x1e8] sm:$0xf]
          %v2890 = vld [vmem:[#allocation17 + $0x1ec] sm:$0xf]
          %v2891 = vld [vmem:[#allocation17 + $0x1f0] sm:$0xf]
          %v2892 = vld [vmem:[#allocation17 + $0x1f4] sm:$0xf]
          %v2893 = vld [vmem:[#allocation17 + $0x1f8] sm:$0xf]
          %v2894 = vld [vmem:[#allocation17 + $0x1fc] sm:$0xf]
          %v2895 = vld [vmem:[#allocation19] sm:$0x1]
          %v2897 = vlaneseq
          %v2898 = vshrl.u32 %v2897, 7
          %v2899 = vsub.s32 0, %v2898
          %v2900 = vrot.slane %v2895, %v2899
          %v3030 = vunpack.c.l.b16 %v2767
          %v3031 = vunpack.c.l.b16 %v2768
          %v3032 = vunpack.c.l.b16 %v2769
          %v3033 = vunpack.c.l.b16 %v2770
          %v3034 = vunpack.c.l.b16 %v2771
          %v3035 = vunpack.c.l.b16 %v2772
          %v3036 = vunpack.c.l.b16 %v2773
          %v3037 = vunpack.c.l.b16 %v2774
          %v3038 = vunpack.c.l.b16 %v2775
          %v3039 = vunpack.c.l.b16 %v2776
          %v3040 = vunpack.c.l.b16 %v2777
          %v3041 = vunpack.c.l.b16 %v2778
          %v3042 = vunpack.c.l.b16 %v2779
          %v3043 = vunpack.c.l.b16 %v2780
          %v3044 = vunpack.c.l.b16 %v2781
          %v3045 = vunpack.c.l.b16 %v2782
          %v3046 = vunpack.c.l.b16 %v2783
          %v3047 = vunpack.c.l.b16 %v2784
          %v3048 = vunpack.c.l.b16 %v2785
          %v3049 = vunpack.c.l.b16 %v2786
          %v3050 = vunpack.c.l.b16 %v2787
          %v3051 = vunpack.c.l.b16 %v2788
          %v3052 = vunpack.c.l.b16 %v2789
          %v3053 = vunpack.c.l.b16 %v2790
          %v3054 = vunpack.c.l.b16 %v2791
          %v3055 = vunpack.c.l.b16 %v2792
          %v3056 = vunpack.c.l.b16 %v2793
          %v3057 = vunpack.c.l.b16 %v2794
          %v3058 = vunpack.c.l.b16 %v2795
          %v3059 = vunpack.c.l.b16 %v2796
          %v3060 = vunpack.c.l.b16 %v2797
          %v3061 = vunpack.c.l.b16 %v2798
          %v3062 = vunpack.c.l.b16 %v2799
          %v3063 = vunpack.c.l.b16 %v2800
          %v3064 = vunpack.c.l.b16 %v2801
          %v3065 = vunpack.c.l.b16 %v2802
          %v3066 = vunpack.c.l.b16 %v2803
          %v3067 = vunpack.c.l.b16 %v2804
          %v3068 = vunpack.c.l.b16 %v2805
          %v3069 = vunpack.c.l.b16 %v2806
          %v3070 = vunpack.c.l.b16 %v2807
          %v3071 = vunpack.c.l.b16 %v2808
          %v3072 = vunpack.c.l.b16 %v2809
          %v3073 = vunpack.c.l.b16 %v2810
          %v3074 = vunpack.c.l.b16 %v2811
          %v3075 = vunpack.c.l.b16 %v2812
          %v3076 = vunpack.c.l.b16 %v2813
          %v3077 = vunpack.c.l.b16 %v2814
          %v3078 = vunpack.c.l.b16 %v2815
          %v3079 = vunpack.c.l.b16 %v2816
          %v3080 = vunpack.c.l.b16 %v2817
          %v3081 = vunpack.c.l.b16 %v2818
          %v3082 = vunpack.c.l.b16 %v2819
          %v3083 = vunpack.c.l.b16 %v2820
          %v3084 = vunpack.c.l.b16 %v2821
          %v3085 = vunpack.c.l.b16 %v2822
          %v3086 = vunpack.c.l.b16 %v2823
          %v3087 = vunpack.c.l.b16 %v2824
          %v3088 = vunpack.c.l.b16 %v2825
          %v3089 = vunpack.c.l.b16 %v2826
          %v3090 = vunpack.c.l.b16 %v2827
          %v3091 = vunpack.c.l.b16 %v2828
          %v3092 = vunpack.c.l.b16 %v2829
          %v3093 = vunpack.c.l.b16 %v2830
          %v3094 = vunpack.c.l.b16 %v2831
          %v3095 = vunpack.c.l.b16 %v2832
          %v3096 = vunpack.c.l.b16 %v2833
          %v3097 = vunpack.c.l.b16 %v2834
          %v3098 = vunpack.c.l.b16 %v2835
          %v3099 = vunpack.c.l.b16 %v2836
          %v3100 = vunpack.c.l.b16 %v2837
          %v3101 = vunpack.c.l.b16 %v2838
          %v3102 = vunpack.c.l.b16 %v2839
          %v3103 = vunpack.c.l.b16 %v2840
          %v3104 = vunpack.c.l.b16 %v2841
          %v3105 = vunpack.c.l.b16 %v2842
          %v3106 = vunpack.c.l.b16 %v2843
          %v3107 = vunpack.c.l.b16 %v2844
          %v3108 = vunpack.c.l.b16 %v2845
          %v3109 = vunpack.c.l.b16 %v2846
          %v3110 = vunpack.c.l.b16 %v2847
          %v3111 = vunpack.c.l.b16 %v2848
          %v3112 = vunpack.c.l.b16 %v2849
          %v3113 = vunpack.c.l.b16 %v2850
          %v3114 = vunpack.c.l.b16 %v2851
          %v3115 = vunpack.c.l.b16 %v2852
          %v3116 = vunpack.c.l.b16 %v2853
          %v3117 = vunpack.c.l.b16 %v2854
          %v3118 = vunpack.c.l.b16 %v2855
          %v3119 = vunpack.c.l.b16 %v2856
          %v3120 = vunpack.c.l.b16 %v2857
          %v3121 = vunpack.c.l.b16 %v2858
          %v3122 = vunpack.c.l.b16 %v2859
          %v3123 = vunpack.c.l.b16 %v2860
          %v3124 = vunpack.c.l.b16 %v2861
          %v3125 = vunpack.c.l.b16 %v2862
          %v3126 = vunpack.c.l.b16 %v2863
          %v3127 = vunpack.c.l.b16 %v2864
          %v3128 = vunpack.c.l.b16 %v2865
          %v3129 = vunpack.c.l.b16 %v2866
          %v3130 = vunpack.c.l.b16 %v2867
          %v3131 = vunpack.c.l.b16 %v2868
          %v3132 = vunpack.c.l.b16 %v2869
          %v3133 = vunpack.c.l.b16 %v2870
          %v3134 = vunpack.c.l.b16 %v2871
          %v3135 = vunpack.c.l.b16 %v2872
          %v3136 = vunpack.c.l.b16 %v2873
          %v3137 = vunpack.c.l.b16 %v2874
          %v3138 = vunpack.c.l.b16 %v2875
          %v3139 = vunpack.c.l.b16 %v2876
          %v3140 = vunpack.c.l.b16 %v2877
          %v3141 = vunpack.c.l.b16 %v2878
          %v3142 = vunpack.c.l.b16 %v2879
          %v3143 = vunpack.c.l.b16 %v2880
          %v3144 = vunpack.c.l.b16 %v2881
          %v3145 = vunpack.c.l.b16 %v2882
          %v3146 = vunpack.c.l.b16 %v2883
          %v3147 = vunpack.c.l.b16 %v2884
          %v3148 = vunpack.c.l.b16 %v2885
          %v3149 = vunpack.c.l.b16 %v2886
          %v3150 = vunpack.c.l.b16 %v2887
          %v3151 = vunpack.c.l.b16 %v2888
          %v3152 = vunpack.c.l.b16 %v2889
          %v3153 = vunpack.c.l.b16 %v2890
          %v3154 = vunpack.c.l.b16 %v2891
          %v3155 = vunpack.c.l.b16 %v2892
          %v3156 = vunpack.c.l.b16 %v2893
          %v3157 = vunpack.c.l.b16 %v2894
          %v3158 = vpack.c.b16 %v3031, %v3030
          %v3159 = vpack.c.b16 %v3033, %v3032
          %v3160 = vpack.c.b16 %v3035, %v3034
          %v3161 = vpack.c.b16 %v3037, %v3036
          %v3162 = vpack.c.b16 %v3039, %v3038
          %v3163 = vpack.c.b16 %v3041, %v3040
          %v3164 = vpack.c.b16 %v3043, %v3042
          %v3165 = vpack.c.b16 %v3045, %v3044
          %v3166 = vpack.c.b16 %v3047, %v3046
          %v3167 = vpack.c.b16 %v3049, %v3048
          %v3168 = vpack.c.b16 %v3051, %v3050
          %v3169 = vpack.c.b16 %v3053, %v3052
          %v3170 = vpack.c.b16 %v3055, %v3054
          %v3171 = vpack.c.b16 %v3057, %v3056
          %v3172 = vpack.c.b16 %v3059, %v3058
          %v3173 = vpack.c.b16 %v3061, %v3060
          %v3174 = vpack.c.b16 %v3063, %v3062
          %v3175 = vpack.c.b16 %v3065, %v3064
          %v3176 = vpack.c.b16 %v3067, %v3066
          %v3177 = vpack.c.b16 %v3069, %v3068
          %v3178 = vpack.c.b16 %v3071, %v3070
          %v3179 = vpack.c.b16 %v3073, %v3072
          %v3180 = vpack.c.b16 %v3075, %v3074
          %v3181 = vpack.c.b16 %v3077, %v3076
          %v3182 = vpack.c.b16 %v3079, %v3078
          %v3183 = vpack.c.b16 %v3081, %v3080
          %v3184 = vpack.c.b16 %v3083, %v3082
          %v3185 = vpack.c.b16 %v3085, %v3084
          %v3186 = vpack.c.b16 %v3087, %v3086
          %v3187 = vpack.c.b16 %v3089, %v3088
          %v3188 = vpack.c.b16 %v3091, %v3090
          %v3189 = vpack.c.b16 %v3093, %v3092
          %v3190 = vpack.c.b16 %v3095, %v3094
          %v3191 = vpack.c.b16 %v3097, %v3096
          %v3192 = vpack.c.b16 %v3099, %v3098
          %v3193 = vpack.c.b16 %v3101, %v3100
          %v3194 = vpack.c.b16 %v3103, %v3102
          %v3195 = vpack.c.b16 %v3105, %v3104
          %v3196 = vpack.c.b16 %v3107, %v3106
          %v3197 = vpack.c.b16 %v3109, %v3108
          %v3198 = vpack.c.b16 %v3111, %v3110
          %v3199 = vpack.c.b16 %v3113, %v3112
          %v3200 = vpack.c.b16 %v3115, %v3114
          %v3201 = vpack.c.b16 %v3117, %v3116
          %v3202 = vpack.c.b16 %v3119, %v3118
          %v3203 = vpack.c.b16 %v3121, %v3120
          %v3204 = vpack.c.b16 %v3123, %v3122
          %v3205 = vpack.c.b16 %v3125, %v3124
          %v3206 = vpack.c.b16 %v3127, %v3126
          %v3207 = vpack.c.b16 %v3129, %v3128
          %v3208 = vpack.c.b16 %v3131, %v3130
          %v3209 = vpack.c.b16 %v3133, %v3132
          %v3210 = vpack.c.b16 %v3135, %v3134
          %v3211 = vpack.c.b16 %v3137, %v3136
          %v3212 = vpack.c.b16 %v3139, %v3138
          %v3213 = vpack.c.b16 %v3141, %v3140
          %v3214 = vpack.c.b16 %v3143, %v3142
          %v3215 = vpack.c.b16 %v3145, %v3144
          %v3216 = vpack.c.b16 %v3147, %v3146
          %v3217 = vpack.c.b16 %v3149, %v3148
          %v3218 = vpack.c.b16 %v3151, %v3150
          %v3219 = vpack.c.b16 %v3153, %v3152
          %v3220 = vpack.c.b16 %v3155, %v3154
          %v3221 = vpack.c.b16 %v3157, %v3156
          %3286 = vmatprep.subr.bf16.mxu0 0
          %3287 = vmatpush1.bf16.msra.mxu0 %v3158
          %3288 = vmatprep.subr.bf16.mxu0 0
          %3289 = vmatpush1.bf16.msra.mxu0 %v3159
          %3290 = vmatprep.subr.bf16.mxu0 0
          %3291 = vmatpush1.bf16.msra.mxu0 %v3160
          %3292 = vmatprep.subr.bf16.mxu0 0
          %3293 = vmatpush1.bf16.msra.mxu0 %v3161
          %3294 = vmatprep.subr.bf16.mxu0 0
          %3295 = vmatpush1.bf16.msra.mxu0 %v3162
          %3296 = vmatprep.subr.bf16.mxu0 0
          %3297 = vmatpush1.bf16.msra.mxu0 %v3163
          %3298 = vmatprep.subr.bf16.mxu0 0
          %3299 = vmatpush1.bf16.msra.mxu0 %v3164
          %3300 = vmatprep.subr.bf16.mxu0 0
          %3301 = vmatpush1.bf16.msra.mxu0 %v3165
          %3302 = vmatprep.subr.bf16.mxu0 0
          %3303 = vmatpush1.bf16.msra.mxu0 %v3166
          %3304 = vmatprep.subr.bf16.mxu0 0
          %3305 = vmatpush1.bf16.msra.mxu0 %v3167
          %3306 = vmatprep.subr.bf16.mxu0 0
          %3307 = vmatpush1.bf16.msra.mxu0 %v3168
          %3308 = vmatprep.subr.bf16.mxu0 0
          %3309 = vmatpush1.bf16.msra.mxu0 %v3169
          %3310 = vmatprep.subr.bf16.mxu0 0
          %3311 = vmatpush1.bf16.msra.mxu0 %v3170
          %3312 = vmatprep.subr.bf16.mxu0 0
          %3313 = vmatpush1.bf16.msra.mxu0 %v3171
          %3314 = vmatprep.subr.bf16.mxu0 0
          %3315 = vmatpush1.bf16.msra.mxu0 %v3172
          %3316 = vmatprep.subr.bf16.mxu0 0
          %3317 = vmatpush1.bf16.msra.mxu0 %v3173
          %3318 = vmatprep.mubr.bf16.mxu0 %v2760
          %3319 = vmatmul.mubr.bf16.gmra.mrb[0].mxu0 %v2759
          %v3320 = vpop.f32.mrb[0].mxu0
          %v3321 = vadd.f32 %v2900, %v3320
          %v3322 = vpop.f32.mrb[0].mxu0
          %v3323 = vpop.f32.mrb[0].mxu0
          %v3324 = vpop.f32.mrb[0].mxu0
          %3325 = vdwg.mxu0
          %3326 = vmatprep.subr.bf16.mxu0 0
          %3327 = vmatpush1.bf16.msra.mxu0 %v3174
          %3328 = vmatprep.subr.bf16.mxu0 0
          %3329 = vmatpush1.bf16.msra.mxu0 %v3175
          %3330 = vmatprep.subr.bf16.mxu0 0
          %3331 = vmatpush1.bf16.msra.mxu0 %v3176
          %3332 = vmatprep.subr.bf16.mxu0 0
          %3333 = vmatpush1.bf16.msra.mxu0 %v3177
          %3334 = vmatprep.subr.bf16.mxu0 0
          %3335 = vmatpush1.bf16.msra.mxu0 %v3178
          %3336 = vmatprep.subr.bf16.mxu0 0
          %3337 = vmatpush1.bf16.msra.mxu0 %v3179
          %3338 = vmatprep.subr.bf16.mxu0 0
          %3339 = vmatpush1.bf16.msra.mxu0 %v3180
          %3340 = vmatprep.subr.bf16.mxu0 0
          %3341 = vmatpush1.bf16.msra.mxu0 %v3181
          %3342 = vmatprep.subr.bf16.mxu0 0
          %3343 = vmatpush1.bf16.msra.mxu0 %v3182
          %3344 = vmatprep.subr.bf16.mxu0 0
          %3345 = vmatpush1.bf16.msra.mxu0 %v3183
          %3346 = vmatprep.subr.bf16.mxu0 0
          %3347 = vmatpush1.bf16.msra.mxu0 %v3184
          %3348 = vmatprep.subr.bf16.mxu0 0
          %3349 = vmatpush1.bf16.msra.mxu0 %v3185
          %3350 = vmatprep.subr.bf16.mxu0 0
          %3351 = vmatpush1.bf16.msra.mxu0 %v3186
          %3352 = vmatprep.subr.bf16.mxu0 0
          %3353 = vmatpush1.bf16.msra.mxu0 %v3187
          %3354 = vmatprep.subr.bf16.mxu0 0
          %3355 = vmatpush1.bf16.msra.mxu0 %v3188
          %3356 = vmatprep.subr.bf16.mxu0 0
          %3357 = vmatpush1.bf16.msra.mxu0 %v3189
          %3358 = vmatprep.mubr.bf16.mxu0 %v2762
          %3359 = vmatmul.mubr.bf16.gmra.mrb[0].mxu0 %v2761
          %v3360 = vpop.f32.mrb[0].mxu0
          %v3361 = vadd.f32 %v3321, %v3360
          %v3362 = vpop.f32.mrb[0].mxu0
          %v3363 = vpop.f32.mrb[0].mxu0
          %v3364 = vpop.f32.mrb[0].mxu0
          %3365 = vdwg.mxu0
          %3366 = vmatprep.subr.bf16.mxu0 0
          %3367 = vmatpush1.bf16.msra.mxu0 %v3190
          %3368 = vmatprep.subr.bf16.mxu0 0
          %3369 = vmatpush1.bf16.msra.mxu0 %v3191
          %3370 = vmatprep.subr.bf16.mxu0 0
          %3371 = vmatpush1.bf16.msra.mxu0 %v3192
          %3372 = vmatprep.subr.bf16.mxu0 0
          %3373 = vmatpush1.bf16.msra.mxu0 %v3193
          %3374 = vmatprep.subr.bf16.mxu0 0
          %3375 = vmatpush1.bf16.msra.mxu0 %v3194
          %3376 = vmatprep.subr.bf16.mxu0 0
          %3377 = vmatpush1.bf16.msra.mxu0 %v3195
          %3378 = vmatprep.subr.bf16.mxu0 0
          %3379 = vmatpush1.bf16.msra.mxu0 %v3196
          %3380 = vmatprep.subr.bf16.mxu0 0
          %3381 = vmatpush1.bf16.msra.mxu0 %v3197
          %3382 = vmatprep.subr.bf16.mxu0 0
          %3383 = vmatpush1.bf16.msra.mxu0 %v3198
          %3384 = vmatprep.subr.bf16.mxu0 0
          %3385 = vmatpush1.bf16.msra.mxu0 %v3199
          %3386 = vmatprep.subr.bf16.mxu0 0
          %3387 = vmatpush1.bf16.msra.mxu0 %v3200
          %3388 = vmatprep.subr.bf16.mxu0 0
          %3389 = vmatpush1.bf16.msra.mxu0 %v3201
          %3390 = vmatprep.subr.bf16.mxu0 0
          %3391 = vmatpush1.bf16.msra.mxu0 %v3202
          %3392 = vmatprep.subr.bf16.mxu0 0
          %3393 = vmatpush1.bf16.msra.mxu0 %v3203
          %3394 = vmatprep.subr.bf16.mxu0 0
          %3395 = vmatpush1.bf16.msra.mxu0 %v3204
          %3396 = vmatprep.subr.bf16.mxu0 0
          %3397 = vmatpush1.bf16.msra.mxu0 %v3205
          %3398 = vmatprep.mubr.bf16.mxu0 %v2764
          %3399 = vmatmul.mubr.bf16.gmra.mrb[0].mxu0 %v2763
          %v3400 = vpop.f32.mrb[0].mxu0
          %v3401 = vadd.f32 %v3361, %v3400
          %v3402 = vpop.f32.mrb[0].mxu0
          %v3403 = vpop.f32.mrb[0].mxu0
          %v3404 = vpop.f32.mrb[0].mxu0
          %3405 = vdwg.mxu0
          %3406 = vmatprep.subr.bf16.mxu0 0
          %3407 = vmatpush1.bf16.msra.mxu0 %v3206
          %3408 = vmatprep.subr.bf16.mxu0 0
          %3409 = vmatpush1.bf16.msra.mxu0 %v3207
          %3410 = vmatprep.subr.bf16.mxu0 0
          %3411 = vmatpush1.bf16.msra.mxu0 %v3208
          %3412 = vmatprep.subr.bf16.mxu0 0
          %3413 = vmatpush1.bf16.msra.mxu0 %v3209
          %3414 = vmatprep.subr.bf16.mxu0 0
          %3415 = vmatpush1.bf16.msra.mxu0 %v3210
          %3416 = vmatprep.subr.bf16.mxu0 0
          %3417 = vmatpush1.bf16.msra.mxu0 %v3211
          %3418 = vmatprep.subr.bf16.mxu0 0
          %3419 = vmatpush1.bf16.msra.mxu0 %v3212
          %3420 = vmatprep.subr.bf16.mxu0 0
          %3421 = vmatpush1.bf16.msra.mxu0 %v3213
          %3422 = vmatprep.subr.bf16.mxu0 0
          %3423 = vmatpush1.bf16.msra.mxu0 %v3214
          %3424 = vmatprep.subr.bf16.mxu0 0
          %3425 = vmatpush1.bf16.msra.mxu0 %v3215
          %3426 = vmatprep.subr.bf16.mxu0 0
          %3427 = vmatpush1.bf16.msra.mxu0 %v3216
          %3428 = vmatprep.subr.bf16.mxu0 0
          %3429 = vmatpush1.bf16.msra.mxu0 %v3217
          %3430 = vmatprep.subr.bf16.mxu0 0
          %3431 = vmatpush1.bf16.msra.mxu0 %v3218
          %3432 = vmatprep.subr.bf16.mxu0 0
          %3433 = vmatpush1.bf16.msra.mxu0 %v3219
          %3434 = vmatprep.subr.bf16.mxu0 0
          %3435 = vmatpush1.bf16.msra.mxu0 %v3220
          %3436 = vmatprep.subr.bf16.mxu0 0
          %3437 = vmatpush1.bf16.msra.mxu0 %v3221
          %3438 = vmatprep.mubr.bf16.mxu0 %v2766
          %3439 = vmatmul.mubr.bf16.gmra.mrb[0].mxu0 %v2765
          %v3440 = vpop.f32.mrb[0].mxu0
          %v3441 = vadd.f32 %v3401, %v3440
          %v3442 = vpop.f32.mrb[0].mxu0
          %v3443 = vpop.f32.mrb[0].mxu0
          %v3444 = vpop.f32.mrb[0].mxu0
          %3445 = vdwg.mxu0
          %v3446 = vmax.f32 %v3441, 0.0
          %v3447 = vpack.c.bf16 %v3446, %v3446
          %v3448 = vld [vmem:[#allocation20] sm:$0xf]
          %v3449 = vld [vmem:[#allocation20 + $0x20] sm:$0xf]
          %v3450 = vld [vmem:[#allocation20 + $0x40] sm:$0xf]
          %v3451 = vld [vmem:[#allocation20 + $0x60] sm:$0xf]
          %v3452 = vld [vmem:[#allocation20 + $0x80] sm:$0xf]
          %v3453 = vld [vmem:[#allocation20 + $0xa0] sm:$0xf]
          %v3454 = vld [vmem:[#allocation20 + $0xc0] sm:$0xf]
          %v3455 = vld [vmem:[#allocation20 + $0xe0] sm:$0xf]
          %v3456 = vld [vmem:[#allocation20 + $0x100] sm:$0xf]
          %v3457 = vld [vmem:[#allocation20 + $0x120] sm:$0xf]
          %v3458 = vld [vmem:[#allocation20 + $0x140] sm:$0xf]
          %v3459 = vld [vmem:[#allocation20 + $0x160] sm:$0xf]
          %v3460 = vld [vmem:[#allocation20 + $0x180] sm:$0xf]
          %v3461 = vld [vmem:[#allocation20 + $0x1a0] sm:$0xf]
          %v3462 = vld [vmem:[#allocation20 + $0x1c0] sm:$0xf]
          %v3463 = vld [vmem:[#allocation20 + $0x1e0] sm:$0xf]
          %v3464 = vld [vmem:[#allocation22] sm:$0x1]
          %v3466 = vlaneseq
          %v3467 = vshrl.u32 %v3466, 7
          %v3468 = vsub.s32 0, %v3467
          %v3469 = vrot.slane %v3464, %v3468
          %v3487 = vunpack.c.l.b16 %v3448
          %v3488 = vunpack.c.l.b16 %v3449
          %v3489 = vunpack.c.l.b16 %v3450
          %v3490 = vunpack.c.l.b16 %v3451
          %v3491 = vunpack.c.l.b16 %v3452
          %v3492 = vunpack.c.l.b16 %v3453
          %v3493 = vunpack.c.l.b16 %v3454
          %v3494 = vunpack.c.l.b16 %v3455
          %v3495 = vunpack.c.l.b16 %v3456
          %v3496 = vunpack.c.l.b16 %v3457
          %v3497 = vunpack.c.l.b16 %v3458
          %v3498 = vunpack.c.l.b16 %v3459
          %v3499 = vunpack.c.l.b16 %v3460
          %v3500 = vunpack.c.l.b16 %v3461
          %v3501 = vunpack.c.l.b16 %v3462
          %v3502 = vunpack.c.l.b16 %v3463
          %v3503 = vpack.c.b16 %v3488, %v3487
          %v3504 = vpack.c.b16 %v3490, %v3489
          %v3505 = vpack.c.b16 %v3492, %v3491
          %v3506 = vpack.c.b16 %v3494, %v3493
          %v3507 = vpack.c.b16 %v3496, %v3495
          %v3508 = vpack.c.b16 %v3498, %v3497
          %v3509 = vpack.c.b16 %v3500, %v3499
          %v3510 = vpack.c.b16 %v3502, %v3501
          %3519 = vmatprep.subr.bf16.mxu0 0
          %3520 = vmatpush1.bf16.msra.mxu0 %v3503
          %3521 = vmatprep.subr.bf16.mxu0 0
          %3522 = vmatpush1.bf16.msra.mxu0 %v3504
          %3523 = vmatprep.subr.bf16.mxu0 0
          %3524 = vmatpush1.bf16.msra.mxu0 %v3505
          %3525 = vmatprep.subr.bf16.mxu0 0
          %3526 = vmatpush1.bf16.msra.mxu0 %v3506
          %3527 = vmatprep.subr.bf16.mxu0 0
          %3528 = vmatpush1.bf16.msra.mxu0 %v3507
          %3529 = vmatprep.subr.bf16.mxu0 0
          %3530 = vmatpush1.bf16.msra.mxu0 %v3508
          %3531 = vmatprep.subr.bf16.mxu0 0
          %3532 = vmatpush1.bf16.msra.mxu0 %v3509
          %3533 = vmatprep.subr.bf16.mxu0 0
          %3534 = vmatpush1.bf16.msra.mxu0 %v3510
          %3535 = vmatprep.subr.bf16.mxu0 0
          %3536 = vmatpush1.bf16.msra.mxu0 0
          %3537 = vmatprep.subr.bf16.mxu0 0
          %3538 = vmatpush1.bf16.msra.mxu0 0
          %3539 = vmatprep.subr.bf16.mxu0 0
          %3540 = vmatpush1.bf16.msra.mxu0 0
          %3541 = vmatprep.subr.bf16.mxu0 0
          %3542 = vmatpush1.bf16.msra.mxu0 0
          %3543 = vmatprep.subr.bf16.mxu0 0
          %3544 = vmatpush1.bf16.msra.mxu0 0
          %3545 = vmatprep.subr.bf16.mxu0 0
          %3546 = vmatpush1.bf16.msra.mxu0 0
          %3547 = vmatprep.subr.bf16.mxu0 0
          %3548 = vmatpush1.bf16.msra.mxu0 0
          %3549 = vmatprep.subr.bf16.mxu0 0
          %3550 = vmatpush1.bf16.msra.mxu0 0
          %3551 = vmatprep.mubr.bf16.mxu0 0
          %3552 = vmatmul.mubr.bf16.gmra.mrb[0].mxu0 %v3447
          %v3553 = vpop.f32.mrb[0].mxu0
          %v3554 = vadd.f32 %v3469, %v3553
          %v3555 = vpop.f32.mrb[0].mxu0
          %v3556 = vpop.f32.mrb[0].mxu0
          %v3557 = vpop.f32.mrb[0].mxu0
          %3558 = vdwg.mxu0
          %v3559 = vmax.f32 %v3554, 0.0
          %v3560 = vlaneseq
          %v3561 = vand.u32 %v3560, 127
          %vm3562 = vcmp.ge.s32.totalorder %v3561, 1
          %3563 = vrot.lane.b32.xlu0 %v3559, 1
          %v3564 = vpop.permute.xlu0 %3563
          %v3565 = vsel %vm3562, %v3564, 0.0
          %vm3566 = vcmp.lt.s32.totalorder %v3561, 127
          %3567 = vrot.lane.b32.xlu0 %v3559, 127
          %v3568 = vpop.permute.xlu0 %3567
          %v3569 = vsel %vm3566, %v3568, 0.0
          %vm3570 = vcmp.lt.s32.totalorder %v3561, 126
          %3571 = vrot.lane.b32.xlu0 %v3559, 126
          %v3572 = vpop.permute.xlu0 %3571
          %v3573 = vsel %vm3570, %v3572, 0.0
          %s3574 = sld [smem:[#allocation12]]
          %v3575 = vstv %s3574
          %v3576 = vmul.f32 %v3565, %v3575
          %s3577 = sld [smem:[#allocation12 + $0x1]]
          %v3578 = vstv %s3577
          %v3579 = vmul.f32 %v3559, %v3578
          %v3580 = vadd.f32 %v3576, %v3579
          %s3581 = sld [smem:[#allocation12 + $0x2]]
          %v3582 = vstv %s3581
          %v3583 = vmul.f32 %v3569, %v3582
          %v3584 = vadd.f32 %v3580, %v3583
          %s3585 = sld [smem:[#allocation12 + $0x3]]
          %v3586 = vstv %s3585
          %v3587 = vmul.f32 %v3573, %v3586
          %v3588 = vadd.f32 %v3584, %v3587
          %v3589 = vadd.f32 %v3588, 0.0
          %v3590 = vld [vmem:[#allocation20 + $0x4] sm:$0xf]
          %v3591 = vld [vmem:[#allocation20 + $0x24] sm:$0xf]
          %v3592 = vld [vmem:[#allocation20 + $0x44] sm:$0xf]
          %v3593 = vld [vmem:[#allocation20 + $0x64] sm:$0xf]
          %v3594 = vld [vmem:[#allocation20 + $0x84] sm:$0xf]
          %v3595 = vld [vmem:[#allocation20 + $0xa4] sm:$0xf]
          %v3596 = vld [vmem:[#allocation20 + $0xc4] sm:$0xf]
          %v3597 = vld [vmem:[#allocation20 + $0xe4] sm:$0xf]
          %v3598 = vld [vmem:[#allocation20 + $0x104] sm:$0xf]
          %v3599 = vld [vmem:[#allocation20 + $0x124] sm:$0xf]
          %v3600 = vld [vmem:[#allocation20 + $0x144] sm:$0xf]
          %v3601 = vld [vmem:[#allocation20 + $0x164] sm:$0xf]
          %v3602 = vld [vmem:[#allocation20 + $0x184] sm:$0xf]
          %v3603 = vld [vmem:[#allocation20 + $0x1a4] sm:$0xf]
          %v3604 = vld [vmem:[#allocation20 + $0x1c4] sm:$0xf]
          %v3605 = vld [vmem:[#allocation20 + $0x1e4] sm:$0xf]
          %v3606 = vld [vmem:[#allocation22 + $0x1] sm:$0x1]
          %v3608 = vlaneseq
          %v3609 = vshrl.u32 %v3608, 7
          %v3610 = vsub.s32 0, %v3609
          %v3611 = vrot.slane %v3606, %v3610
          %v3629 = vunpack.c.l.b16 %v3590
          %v3630 = vunpack.c.l.b16 %v3591
          %v3631 = vunpack.c.l.b16 %v3592
          %v3632 = vunpack.c.l.b16 %v3593
          %v3633 = vunpack.c.l.b16 %v3594
          %v3634 = vunpack.c.l.b16 %v3595
          %v3635 = vunpack.c.l.b16 %v3596
          %v3636 = vunpack.c.l.b16 %v3597
          %v3637 = vunpack.c.l.b16 %v3598
          %v3638 = vunpack.c.l.b16 %v3599
          %v3639 = vunpack.c.l.b16 %v3600
          %v3640 = vunpack.c.l.b16 %v3601
          %v3641 = vunpack.c.l.b16 %v3602
          %v3642 = vunpack.c.l.b16 %v3603
          %v3643 = vunpack.c.l.b16 %v3604
          %v3644 = vunpack.c.l.b16 %v3605
          %v3645 = vpack.c.b16 %v3630, %v3629
          %v3646 = vpack.c.b16 %v3632, %v3631
          %v3647 = vpack.c.b16 %v3634, %v3633
          %v3648 = vpack.c.b16 %v3636, %v3635
          %v3649 = vpack.c.b16 %v3638, %v3637
          %v3650 = vpack.c.b16 %v3640, %v3639
          %v3651 = vpack.c.b16 %v3642, %v3641
          %v3652 = vpack.c.b16 %v3644, %v3643
          %3661 = vmatprep.subr.bf16.mxu0 0
          %3662 = vmatpush1.bf16.msra.mxu0 %v3645
          %3663 = vmatprep.subr.bf16.mxu0 0
          %3664 = vmatpush1.bf16.msra.mxu0 %v3646
          %3665 = vmatprep.subr.bf16.mxu0 0
          %3666 = vmatpush1.bf16.msra.mxu0 %v3647
          %3667 = vmatprep.subr.bf16.mxu0 0
          %3668 = vmatpush1.bf16.msra.mxu0 %v3648
          %3669 = vmatprep.subr.bf16.mxu0 0
          %3670 = vmatpush1.bf16.msra.mxu0 %v3649
          %3671 = vmatprep.subr.bf16.mxu0 0
          %3672 = vmatpush1.bf16.msra.mxu0 %v3650
          %3673 = vmatprep.subr.bf16.mxu0 0
          %3674 = vmatpush1.bf16.msra.mxu0 %v3651
          %3675 = vmatprep.subr.bf16.mxu0 0
          %3676 = vmatpush1.bf16.msra.mxu0 %v3652
          %3677 = vmatprep.subr.bf16.mxu0 0
          %3678 = vmatpush1.bf16.msra.mxu0 0
          %3679 = vmatprep.subr.bf16.mxu0 0
          %3680 = vmatpush1.bf16.msra.mxu0 0
          %3681 = vmatprep.subr.bf16.mxu0 0
          %3682 = vmatpush1.bf16.msra.mxu0 0
          %3683 = vmatprep.subr.bf16.mxu0 0
          %3684 = vmatpush1.bf16.msra.mxu0 0
          %3685 = vmatprep.subr.bf16.mxu0 0
          %3686 = vmatpush1.bf16.msra.mxu0 0
          %3687 = vmatprep.subr.bf16.mxu0 0
          %3688 = vmatpush1.bf16.msra.mxu0 0
          %3689 = vmatprep.subr.bf16.mxu0 0
          %3690 = vmatpush1.bf16.msra.mxu0 0
          %3691 = vmatprep.subr.bf16.mxu0 0
          %3692 = vmatpush1.bf16.msra.mxu0 0
          %3693 = vmatprep.mubr.bf16.mxu0 0
          %3694 = vmatmul.mubr.bf16.gmra.mrb[0].mxu0 %v3447
          %v3695 = vpop.f32.mrb[0].mxu0
          %v3696 = vadd.f32 %v3611, %v3695
          %v3697 = vpop.f32.mrb[0].mxu0
          %v3698 = vpop.f32.mrb[0].mxu0
          %v3699 = vpop.f32.mrb[0].mxu0
          %3700 = vdwg.mxu0
          %v3701 = vmax.f32 %v3696, 0.0
          %3702 = vrot.lane.b32.xlu0 %v3701, 1
          %v3703 = vpop.permute.xlu0 %3702
          %v3704 = vsel %vm3562, %v3703, 0.0
          %3705 = vrot.lane.b32.xlu0 %v3701, 127
          %v3706 = vpop.permute.xlu0 %3705
          %v3707 = vsel %vm3566, %v3706, 0.0
          %3708 = vrot.lane.b32.xlu0 %v3701, 126
          %v3709 = vpop.permute.xlu0 %3708
          %v3710 = vsel %vm3570, %v3709, 0.0
          %s3711 = sld [smem:[#allocation12 + $0x80]]
          %v3712 = vstv %s3711
          %v3713 = vmul.f32 %v3704, %v3712
          %s3714 = sld [smem:[#allocation12 + $0x81]]
          %v3715 = vstv %s3714
          %v3716 = vmul.f32 %v3701, %v3715
          %v3717 = vadd.f32 %v3713, %v3716
          %s3718 = sld [smem:[#allocation12 + $0x82]]
          %v3719 = vstv %s3718
          %v3720 = vmul.f32 %v3707, %v3719
          %v3721 = vadd.f32 %v3717, %v3720
          %s3722 = sld [smem:[#allocation12 + $0x83]]
          %v3723 = vstv %s3722
          %v3724 = vmul.f32 %v3710, %v3723
          %v3725 = vadd.f32 %v3721, %v3724
          %v3726 = vadd.f32 %v3589, %v3725
          %v3727 = vld [vmem:[#allocation20 + $0x8] sm:$0xf]
          %v3728 = vld [vmem:[#allocation20 + $0x28] sm:$0xf]
          %v3729 = vld [vmem:[#allocation20 + $0x48] sm:$0xf]
          %v3730 = vld [vmem:[#allocation20 + $0x68] sm:$0xf]
          %v3731 = vld [vmem:[#allocation20 + $0x88] sm:$0xf]
          %v3732 = vld [vmem:[#allocation20 + $0xa8] sm:$0xf]
          %v3733 = vld [vmem:[#allocation20 + $0xc8] sm:$0xf]
          %v3734 = vld [vmem:[#allocation20 + $0xe8] sm:$0xf]
          %v3735 = vld [vmem:[#allocation20 + $0x108] sm:$0xf]
          %v3736 = vld [vmem:[#allocation20 + $0x128] sm:$0xf]
          %v3737 = vld [vmem:[#allocation20 + $0x148] sm:$0xf]
          %v3738 = vld [vmem:[#allocation20 + $0x168] sm:$0xf]
          %v3739 = vld [vmem:[#allocation20 + $0x188] sm:$0xf]
          %v3740 = vld [vmem:[#allocation20 + $0x1a8] sm:$0xf]
          %v3741 = vld [vmem:[#allocation20 + $0x1c8] sm:$0xf]
          %v3742 = vld [vmem:[#allocation20 + $0x1e8] sm:$0xf]
          %v3743 = vld [vmem:[#allocation22 + $0x2] sm:$0x1]
          %v3745 = vlaneseq
          %v3746 = vshrl.u32 %v3745, 7
          %v3747 = vsub.s32 0, %v3746
          %v3748 = vrot.slane %v3743, %v3747
          %v3766 = vunpack.c.l.b16 %v3727
          %v3767 = vunpack.c.l.b16 %v3728
          %v3768 = vunpack.c.l.b16 %v3729
          %v3769 = vunpack.c.l.b16 %v3730
          %v3770 = vunpack.c.l.b16 %v3731
          %v3771 = vunpack.c.l.b16 %v3732
          %v3772 = vunpack.c.l.b16 %v3733
          %v3773 = vunpack.c.l.b16 %v3734
          %v3774 = vunpack.c.l.b16 %v3735
          %v3775 = vunpack.c.l.b16 %v3736
          %v3776 = vunpack.c.l.b16 %v3737
          %v3777 = vunpack.c.l.b16 %v3738
          %v3778 = vunpack.c.l.b16 %v3739
          %v3779 = vunpack.c.l.b16 %v3740
          %v3780 = vunpack.c.l.b16 %v3741
          %v3781 = vunpack.c.l.b16 %v3742
          %v3782 = vpack.c.b16 %v3767, %v3766
          %v3783 = vpack.c.b16 %v3769, %v3768
          %v3784 = vpack.c.b16 %v3771, %v3770
          %v3785 = vpack.c.b16 %v3773, %v3772
          %v3786 = vpack.c.b16 %v3775, %v3774
          %v3787 = vpack.c.b16 %v3777, %v3776
          %v3788 = vpack.c.b16 %v3779, %v3778
          %v3789 = vpack.c.b16 %v3781, %v3780
          %3798 = vmatprep.subr.bf16.mxu0 0
          %3799 = vmatpush1.bf16.msra.mxu0 %v3782
          %3800 = vmatprep.subr.bf16.mxu0 0
          %3801 = vmatpush1.bf16.msra.mxu0 %v3783
          %3802 = vmatprep.subr.bf16.mxu0 0
          %3803 = vmatpush1.bf16.msra.mxu0 %v3784
          %3804 = vmatprep.subr.bf16.mxu0 0
          %3805 = vmatpush1.bf16.msra.mxu0 %v3785
          %3806 = vmatprep.subr.bf16.mxu0 0
          %3807 = vmatpush1.bf16.msra.mxu0 %v3786
          %3808 = vmatprep.subr.bf16.mxu0 0
          %3809 = vmatpush1.bf16.msra.mxu0 %v3787
          %3810 = vmatprep.subr.bf16.mxu0 0
          %3811 = vmatpush1.bf16.msra.mxu0 %v3788
          %3812 = vmatprep.subr.bf16.mxu0 0
          %3813 = vmatpush1.bf16.msra.mxu0 %v3789
          %3814 = vmatprep.subr.bf16.mxu0 0
          %3815 = vmatpush1.bf16.msra.mxu0 0
          %3816 = vmatprep.subr.bf16.mxu0 0
          %3817 = vmatpush1.bf16.msra.mxu0 0
          %3818 = vmatprep.subr.bf16.mxu0 0
          %3819 = vmatpush1.bf16.msra.mxu0 0
          %3820 = vmatprep.subr.bf16.mxu0 0
          %3821 = vmatpush1.bf16.msra.mxu0 0
          %3822 = vmatprep.subr.bf16.mxu0 0
          %3823 = vmatpush1.bf16.msra.mxu0 0
          %3824 = vmatprep.subr.bf16.mxu0 0
          %3825 = vmatpush1.bf16.msra.mxu0 0
          %3826 = vmatprep.subr.bf16.mxu0 0
          %3827 = vmatpush1.bf16.msra.mxu0 0
          %3828 = vmatprep.subr.bf16.mxu0 0
          %3829 = vmatpush1.bf16.msra.mxu0 0
          %3830 = vmatprep.mubr.bf16.mxu0 0
          %3831 = vmatmul.mubr.bf16.gmra.mrb[0].mxu0 %v3447
          %v3832 = vpop.f32.mrb[0].mxu0
          %v3833 = vadd.f32 %v3748, %v3832
          %v3834 = vpop.f32.mrb[0].mxu0
          %v3835 = vpop.f32.mrb[0].mxu0
          %v3836 = vpop.f32.mrb[0].mxu0
          %3837 = vdwg.mxu0
          %v3838 = vmax.f32 %v3833, 0.0
          %3839 = vrot.lane.b32.xlu0 %v3838, 1
          %v3840 = vpop.permute.xlu0 %3839
          %v3841 = vsel %vm3562, %v3840, 0.0
          %3842 = vrot.lane.b32.xlu0 %v3838, 127
          %v3843 = vpop.permute.xlu0 %3842
          %v3844 = vsel %vm3566, %v3843, 0.0
          %3845 = vrot.lane.b32.xlu0 %v3838, 126
          %v3846 = vpop.permute.xlu0 %3845
          %v3847 = vsel %vm3570, %v3846, 0.0
          %s3848 = sld [smem:[#allocation12 + $0x100]]
          %v3849 = vstv %s3848
          %v3850 = vmul.f32 %v3841, %v3849
          %s3851 = sld [smem:[#allocation12 + $0x101]]
          %v3852 = vstv %s3851
          %v3853 = vmul.f32 %v3838, %v3852
          %v3854 = vadd.f32 %v3850, %v3853
          %s3855 = sld [smem:[#allocation12 + $0x102]]
          %v3856 = vstv %s3855
          %v3857 = vmul.f32 %v3844, %v3856
          %v3858 = vadd.f32 %v3854, %v3857
          %s3859 = sld [smem:[#allocation12 + $0x103]]
          %v3860 = vstv %s3859
          %v3861 = vmul.f32 %v3847, %v3860
          %v3862 = vadd.f32 %v3858, %v3861
          %v3863 = vadd.f32 %v3726, %v3862
          %v3864 = vld [vmem:[#allocation20 + $0xc] sm:$0xf]
          %v3865 = vld [vmem:[#allocation20 + $0x2c] sm:$0xf]
          %v3866 = vld [vmem:[#allocation20 + $0x4c] sm:$0xf]
          %v3867 = vld [vmem:[#allocation20 + $0x6c] sm:$0xf]
          %v3868 = vld [vmem:[#allocation20 + $0x8c] sm:$0xf]
          %v3869 = vld [vmem:[#allocation20 + $0xac] sm:$0xf]
          %v3870 = vld [vmem:[#allocation20 + $0xcc] sm:$0xf]
          %v3871 = vld [vmem:[#allocation20 + $0xec] sm:$0xf]
          %v3872 = vld [vmem:[#allocation20 + $0x10c] sm:$0xf]
          %v3873 = vld [vmem:[#allocation20 + $0x12c] sm:$0xf]
          %v3874 = vld [vmem:[#allocation20 + $0x14c] sm:$0xf]
          %v3875 = vld [vmem:[#allocation20 + $0x16c] sm:$0xf]
          %v3876 = vld [vmem:[#allocation20 + $0x18c] sm:$0xf]
          %v3877 = vld [vmem:[#allocation20 + $0x1ac] sm:$0xf]
          %v3878 = vld [vmem:[#allocation20 + $0x1cc] sm:$0xf]
          %v3879 = vld [vmem:[#allocation20 + $0x1ec] sm:$0xf]
          %v3880 = vld [vmem:[#allocation22 + $0x3] sm:$0x1]
          %v3882 = vlaneseq
          %v3883 = vshrl.u32 %v3882, 7
          %v3884 = vsub.s32 0, %v3883
          %v3885 = vrot.slane %v3880, %v3884
          %v3903 = vunpack.c.l.b16 %v3864
          %v3904 = vunpack.c.l.b16 %v3865
          %v3905 = vunpack.c.l.b16 %v3866
          %v3906 = vunpack.c.l.b16 %v3867
          %v3907 = vunpack.c.l.b16 %v3868
          %v3908 = vunpack.c.l.b16 %v3869
          %v3909 = vunpack.c.l.b16 %v3870
          %v3910 = vunpack.c.l.b16 %v3871
          %v3911 = vunpack.c.l.b16 %v3872
          %v3912 = vunpack.c.l.b16 %v3873
          %v3913 = vunpack.c.l.b16 %v3874
          %v3914 = vunpack.c.l.b16 %v3875
          %v3915 = vunpack.c.l.b16 %v3876
          %v3916 = vunpack.c.l.b16 %v3877
          %v3917 = vunpack.c.l.b16 %v3878
          %v3918 = vunpack.c.l.b16 %v3879
          %v3919 = vpack.c.b16 %v3904, %v3903
          %v3920 = vpack.c.b16 %v3906, %v3905
          %v3921 = vpack.c.b16 %v3908, %v3907
          %v3922 = vpack.c.b16 %v3910, %v3909
          %v3923 = vpack.c.b16 %v3912, %v3911
          %v3924 = vpack.c.b16 %v3914, %v3913
          %v3925 = vpack.c.b16 %v3916, %v3915
          %v3926 = vpack.c.b16 %v3918, %v3917
          %3935 = vmatprep.subr.bf16.mxu0 0
          %3936 = vmatpush1.bf16.msra.mxu0 %v3919
          %3937 = vmatprep.subr.bf16.mxu0 0
          %3938 = vmatpush1.bf16.msra.mxu0 %v3920
          %3939 = vmatprep.subr.bf16.mxu0 0
          %3940 = vmatpush1.bf16.msra.mxu0 %v3921
          %3941 = vmatprep.subr.bf16.mxu0 0
          %3942 = vmatpush1.bf16.msra.mxu0 %v3922
          %3943 = vmatprep.subr.bf16.mxu0 0
          %3944 = vmatpush1.bf16.msra.mxu0 %v3923
          %3945 = vmatprep.subr.bf16.mxu0 0
          %3946 = vmatpush1.bf16.msra.mxu0 %v3924
          %3947 = vmatprep.subr.bf16.mxu0 0
          %3948 = vmatpush1.bf16.msra.mxu0 %v3925
          %3949 = vmatprep.subr.bf16.mxu0 0
          %3950 = vmatpush1.bf16.msra.mxu0 %v3926
          %3951 = vmatprep.subr.bf16.mxu0 0
          %3952 = vmatpush1.bf16.msra.mxu0 0
          %3953 = vmatprep.subr.bf16.mxu0 0
          %3954 = vmatpush1.bf16.msra.mxu0 0
          %3955 = vmatprep.subr.bf16.mxu0 0
          %3956 = vmatpush1.bf16.msra.mxu0 0
          %3957 = vmatprep.subr.bf16.mxu0 0
          %3958 = vmatpush1.bf16.msra.mxu0 0
          %3959 = vmatprep.subr.bf16.mxu0 0
          %3960 = vmatpush1.bf16.msra.mxu0 0
          %3961 = vmatprep.subr.bf16.mxu0 0
          %3962 = vmatpush1.bf16.msra.mxu0 0
          %3963 = vmatprep.subr.bf16.mxu0 0
          %3964 = vmatpush1.bf16.msra.mxu0 0
          %3965 = vmatprep.subr.bf16.mxu0 0
          %3966 = vmatpush1.bf16.msra.mxu0 0
          %3967 = vmatprep.mubr.bf16.mxu0 0
          %3968 = vmatmul.mubr.bf16.gmra.mrb[0].mxu0 %v3447
          %v3969 = vpop.f32.mrb[0].mxu0
          %v3970 = vadd.f32 %v3885, %v3969
          %v3971 = vpop.f32.mrb[0].mxu0
          %v3972 = vpop.f32.mrb[0].mxu0
          %v3973 = vpop.f32.mrb[0].mxu0
          %3974 = vdwg.mxu0
          %v3975 = vmax.f32 %v3970, 0.0
          %3976 = vrot.lane.b32.xlu0 %v3975, 1
          %v3977 = vpop.permute.xlu0 %3976
          %v3978 = vsel %vm3562, %v3977, 0.0
          %3979 = vrot.lane.b32.xlu0 %v3975, 127
          %v3980 = vpop.permute.xlu0 %3979
          %v3981 = vsel %vm3566, %v3980, 0.0
          %3982 = vrot.lane.b32.xlu0 %v3975, 126
          %v3983 = vpop.permute.xlu0 %3982
          %v3984 = vsel %vm3570, %v3983, 0.0
          %s3985 = sld [smem:[#allocation12 + $0x180]]
          %v3986 = vstv %s3985
          %v3987 = vmul.f32 %v3978, %v3986
          %s3988 = sld [smem:[#allocation12 + $0x181]]
          %v3989 = vstv %s3988
          %v3990 = vmul.f32 %v3975, %v3989
          %v3991 = vadd.f32 %v3987, %v3990
          %s3992 = sld [smem:[#allocation12 + $0x182]]
          %v3993 = vstv %s3992
          %v3994 = vmul.f32 %v3981, %v3993
          %v3995 = vadd.f32 %v3991, %v3994
          %s3996 = sld [smem:[#allocation12 + $0x183]]
          %v3997 = vstv %s3996
          %v3998 = vmul.f32 %v3984, %v3997
          %v3999 = vadd.f32 %v3995, %v3998
          %v4000 = vadd.f32 %v3863, %v3999
          %v4001 = vld [vmem:[#allocation20 + $0x10] sm:$0xf]
          %v4002 = vld [vmem:[#allocation20 + $0x30] sm:$0xf]
          %v4003 = vld [vmem:[#allocation20 + $0x50] sm:$0xf]
          %v4004 = vld [vmem:[#allocation20 + $0x70] sm:$0xf]
          %v4005 = vld [vmem:[#allocation20 + $0x90] sm:$0xf]
          %v4006 = vld [vmem:[#allocation20 + $0xb0] sm:$0xf]
          %v4007 = vld [vmem:[#allocation20 + $0xd0] sm:$0xf]
          %v4008 = vld [vmem:[#allocation20 + $0xf0] sm:$0xf]
          %v4009 = vld [vmem:[#allocation20 + $0x110] sm:$0xf]
          %v4010 = vld [vmem:[#allocation20 + $0x130] sm:$0xf]
          %v4011 = vld [vmem:[#allocation20 + $0x150] sm:$0xf]
          %v4012 = vld [vmem:[#allocation20 + $0x170] sm:$0xf]
          %v4013 = vld [vmem:[#allocation20 + $0x190] sm:$0xf]
          %v4014 = vld [vmem:[#allocation20 + $0x1b0] sm:$0xf]
          %v4015 = vld [vmem:[#allocation20 + $0x1d0] sm:$0xf]
          %v4016 = vld [vmem:[#allocation20 + $0x1f0] sm:$0xf]
          %v4017 = vld [vmem:[#allocation22 + $0x4] sm:$0x1]
          %v4019 = vlaneseq
          %v4020 = vshrl.u32 %v4019, 7
          %v4021 = vsub.s32 0, %v4020
          %v4022 = vrot.slane %v4017, %v4021
          %v4040 = vunpack.c.l.b16 %v4001
          %v4041 = vunpack.c.l.b16 %v4002
          %v4042 = vunpack.c.l.b16 %v4003
          %v4043 = vunpack.c.l.b16 %v4004
          %v4044 = vunpack.c.l.b16 %v4005
          %v4045 = vunpack.c.l.b16 %v4006
          %v4046 = vunpack.c.l.b16 %v4007
          %v4047 = vunpack.c.l.b16 %v4008
          %v4048 = vunpack.c.l.b16 %v4009
          %v4049 = vunpack.c.l.b16 %v4010
          %v4050 = vunpack.c.l.b16 %v4011
          %v4051 = vunpack.c.l.b16 %v4012
          %v4052 = vunpack.c.l.b16 %v4013
          %v4053 = vunpack.c.l.b16 %v4014
          %v4054 = vunpack.c.l.b16 %v4015
          %v4055 = vunpack.c.l.b16 %v4016
          %v4056 = vpack.c.b16 %v4041, %v4040
          %v4057 = vpack.c.b16 %v4043, %v4042
          %v4058 = vpack.c.b16 %v4045, %v4044
          %v4059 = vpack.c.b16 %v4047, %v4046
          %v4060 = vpack.c.b16 %v4049, %v4048
          %v4061 = vpack.c.b16 %v4051, %v4050
          %v4062 = vpack.c.b16 %v4053, %v4052
          %v4063 = vpack.c.b16 %v4055, %v4054
          %4072 = vmatprep.subr.bf16.mxu0 0
          %4073 = vmatpush1.bf16.msra.mxu0 %v4056
          %4074 = vmatprep.subr.bf16.mxu0 0
          %4075 = vmatpush1.bf16.msra.mxu0 %v4057
          %4076 = vmatprep.subr.bf16.mxu0 0
          %4077 = vmatpush1.bf16.msra.mxu0 %v4058
          %4078 = vmatprep.subr.bf16.mxu0 0
          %4079 = vmatpush1.bf16.msra.mxu0 %v4059
          %4080 = vmatprep.subr.bf16.mxu0 0
          %4081 = vmatpush1.bf16.msra.mxu0 %v4060
          %4082 = vmatprep.subr.bf16.mxu0 0
          %4083 = vmatpush1.bf16.msra.mxu0 %v4061
          %4084 = vmatprep.subr.bf16.mxu0 0
          %4085 = vmatpush1.bf16.msra.mxu0 %v4062
          %4086 = vmatprep.subr.bf16.mxu0 0
          %4087 = vmatpush1.bf16.msra.mxu0 %v4063
          %4088 = vmatprep.subr.bf16.mxu0 0
          %4089 = vmatpush1.bf16.msra.mxu0 0
          %4090 = vmatprep.subr.bf16.mxu0 0
          %4091 = vmatpush1.bf16.msra.mxu0 0
          %4092 = vmatprep.subr.bf16.mxu0 0
          %4093 = vmatpush1.bf16.msra.mxu0 0
          %4094 = vmatprep.subr.bf16.mxu0 0
          %4095 = vmatpush1.bf16.msra.mxu0 0
          %4096 = vmatprep.subr.bf16.mxu0 0
          %4097 = vmatpush1.bf16.msra.mxu0 0
          %4098 = vmatprep.subr.bf16.mxu0 0
          %4099 = vmatpush1.bf16.msra.mxu0 0
          %4100 = vmatprep.subr.bf16.mxu0 0
          %4101 = vmatpush1.bf16.msra.mxu0 0
          %4102 = vmatprep.subr.bf16.mxu0 0
          %4103 = vmatpush1.bf16.msra.mxu0 0
          %4104 = vmatprep.mubr.bf16.mxu0 0
          %4105 = vmatmul.mubr.bf16.gmra.mrb[0].mxu0 %v3447
          %v4106 = vpop.f32.mrb[0].mxu0
          %v4107 = vadd.f32 %v4022, %v4106
          %v4108 = vpop.f32.mrb[0].mxu0
          %v4109 = vpop.f32.mrb[0].mxu0
          %v4110 = vpop.f32.mrb[0].mxu0
          %4111 = vdwg.mxu0
          %v4112 = vmax.f32 %v4107, 0.0
          %4113 = vrot.lane.b32.xlu0 %v4112, 1
          %v4114 = vpop.permute.xlu0 %4113
          %v4115 = vsel %vm3562, %v4114, 0.0
          %4116 = vrot.lane.b32.xlu0 %v4112, 127
          %v4117 = vpop.permute.xlu0 %4116
          %v4118 = vsel %vm3566, %v4117, 0.0
          %4119 = vrot.lane.b32.xlu0 %v4112, 126
          %v4120 = vpop.permute.xlu0 %4119
          %v4121 = vsel %vm3570, %v4120, 0.0
          %s4122 = sld [smem:[#allocation12 + $0x200]]
          %v4123 = vstv %s4122
          %v4124 = vmul.f32 %v4115, %v4123
          %s4125 = sld [smem:[#allocation12 + $0x201]]
          %v4126 = vstv %s4125
          %v4127 = vmul.f32 %v4112, %v4126
          %v4128 = vadd.f32 %v4124, %v4127
          %s4129 = sld [smem:[#allocation12 + $0x202]]
          %v4130 = vstv %s4129
          %v4131 = vmul.f32 %v4118, %v4130
          %v4132 = vadd.f32 %v4128, %v4131
          %s4133 = sld [smem:[#allocation12 + $0x203]]
          %v4134 = vstv %s4133
          %v4135 = vmul.f32 %v4121, %v4134
          %v4136 = vadd.f32 %v4132, %v4135
          %v4137 = vadd.f32 %v4000, %v4136
          %v4138 = vld [vmem:[#allocation20 + $0x14] sm:$0xf]
          %v4139 = vld [vmem:[#allocation20 + $0x34] sm:$0xf]
          %v4140 = vld [vmem:[#allocation20 + $0x54] sm:$0xf]
          %v4141 = vld [vmem:[#allocation20 + $0x74] sm:$0xf]
          %v4142 = vld [vmem:[#allocation20 + $0x94] sm:$0xf]
          %v4143 = vld [vmem:[#allocation20 + $0xb4] sm:$0xf]
          %v4144 = vld [vmem:[#allocation20 + $0xd4] sm:$0xf]
          %v4145 = vld [vmem:[#allocation20 + $0xf4] sm:$0xf]
          %v4146 = vld [vmem:[#allocation20 + $0x114] sm:$0xf]
          %v4147 = vld [vmem:[#allocation20 + $0x134] sm:$0xf]
          %v4148 = vld [vmem:[#allocation20 + $0x154] sm:$0xf]
          %v4149 = vld [vmem:[#allocation20 + $0x174] sm:$0xf]
          %v4150 = vld [vmem:[#allocation20 + $0x194] sm:$0xf]
          %v4151 = vld [vmem:[#allocation20 + $0x1b4] sm:$0xf]
          %v4152 = vld [vmem:[#allocation20 + $0x1d4] sm:$0xf]
          %v4153 = vld [vmem:[#allocation20 + $0x1f4] sm:$0xf]
          %v4154 = vld [vmem:[#allocation22 + $0x5] sm:$0x1]
          %v4156 = vlaneseq
          %v4157 = vshrl.u32 %v4156, 7
          %v4158 = vsub.s32 0, %v4157
          %v4159 = vrot.slane %v4154, %v4158
          %v4177 = vunpack.c.l.b16 %v4138
          %v4178 = vunpack.c.l.b16 %v4139
          %v4179 = vunpack.c.l.b16 %v4140
          %v4180 = vunpack.c.l.b16 %v4141
          %v4181 = vunpack.c.l.b16 %v4142
          %v4182 = vunpack.c.l.b16 %v4143
          %v4183 = vunpack.c.l.b16 %v4144
          %v4184 = vunpack.c.l.b16 %v4145
          %v4185 = vunpack.c.l.b16 %v4146
          %v4186 = vunpack.c.l.b16 %v4147
          %v4187 = vunpack.c.l.b16 %v4148
          %v4188 = vunpack.c.l.b16 %v4149
          %v4189 = vunpack.c.l.b16 %v4150
          %v4190 = vunpack.c.l.b16 %v4151
          %v4191 = vunpack.c.l.b16 %v4152
          %v4192 = vunpack.c.l.b16 %v4153
          %v4193 = vpack.c.b16 %v4178, %v4177
          %v4194 = vpack.c.b16 %v4180, %v4179
          %v4195 = vpack.c.b16 %v4182, %v4181
          %v4196 = vpack.c.b16 %v4184, %v4183
          %v4197 = vpack.c.b16 %v4186, %v4185
          %v4198 = vpack.c.b16 %v4188, %v4187
          %v4199 = vpack.c.b16 %v4190, %v4189
          %v4200 = vpack.c.b16 %v4192, %v4191
          %4209 = vmatprep.subr.bf16.mxu0 0
          %4210 = vmatpush1.bf16.msra.mxu0 %v4193
          %4211 = vmatprep.subr.bf16.mxu0 0
          %4212 = vmatpush1.bf16.msra.mxu0 %v4194
          %4213 = vmatprep.subr.bf16.mxu0 0
          %4214 = vmatpush1.bf16.msra.mxu0 %v4195
          %4215 = vmatprep.subr.bf16.mxu0 0
          %4216 = vmatpush1.bf16.msra.mxu0 %v4196
          %4217 = vmatprep.subr.bf16.mxu0 0
          %4218 = vmatpush1.bf16.msra.mxu0 %v4197
          %4219 = vmatprep.subr.bf16.mxu0 0
          %4220 = vmatpush1.bf16.msra.mxu0 %v4198
          %4221 = vmatprep.subr.bf16.mxu0 0
          %4222 = vmatpush1.bf16.msra.mxu0 %v4199
          %4223 = vmatprep.subr.bf16.mxu0 0
          %4224 = vmatpush1.bf16.msra.mxu0 %v4200
          %4225 = vmatprep.subr.bf16.mxu0 0
          %4226 = vmatpush1.bf16.msra.mxu0 0
          %4227 = vmatprep.subr.bf16.mxu0 0
          %4228 = vmatpush1.bf16.msra.mxu0 0
          %4229 = vmatprep.subr.bf16.mxu0 0
          %4230 = vmatpush1.bf16.msra.mxu0 0
          %4231 = vmatprep.subr.bf16.mxu0 0
          %4232 = vmatpush1.bf16.msra.mxu0 0
          %4233 = vmatprep.subr.bf16.mxu0 0
          %4234 = vmatpush1.bf16.msra.mxu0 0
          %4235 = vmatprep.subr.bf16.mxu0 0
          %4236 = vmatpush1.bf16.msra.mxu0 0
          %4237 = vmatprep.subr.bf16.mxu0 0
          %4238 = vmatpush1.bf16.msra.mxu0 0
          %4239 = vmatprep.subr.bf16.mxu0 0
          %4240 = vmatpush1.bf16.msra.mxu0 0
          %4241 = vmatprep.mubr.bf16.mxu0 0
          %4242 = vmatmul.mubr.bf16.gmra.mrb[0].mxu0 %v3447
          %v4243 = vpop.f32.mrb[0].mxu0
          %v4244 = vadd.f32 %v4159, %v4243
          %v4245 = vpop.f32.mrb[0].mxu0
          %v4246 = vpop.f32.mrb[0].mxu0
          %v4247 = vpop.f32.mrb[0].mxu0
          %4248 = vdwg.mxu0
          %v4249 = vmax.f32 %v4244, 0.0
          %4250 = vrot.lane.b32.xlu0 %v4249, 1
          %v4251 = vpop.permute.xlu0 %4250
          %v4252 = vsel %vm3562, %v4251, 0.0
          %4253 = vrot.lane.b32.xlu0 %v4249, 127
          %v4254 = vpop.permute.xlu0 %4253
          %v4255 = vsel %vm3566, %v4254, 0.0
          %4256 = vrot.lane.b32.xlu0 %v4249, 126
          %v4257 = vpop.permute.xlu0 %4256
          %v4258 = vsel %vm3570, %v4257, 0.0
          %s4259 = sld [smem:[#allocation12 + $0x280]]
          %v4260 = vstv %s4259
          %v4261 = vmul.f32 %v4252, %v4260
          %s4262 = sld [smem:[#allocation12 + $0x281]]
          %v4263 = vstv %s4262
          %v4264 = vmul.f32 %v4249, %v4263
          %v4265 = vadd.f32 %v4261, %v4264
          %s4266 = sld [smem:[#allocation12 + $0x282]]
          %v4267 = vstv %s4266
          %v4268 = vmul.f32 %v4255, %v4267
          %v4269 = vadd.f32 %v4265, %v4268
          %s4270 = sld [smem:[#allocation12 + $0x283]]
          %v4271 = vstv %s4270
          %v4272 = vmul.f32 %v4258, %v4271
          %v4273 = vadd.f32 %v4269, %v4272
          %v4274 = vadd.f32 %v4137, %v4273
          %v4275 = vld [vmem:[#allocation20 + $0x18] sm:$0xf]
          %v4276 = vld [vmem:[#allocation20 + $0x38] sm:$0xf]
          %v4277 = vld [vmem:[#allocation20 + $0x58] sm:$0xf]
          %v4278 = vld [vmem:[#allocation20 + $0x78] sm:$0xf]
          %v4279 = vld [vmem:[#allocation20 + $0x98] sm:$0xf]
          %v4280 = vld [vmem:[#allocation20 + $0xb8] sm:$0xf]
          %v4281 = vld [vmem:[#allocation20 + $0xd8] sm:$0xf]
          %v4282 = vld [vmem:[#allocation20 + $0xf8] sm:$0xf]
          %v4283 = vld [vmem:[#allocation20 + $0x118] sm:$0xf]
          %v4284 = vld [vmem:[#allocation20 + $0x138] sm:$0xf]
          %v4285 = vld [vmem:[#allocation20 + $0x158] sm:$0xf]
          %v4286 = vld [vmem:[#allocation20 + $0x178] sm:$0xf]
          %v4287 = vld [vmem:[#allocation20 + $0x198] sm:$0xf]
          %v4288 = vld [vmem:[#allocation20 + $0x1b8] sm:$0xf]
          %v4289 = vld [vmem:[#allocation20 + $0x1d8] sm:$0xf]
          %v4290 = vld [vmem:[#allocation20 + $0x1f8] sm:$0xf]
          %v4291 = vld [vmem:[#allocation22 + $0x6] sm:$0x1]
          %v4293 = vlaneseq
          %v4294 = vshrl.u32 %v4293, 7
          %v4295 = vsub.s32 0, %v4294
          %v4296 = vrot.slane %v4291, %v4295
          %v4314 = vunpack.c.l.b16 %v4275
          %v4315 = vunpack.c.l.b16 %v4276
          %v4316 = vunpack.c.l.b16 %v4277
          %v4317 = vunpack.c.l.b16 %v4278
          %v4318 = vunpack.c.l.b16 %v4279
          %v4319 = vunpack.c.l.b16 %v4280
          %v4320 = vunpack.c.l.b16 %v4281
          %v4321 = vunpack.c.l.b16 %v4282
          %v4322 = vunpack.c.l.b16 %v4283
          %v4323 = vunpack.c.l.b16 %v4284
          %v4324 = vunpack.c.l.b16 %v4285
          %v4325 = vunpack.c.l.b16 %v4286
          %v4326 = vunpack.c.l.b16 %v4287
          %v4327 = vunpack.c.l.b16 %v4288
          %v4328 = vunpack.c.l.b16 %v4289
          %v4329 = vunpack.c.l.b16 %v4290
          %v4330 = vpack.c.b16 %v4315, %v4314
          %v4331 = vpack.c.b16 %v4317, %v4316
          %v4332 = vpack.c.b16 %v4319, %v4318
          %v4333 = vpack.c.b16 %v4321, %v4320
          %v4334 = vpack.c.b16 %v4323, %v4322
          %v4335 = vpack.c.b16 %v4325, %v4324
          %v4336 = vpack.c.b16 %v4327, %v4326
          %v4337 = vpack.c.b16 %v4329, %v4328
          %4346 = vmatprep.subr.bf16.mxu0 0
          %4347 = vmatpush1.bf16.msra.mxu0 %v4330
          %4348 = vmatprep.subr.bf16.mxu0 0
          %4349 = vmatpush1.bf16.msra.mxu0 %v4331
          %4350 = vmatprep.subr.bf16.mxu0 0
          %4351 = vmatpush1.bf16.msra.mxu0 %v4332
          %4352 = vmatprep.subr.bf16.mxu0 0
          %4353 = vmatpush1.bf16.msra.mxu0 %v4333
          %4354 = vmatprep.subr.bf16.mxu0 0
          %4355 = vmatpush1.bf16.msra.mxu0 %v4334
          %4356 = vmatprep.subr.bf16.mxu0 0
          %4357 = vmatpush1.bf16.msra.mxu0 %v4335
          %4358 = vmatprep.subr.bf16.mxu0 0
          %4359 = vmatpush1.bf16.msra.mxu0 %v4336
          %4360 = vmatprep.subr.bf16.mxu0 0
          %4361 = vmatpush1.bf16.msra.mxu0 %v4337
          %4362 = vmatprep.subr.bf16.mxu0 0
          %4363 = vmatpush1.bf16.msra.mxu0 0
          %4364 = vmatprep.subr.bf16.mxu0 0
          %4365 = vmatpush1.bf16.msra.mxu0 0
          %4366 = vmatprep.subr.bf16.mxu0 0
          %4367 = vmatpush1.bf16.msra.mxu0 0
          %4368 = vmatprep.subr.bf16.mxu0 0
          %4369 = vmatpush1.bf16.msra.mxu0 0
          %4370 = vmatprep.subr.bf16.mxu0 0
          %4371 = vmatpush1.bf16.msra.mxu0 0
          %4372 = vmatprep.subr.bf16.mxu0 0
          %4373 = vmatpush1.bf16.msra.mxu0 0
          %4374 = vmatprep.subr.bf16.mxu0 0
          %4375 = vmatpush1.bf16.msra.mxu0 0
          %4376 = vmatprep.subr.bf16.mxu0 0
          %4377 = vmatpush1.bf16.msra.mxu0 0
          %4378 = vmatprep.mubr.bf16.mxu0 0
          %4379 = vmatmul.mubr.bf16.gmra.mrb[0].mxu0 %v3447
          %v4380 = vpop.f32.mrb[0].mxu0
          %v4381 = vadd.f32 %v4296, %v4380
          %v4382 = vpop.f32.mrb[0].mxu0
          %v4383 = vpop.f32.mrb[0].mxu0
          %v4384 = vpop.f32.mrb[0].mxu0
          %4385 = vdwg.mxu0
          %v4386 = vmax.f32 %v4381, 0.0
          %4387 = vrot.lane.b32.xlu0 %v4386, 1
          %v4388 = vpop.permute.xlu0 %4387
          %v4389 = vsel %vm3562, %v4388, 0.0
          %4390 = vrot.lane.b32.xlu0 %v4386, 127
          %v4391 = vpop.permute.xlu0 %4390
          %v4392 = vsel %vm3566, %v4391, 0.0
          %4393 = vrot.lane.b32.xlu0 %v4386, 126
          %v4394 = vpop.permute.xlu0 %4393
          %v4395 = vsel %vm3570, %v4394, 0.0
          %s4396 = sld [smem:[#allocation12 + $0x300]]
          %v4397 = vstv %s4396
          %v4398 = vmul.f32 %v4389, %v4397
          %s4399 = sld [smem:[#allocation12 + $0x301]]
          %v4400 = vstv %s4399
          %v4401 = vmul.f32 %v4386, %v4400
          %v4402 = vadd.f32 %v4398, %v4401
          %s4403 = sld [smem:[#allocation12 + $0x302]]
          %v4404 = vstv %s4403
          %v4405 = vmul.f32 %v4392, %v4404
          %v4406 = vadd.f32 %v4402, %v4405
          %s4407 = sld [smem:[#allocation12 + $0x303]]
          %v4408 = vstv %s4407
          %v4409 = vmul.f32 %v4395, %v4408
          %v4410 = vadd.f32 %v4406, %v4409
          %v4411 = vadd.f32 %v4274, %v4410
          %v4412 = vld [vmem:[#allocation20 + $0x1c] sm:$0xf]
          %v4413 = vld [vmem:[#allocation20 + $0x3c] sm:$0xf]
          %v4414 = vld [vmem:[#allocation20 + $0x5c] sm:$0xf]
          %v4415 = vld [vmem:[#allocation20 + $0x7c] sm:$0xf]
          %v4416 = vld [vmem:[#allocation20 + $0x9c] sm:$0xf]
          %v4417 = vld [vmem:[#allocation20 + $0xbc] sm:$0xf]
          %v4418 = vld [vmem:[#allocation20 + $0xdc] sm:$0xf]
          %v4419 = vld [vmem:[#allocation20 + $0xfc] sm:$0xf]
          %v4420 = vld [vmem:[#allocation20 + $0x11c] sm:$0xf]
          %v4421 = vld [vmem:[#allocation20 + $0x13c] sm:$0xf]
          %v4422 = vld [vmem:[#allocation20 + $0x15c] sm:$0xf]
          %v4423 = vld [vmem:[#allocation20 + $0x17c] sm:$0xf]
          %v4424 = vld [vmem:[#allocation20 + $0x19c] sm:$0xf]
          %v4425 = vld [vmem:[#allocation20 + $0x1bc] sm:$0xf]
          %v4426 = vld [vmem:[#allocation20 + $0x1dc] sm:$0xf]
          %v4427 = vld [vmem:[#allocation20 + $0x1fc] sm:$0xf]
          %v4428 = vld [vmem:[#allocation22 + $0x7] sm:$0x1]
          %v4430 = vlaneseq
          %v4431 = vshrl.u32 %v4430, 7
          %v4432 = vsub.s32 0, %v4431
          %v4433 = vrot.slane %v4428, %v4432
          %v4451 = vunpack.c.l.b16 %v4412
          %v4452 = vunpack.c.l.b16 %v4413
          %v4453 = vunpack.c.l.b16 %v4414
          %v4454 = vunpack.c.l.b16 %v4415
          %v4455 = vunpack.c.l.b16 %v4416
          %v4456 = vunpack.c.l.b16 %v4417
          %v4457 = vunpack.c.l.b16 %v4418
          %v4458 = vunpack.c.l.b16 %v4419
          %v4459 = vunpack.c.l.b16 %v4420
          %v4460 = vunpack.c.l.b16 %v4421
          %v4461 = vunpack.c.l.b16 %v4422
          %v4462 = vunpack.c.l.b16 %v4423
          %v4463 = vunpack.c.l.b16 %v4424
          %v4464 = vunpack.c.l.b16 %v4425
          %v4465 = vunpack.c.l.b16 %v4426
          %v4466 = vunpack.c.l.b16 %v4427
          %v4467 = vpack.c.b16 %v4452, %v4451
          %v4468 = vpack.c.b16 %v4454, %v4453
          %v4469 = vpack.c.b16 %v4456, %v4455
          %v4470 = vpack.c.b16 %v4458, %v4457
          %v4471 = vpack.c.b16 %v4460, %v4459
          %v4472 = vpack.c.b16 %v4462, %v4461
          %v4473 = vpack.c.b16 %v4464, %v4463
          %v4474 = vpack.c.b16 %v4466, %v4465
          %4483 = vmatprep.subr.bf16.mxu0 0
          %4484 = vmatpush1.bf16.msra.mxu0 %v4467
          %4485 = vmatprep.subr.bf16.mxu0 0
          %4486 = vmatpush1.bf16.msra.mxu0 %v4468
          %4487 = vmatprep.subr.bf16.mxu0 0
          %4488 = vmatpush1.bf16.msra.mxu0 %v4469
          %4489 = vmatprep.subr.bf16.mxu0 0
          %4490 = vmatpush1.bf16.msra.mxu0 %v4470
          %4491 = vmatprep.subr.bf16.mxu0 0
          %4492 = vmatpush1.bf16.msra.mxu0 %v4471
          %4493 = vmatprep.subr.bf16.mxu0 0
          %4494 = vmatpush1.bf16.msra.mxu0 %v4472
          %4495 = vmatprep.subr.bf16.mxu0 0
          %4496 = vmatpush1.bf16.msra.mxu0 %v4473
          %4497 = vmatprep.subr.bf16.mxu0 0
          %4498 = vmatpush1.bf16.msra.mxu0 %v4474
          %4499 = vmatprep.subr.bf16.mxu0 0
          %4500 = vmatpush1.bf16.msra.mxu0 0
          %4501 = vmatprep.subr.bf16.mxu0 0
          %4502 = vmatpush1.bf16.msra.mxu0 0
          %4503 = vmatprep.subr.bf16.mxu0 0
          %4504 = vmatpush1.bf16.msra.mxu0 0
          %4505 = vmatprep.subr.bf16.mxu0 0
          %4506 = vmatpush1.bf16.msra.mxu0 0
          %4507 = vmatprep.subr.bf16.mxu0 0
          %4508 = vmatpush1.bf16.msra.mxu0 0
          %4509 = vmatprep.subr.bf16.mxu0 0
          %4510 = vmatpush1.bf16.msra.mxu0 0
          %4511 = vmatprep.subr.bf16.mxu0 0
          %4512 = vmatpush1.bf16.msra.mxu0 0
          %4513 = vmatprep.subr.bf16.mxu0 0
          %4514 = vmatpush1.bf16.msra.mxu0 0
          %4515 = vmatprep.mubr.bf16.mxu0 0
          %4516 = vmatmul.mubr.bf16.gmra.mrb[0].mxu0 %v3447
          %v4517 = vpop.f32.mrb[0].mxu0
          %v4518 = vadd.f32 %v4433, %v4517
          %v4519 = vpop.f32.mrb[0].mxu0
          %v4520 = vpop.f32.mrb[0].mxu0
          %v4521 = vpop.f32.mrb[0].mxu0
          %4522 = vdwg.mxu0
          %v4523 = vmax.f32 %v4518, 0.0
          %4524 = vrot.lane.b32.xlu0 %v4523, 1
          %v4525 = vpop.permute.xlu0 %4524
          %v4526 = vsel %vm3562, %v4525, 0.0
          %4527 = vrot.lane.b32.xlu0 %v4523, 127
          %v4528 = vpop.permute.xlu0 %4527
          %v4529 = vsel %vm3566, %v4528, 0.0
          %4530 = vrot.lane.b32.xlu0 %v4523, 126
          %v4531 = vpop.permute.xlu0 %4530
          %v4532 = vsel %vm3570, %v4531, 0.0
          %s4533 = sld [smem:[#allocation12 + $0x380]]
          %v4534 = vstv %s4533
          %v4535 = vmul.f32 %v4526, %v4534
          %s4536 = sld [smem:[#allocation12 + $0x381]]
          %v4537 = vstv %s4536
          %v4538 = vmul.f32 %v4523, %v4537
          %v4539 = vadd.f32 %v4535, %v4538
          %s4540 = sld [smem:[#allocation12 + $0x382]]
          %v4541 = vstv %s4540
          %v4542 = vmul.f32 %v4529, %v4541
          %v4543 = vadd.f32 %v4539, %v4542
          %s4544 = sld [smem:[#allocation12 + $0x383]]
          %v4545 = vstv %s4544
          %v4546 = vmul.f32 %v4532, %v4545
          %v4547 = vadd.f32 %v4543, %v4546
          %v4548 = vadd.f32 %v4411, %v4547
          %s4549 = sld [smem:[#allocation4]]
          %v4550 = vstv %s4549
          %v4551 = vadd.f32 %v4548, %v4550
          %4552 = vst [vmem:[%s559] sm:$0xff] %v4551
        $region120: #{tpu_custom_call.1} parent=63 // pred_fallthru
          _
        %s4553 = sand.u32 %s298, 1
        %s4554 = scalar_lea.sflag [#allocation7], %s4553
        %s4555 = sand.u32 %s298, 1
        %s4556 = smul.addr %s4555, 8
        %s4557 = scalar_lea.vmem [#allocation23], %s4556
        // Predicated region
        $region121: #{tpu_custom_call.1} parent=63 // pred_check
          %p4558 = pneg %p308
        $region122: #{tpu_custom_call.1} parent=63 // pred_check_branch
          %4560 = sbr.rel (%p4558) target = $region124
        $region123: #{tpu_custom_call.1} parent=63 // pred_region
          %s4562 = ssub.s32 128, 128
          %4563 = vsyncadd %s4554, %s4562
          %s4564 = smul.addr %s41, 128
          %s4565 = scalar_lea.hbm %s11, %s4564
          %s4567 = sshll.u32 %s4557, 4
          %s4568 = int_to_ptr.vmem [resolvable:$true] %s4567
          %4570 = dma.vmem_to_hbm [thread:$0]  %s4568, 128, %s4565, %s4554
        $region124: #{tpu_custom_call.1} parent=63 // pred_fallthru
          _
      $region64: #{tpu_custom_call.1} parent=5 // pred_fallthru
        _
      %p4571 = scmp.le.s32.totalorder 2, %s32
      // Predicated region
      $region125: #{tpu_custom_call.1} parent=5 // pred_check
        %p4572 = pneg %p4571
      $region126: #{tpu_custom_call.1} parent=5 // pred_check_branch
        %4574 = sbr.rel (%p4572) target = $region128
      $region127: #{tpu_custom_call.1} parent=5 // pred_region
        %s4575 = ssub.s32 %s32, 2
        // Predicated region
        $region129: #{tpu_custom_call.1} parent=127 // pred_check
          %p4576 = pneg %p314
        $region130: #{tpu_custom_call.1} parent=127 // pred_check_branch
          %4578 = sbr.rel (%p4576) target = $region132
        $region131: #{tpu_custom_call.1} parent=127 // pred_region
          %s4579 = sand.u32 %s299, 1
          %s4580 = scalar_lea.sflag [#allocation7], %s4579
          %s4581 = sand.u32 %s299, 1
          %s4582 = smul.addr %s4581, 8
          %s4583 = scalar_lea.vmem [#allocation23], %s4582
          %4584 = dma.done %s4580, 128
        $region132: #{tpu_custom_call.1} parent=127 // pred_fallthru
          _
      $region128: #{tpu_custom_call.1} parent=5 // pred_fallthru
        _
    $region6: #{tpu_custom_call.1} parent=1 // loop_footer
      %s36 = sadd.s32 1, %s32
    $region7: #{tpu_custom_call.1} parent=1 // loop_footer_branch
      %31 = sbr.rel target = $region3
    $region8: #{tpu_custom_call.1} parent=1 // loop_exit
      _
    %4585 = vsyncpa [#allocation6], 1
    %s4586 = scalar_lea.sflag [#allocation6], 1
    %4587 = vsyncpa %s4586, 1
    %4588 = vsyncpa [#allocation15], 1
    %s4589 = scalar_lea.sflag [#allocation15], 1
    %4590 = vsyncpa %s4589, 1
    %4591 = vsyncpa [#allocation18], 1
    %4592 = vsyncpa [#allocation21], 1
    %4593 = vsyncpa [#allocation7], 1
    %s4594 = scalar_lea.sflag [#allocation7], 1
    %4595 = vsyncpa %s4594, 1
    %4596 = vsyncpa [#allocation8], 1
    %s4597 = scalar_lea.sflag [#allocation8], 1
    %4598 = vsyncpa %s4597, 1
    %4599 = vsyncpa [#allocation9], 1
    %s4600 = scalar_lea.sflag [#allocation9], 1
    %4601 = vsyncpa %s4600, 1
    %4602 = vsyncpa [#allocation13], 1

</llo_original>
